<compile_context>
chip_gen: v7x
topology: tpu7x:2x2x1
jax: 0.10.0
libtpu: 0.0.40
codegen_flags: <defaults>
</compile_context>

<pallas_src>
import functools

import jax
import jax.numpy as jnp
from jax import lax
from jax.experimental import pallas as pl
from jax.experimental.pallas import tpu as pltpu


# ----------------------------------------------------------------------------
# In-kernel im2col helpers (operate on values already resident on-chip).
# ----------------------------------------------------------------------------
def _im2col_s1(xp, ho, wo, cin):
    """3x3 / stride-1 / pad-1 patch matrix.  xp: (ho+2, wo+2, cin), zero halo."""
    taps = []
    for kh in range(3):
        for kw in range(3):
            taps.append(xp[kh:kh + ho, kw:kw + wo, :].reshape(ho * wo, cin))
    return jnp.concatenate(taps, axis=-1)                  # (ho*wo, 9*cin)


def _im2col_s2(xp, ho, wo, cin):
    """3x3 / stride-2 / pad-1 patch matrix for the KEPT output pixels only.

    xp: (2*ho+2, 2*wo+2, cin), zero halo.  The W parity split is one
    lane-preserving reshape per layer; the H stride uses only leading-dim
    reshapes (free).  Tap order matches w.reshape(9*cin, cout).
    """
    hp = 2 * ho + 2
    par = xp.reshape(hp, wo + 1, 2, cin)                   # col q -> (q//2, q%2)
    even = par[:, :, 0, :]                                 # (hp, wo+1, cin) cols 2u
    odd = par[:, :, 1, :]                                  # (hp, wo+1, cin) cols 2u+1
    taps = []
    for kh in range(3):
        ev = even[kh:kh + 2 * ho].reshape(ho, 2, wo + 1, cin)[:, 0]   # rows 2i+kh
        od = odd[kh:kh + 2 * ho].reshape(ho, 2, wo + 1, cin)[:, 0]
        taps.append(ev[:, 0:wo, :].reshape(ho * wo, cin))             # (kh, 0)
        taps.append(od[:, 0:wo, :].reshape(ho * wo, cin))             # (kh, 1)
        taps.append(ev[:, 1:wo + 1, :].reshape(ho * wo, cin))         # (kh, 2)
    return jnp.concatenate(taps, axis=-1)                  # (ho*wo, 9*cin)


# ----------------------------------------------------------------------------
# Fused base (conv3x3+BN+ReLU stack) + regression (1x1 conv) kernel.
# Grid = (batch,); one grid step processes one image end-to-end.
# ----------------------------------------------------------------------------
def _make_fused_kernel(height, width, plan, n_classes):
    n_layers = len(plan)
    sizes = []
    h, w = height, width
    for (_, _, s) in plan:
        sizes.append((h, w))
        h, w = h // s, w // s
    h_out, w_out = h, w

    def kernel(*refs):
        x_ref = refs[0]
        conv_refs = refs[1:1 + 2 * n_layers]               # w0, b0, w1, b1, ...
        reg_w_ref = refs[1 + 2 * n_layers]
        reg_b_ref = refs[2 + 2 * n_layers]
        o_ref = refs[3 + 2 * n_layers]
        act_refs = refs[4 + 2 * n_layers:]                 # padded activations

        # Zero the padded-activation scratch.  Only the 1-pixel halo needs it
        # (the interior is fully overwritten below), but zeroing every grid
        # step is tiny and stays correct when the batch axis is sharded
        # across TensorCores.
        for a_ref in act_refs:
            a_ref[...] = jnp.zeros(a_ref.shape, a_ref.dtype)

        xp = x_ref[0]                                      # (H+2, W+2, Cin0)
        feat = None
        for li, (cin, cout, stride) in enumerate(plan):
            hin, win = sizes[li]
            ho, wo = hin // stride, win // stride
            w_ref = conv_refs[2 * li]
            b_ref = conv_refs[2 * li + 1]
            if stride == 1:
                patches = _im2col_s1(xp, ho, wo, cin)      # (ho*wo, 9*cin)
            else:
                patches = _im2col_s2(xp, ho, wo, cin)      # (ho*wo, 9*cin)
            y = jnp.dot(patches, w_ref[...],
                        preferred_element_type=jnp.float32)
            y = jnp.maximum(y + b_ref[...], 0.0)           # BN folded: +shift
            if li + 1 < n_layers:
                nxt = act_refs[li]                         # (ho+2, wo+2, cout)
                nxt[1:ho + 1, 1:wo + 1, :] = y.reshape(ho, wo, cout)
                xp = nxt[...]                              # next layer's input
            else:
                feat = y                                   # (h_out*w_out, out_dim)

        # Fused 1x1 regression head while features are still VMEM-resident.
        out = jnp.dot(feat, reg_w_ref[...],
                      preferred_element_type=jnp.float32) + reg_b_ref[...]
        o_ref[0] = out.reshape(h_out, w_out, n_classes).astype(o_ref.dtype)

    return kernel, (h_out, w_out)


@functools.partial(jax.jit, static_argnames=("plan",))
def _drn_forward(x_nchw, conv_ws, conv_bs, reg_w, reg_b, *, plan):
    n, _, height, width = x_nchw.shape
    n_classes = reg_w.shape[1]
    in_ch = plan[0][0]

    x = jnp.transpose(x_nchw, (0, 2, 3, 1))                # NCHW -> NHWC
    x_pad = jnp.pad(x, ((0, 0), (1, 1), (1, 1), (0, 0)))   # pad once, not per layer

    kernel, (h_out, w_out) = _make_fused_kernel(height, width, plan, n_classes)

    inputs = [x_pad]
    in_specs = [pl.BlockSpec((1, height + 2, width + 2, in_ch),
                             lambda b: (b, 0, 0, 0))]
    for w_p, b_p in zip(conv_ws, conv_bs):
        inputs += [w_p, b_p]
        in_specs += [pl.BlockSpec(w_p.shape, lambda b: (0, 0)),
                     pl.BlockSpec(b_p.shape, lambda b: (0, 0))]
    reg_b2 = reg_b.reshape(1, n_classes)
    inputs += [reg_w, reg_b2]
    in_specs += [pl.BlockSpec(reg_w.shape, lambda b: (0, 0)),
                 pl.BlockSpec(reg_b2.shape, lambda b: (0, 0))]

    # VMEM scratch for zero-padded intermediate activations (never hit HBM).
    scratch_shapes = []
    h, w = height, width
    for (cin, cout, stride) in plan[:-1]:
        h, w = h // stride, w // stride
        scratch_shapes.append(pltpu.VMEM((h + 2, w + 2, cout), jnp.float32))

    y = pl.pallas_call(
        kernel,
        out_shape=jax.ShapeDtypeStruct((n, h_out, w_out, n_classes),
                                       jnp.float32),
        grid_spec=pltpu.PrefetchScalarGridSpec(
            num_scalar_prefetch=0,
            grid=(n,),
            in_specs=in_specs,
            out_specs=pl.BlockSpec((1, h_out, w_out, n_classes),
                                   lambda b: (b, 0, 0, 0)),
            scratch_shapes=scratch_shapes,
        ),
        compiler_params=pltpu.CompilerParams(
            dimension_semantics=("parallel",)),
    )(*inputs)
    return jnp.transpose(y, (0, 3, 1, 2))                  # NHWC -> NCHW


# ----------------------------------------------------------------------------
# Module wrapper with deterministic parameter init.
# ----------------------------------------------------------------------------
class DRNRegressionDownsampledPallas:
    def __init__(self, key, in_ch=3, out_dim=32, n_classes=2):
        # Representative DRN-like stem: output stride 8, out_dim channels.
        self.plan = ((in_ch, 16, 1), (16, 32, 2), (32, 32, 2), (32, out_dim, 2))
        keys = jax.random.split(key, len(self.plan) * 3 + 2)
        ki = 0
        conv_ws, conv_bs, raw = [], [], []
        for (cin, cout, stride) in self.plan:
            w = jax.random.normal(keys[ki], (3, 3, cin, cout), jnp.float32) \
                * jnp.sqrt(2.0 / (9 * cin))
            gamma = 0.5 + jax.random.uniform(keys[ki + 1], (cout,), jnp.float32)
            beta = 0.1 * jax.random.normal(keys[ki + 2], (cout,), jnp.float32)
            ki += 3
            # eval-mode BN (running_mean=0, running_var=1, eps=1e-5)
            scale = gamma / jnp.sqrt(1.0 + 1e-5)
            # Fold the BN scale into the conv weights; keep the shift as bias.
            w_folded = (w * scale[None, None, None, :]).reshape(9 * cin, cout)
            conv_ws.append(w_folded)
            conv_bs.append(beta.reshape(1, cout))
            raw.append((w, scale, beta, stride))
        self.conv_ws = tuple(conv_ws)
        self.conv_bs = tuple(conv_bs)
        self._raw = tuple(raw)
        # regression = nn.Conv2d(out_dim, 2, kernel_size=1, bias=True)
        self.reg_w = jax.random.normal(keys[ki], (out_dim, n_classes),
                                       jnp.float32) * jnp.sqrt(1.0 / out_dim)
        self.reg_b = 0.01 * jax.random.normal(keys[ki + 1], (n_classes,),
                                              jnp.float32)

    def __call__(self, x_nchw):
        _, c, h, w = x_nchw.shape
        assert c == self.plan[0][0] and h % 8 == 0 and w % 8 == 0
        return _drn_forward(x_nchw, self.conv_ws, self.conv_bs,
                            self.reg_w, self.reg_b, plan=self.plan)

    # pure-JAX reference for correctness checking
    def reference(self, x_nchw):
        x = jnp.transpose(x_nchw, (0, 2, 3, 1))
        for (w, scale, beta, stride) in self._raw:
            y = lax.conv_general_dilated(
                x, w, window_strides=(stride, stride),
                padding=((1, 1), (1, 1)),
                dimension_numbers=("NHWC", "HWIO", "NHWC"),
                precision=lax.Precision.HIGHEST)
            x = jnp.maximum(y * scale + beta, 0.0)
        y = jnp.einsum("nhwc,co->nhwo", x, self.reg_w,
                       precision=lax.Precision.HIGHEST) + self.reg_b
        return jnp.transpose(y, (0, 3, 1, 2))


if __name__ == "__main__":
    key = jax.random.PRNGKey(0)
    k_param, k_x = jax.random.split(key)
    model = DRNRegressionDownsampledPallas(k_param, in_ch=3, out_dim=32)

    # small input consistent with the module: NCHW, 3-channel image
    x = jax.random.normal(k_x, (2, 3, 16, 16), jnp.float32)

    y = jax.block_until_ready(model(x))
    assert y.shape == (2, 2, 2, 2), y.shape              # (N, 2, H/8, W/8)

    y_ref = jax.block_until_ready(model.reference(x))
    max_err = float(jnp.max(jnp.abs(y - y_ref)))
    assert jnp.allclose(y, y_ref, atol=1e-3, rtol=1e-3), max_err

    print("KERNEL_OK")
</pallas_src>

<mosaic_0001>
module attributes {stable_mosaic.version = 11 : i64} {
  func.func @kernel(%arg0: i32, %arg1: memref<1x18x18x3xf32, #tpu.memory_space<vmem>>, %arg2: memref<27x16xf32, #tpu.memory_space<vmem>>, %arg3: memref<1x16xf32, #tpu.memory_space<vmem>>, %arg4: memref<144x32xf32, #tpu.memory_space<vmem>>, %arg5: memref<1x32xf32, #tpu.memory_space<vmem>>, %arg6: memref<288x32xf32, #tpu.memory_space<vmem>>, %arg7: memref<1x32xf32, #tpu.memory_space<vmem>>, %arg8: memref<288x32xf32, #tpu.memory_space<vmem>>, %arg9: memref<1x32xf32, #tpu.memory_space<vmem>>, %arg10: memref<32x2xf32, #tpu.memory_space<vmem>>, %arg11: memref<1x2xf32, #tpu.memory_space<vmem>>, %arg12: memref<1x2x2x2xf32, #tpu.memory_space<vmem>>, %arg13: memref<18x18x16xf32, #tpu.memory_space<vmem>>, %arg14: memref<10x10x32xf32, #tpu.memory_space<vmem>>, %arg15: memref<6x6x32xf32, #tpu.memory_space<vmem>>) attributes {dimension_semantics = [#tpu.dimension_semantics<parallel>], iteration_bounds = array<i64: 2>, scalar_prefetch = 0 : i64, scratch_operands = 3 : i64, tpu.core_type = #tpu.core_type<tc>, window_params = [{transform_indices = @transform_0, window_bounds = array<i64: 1, 18, 18, 3>}, {pipeline_mode = #tpu.pipeline_mode<synchronous>, transform_indices = @transform_1, window_bounds = array<i64: 27, 16>}, {pipeline_mode = #tpu.pipeline_mode<synchronous>, transform_indices = @transform_2, window_bounds = array<i64: 1, 16>}, {pipeline_mode = #tpu.pipeline_mode<synchronous>, transform_indices = @transform_3, window_bounds = array<i64: 144, 32>}, {pipeline_mode = #tpu.pipeline_mode<synchronous>, transform_indices = @transform_4, window_bounds = array<i64: 1, 32>}, {pipeline_mode = #tpu.pipeline_mode<synchronous>, transform_indices = @transform_5, window_bounds = array<i64: 288, 32>}, {pipeline_mode = #tpu.pipeline_mode<synchronous>, transform_indices = @transform_6, window_bounds = array<i64: 1, 32>}, {pipeline_mode = #tpu.pipeline_mode<synchronous>, transform_indices = @transform_7, window_bounds = array<i64: 288, 32>}, {pipeline_mode = #tpu.pipeline_mode<synchronous>, transform_indices = @transform_8, window_bounds = array<i64: 1, 32>}, {pipeline_mode = #tpu.pipeline_mode<synchronous>, transform_indices = @transform_9, window_bounds = array<i64: 32, 2>}, {pipeline_mode = #tpu.pipeline_mode<synchronous>, transform_indices = @transform_10, window_bounds = array<i64: 1, 2>}, {transform_indices = @transform_11, window_bounds = array<i64: 1, 2, 2, 2>}]} {
    %cst = arith.constant 0.000000e+00 : f32
    %0 = vector.broadcast %cst : f32 to vector<18x18x16xf32>
    %c0 = arith.constant 0 : index
    %c0_0 = arith.constant 0 : index
    %c0_1 = arith.constant 0 : index
    %1 = vector.load %arg13[%c0, %c0_0, %c0_1] : memref<18x18x16xf32, #tpu.memory_space<vmem>>, vector<18x18x16xf32>
    tpu.vector_store %arg13[%c0, %c0_0, %c0_1], %0 {strides = array<i32>} : memref<18x18x16xf32, #tpu.memory_space<vmem>>, vector<18x18x16xf32>,
    %cst_2 = arith.constant 0.000000e+00 : f32
    %2 = vector.broadcast %cst_2 : f32 to vector<10x10x32xf32>
    %c0_3 = arith.constant 0 : index
    %c0_4 = arith.constant 0 : index
    %c0_5 = arith.constant 0 : index
    %3 = vector.load %arg14[%c0_3, %c0_4, %c0_5] : memref<10x10x32xf32, #tpu.memory_space<vmem>>, vector<10x10x32xf32>
    tpu.vector_store %arg14[%c0_3, %c0_4, %c0_5], %2 {strides = array<i32>} : memref<10x10x32xf32, #tpu.memory_space<vmem>>, vector<10x10x32xf32>,
    %cst_6 = arith.constant 0.000000e+00 : f32
    %4 = vector.broadcast %cst_6 : f32 to vector<6x6x32xf32>
    %c0_7 = arith.constant 0 : index
    %c0_8 = arith.constant 0 : index
    %c0_9 = arith.constant 0 : index
    %5 = vector.load %arg15[%c0_7, %c0_8, %c0_9] : memref<6x6x32xf32, #tpu.memory_space<vmem>>, vector<6x6x32xf32>
    tpu.vector_store %arg15[%c0_7, %c0_8, %c0_9], %4 {strides = array<i32>} : memref<6x6x32xf32, #tpu.memory_space<vmem>>, vector<6x6x32xf32>,
    %c0_10 = arith.constant 0 : index
    %c0_11 = arith.constant 0 : index
    %c0_12 = arith.constant 0 : index
    %c0_13 = arith.constant 0 : index
    %6 = vector.load %arg1[%c0_10, %c0_11, %c0_12, %c0_13] : memref<1x18x18x3xf32, #tpu.memory_space<vmem>>, vector<1x18x18x3xf32>
    %7 = vector.shape_cast %6 : vector<1x18x18x3xf32> to vector<18x18x3xf32>
    %8 = vector.extract_strided_slice %7 {offsets = [0, 0, 0], sizes = [16, 16, 3], strides = [1, 1, 1]} : vector<18x18x3xf32> to vector<16x16x3xf32>
    %9 = vector.shape_cast %8 : vector<16x16x3xf32> to vector<256x3xf32>
    %10 = vector.extract_strided_slice %7 {offsets = [0, 1, 0], sizes = [16, 16, 3], strides = [1, 1, 1]} : vector<18x18x3xf32> to vector<16x16x3xf32>
    %11 = vector.shape_cast %10 : vector<16x16x3xf32> to vector<256x3xf32>
    %12 = vector.extract_strided_slice %7 {offsets = [0, 2, 0], sizes = [16, 16, 3], strides = [1, 1, 1]} : vector<18x18x3xf32> to vector<16x16x3xf32>
    %13 = vector.shape_cast %12 : vector<16x16x3xf32> to vector<256x3xf32>
    %14 = vector.extract_strided_slice %7 {offsets = [1, 0, 0], sizes = [16, 16, 3], strides = [1, 1, 1]} : vector<18x18x3xf32> to vector<16x16x3xf32>
    %15 = vector.shape_cast %14 : vector<16x16x3xf32> to vector<256x3xf32>
    %16 = vector.extract_strided_slice %7 {offsets = [1, 1, 0], sizes = [16, 16, 3], strides = [1, 1, 1]} : vector<18x18x3xf32> to vector<16x16x3xf32>
    %17 = vector.shape_cast %16 : vector<16x16x3xf32> to vector<256x3xf32>
    %18 = vector.extract_strided_slice %7 {offsets = [1, 2, 0], sizes = [16, 16, 3], strides = [1, 1, 1]} : vector<18x18x3xf32> to vector<16x16x3xf32>
    %19 = vector.shape_cast %18 : vector<16x16x3xf32> to vector<256x3xf32>
    %20 = vector.extract_strided_slice %7 {offsets = [2, 0, 0], sizes = [16, 16, 3], strides = [1, 1, 1]} : vector<18x18x3xf32> to vector<16x16x3xf32>
    %21 = vector.shape_cast %20 : vector<16x16x3xf32> to vector<256x3xf32>
    %22 = vector.extract_strided_slice %7 {offsets = [2, 1, 0], sizes = [16, 16, 3], strides = [1, 1, 1]} : vector<18x18x3xf32> to vector<16x16x3xf32>
    %23 = vector.shape_cast %22 : vector<16x16x3xf32> to vector<256x3xf32>
    %24 = vector.extract_strided_slice %7 {offsets = [2, 2, 0], sizes = [16, 16, 3], strides = [1, 1, 1]} : vector<18x18x3xf32> to vector<16x16x3xf32>
    %25 = vector.shape_cast %24 : vector<16x16x3xf32> to vector<256x3xf32>
    %26 = tpu.concatenate %9, %11, %13, %15, %17, %19, %21, %23, %25 in 1 : vector<256x3xf32>, vector<256x3xf32>, vector<256x3xf32>, vector<256x3xf32>, vector<256x3xf32>, vector<256x3xf32>, vector<256x3xf32>, vector<256x3xf32>, vector<256x3xf32> -> vector<256x27xf32>
    %c0_14 = arith.constant 0 : index
    %c0_15 = arith.constant 0 : index
    %27 = vector.load %arg2[%c0_14, %c0_15] : memref<27x16xf32, #tpu.memory_space<vmem>>, vector<27x16xf32>
    %cst_16 = arith.constant dense<0.000000e+00> : vector<256x16xf32>
    %28 = tpu.matmul %26, %27, %cst_16 {dimension_numbers = #tpu.dot_dimension_numbers<[1], [0], [0], [1], [0, 0, 1, 1], [], []>} : vector<256x27xf32>, vector<27x16xf32>, vector<256x16xf32> -> vector<256x16xf32>
    %c0_17 = arith.constant 0 : index
    %c0_18 = arith.constant 0 : index
    %29 = vector.load %arg3[%c0_17, %c0_18] : memref<1x16xf32, #tpu.memory_space<vmem>>, vector<1x16xf32>
    %30 = vector.broadcast %29 : vector<1x16xf32> to vector<256x16xf32>
    %31 = arith.addf %28, %30 : vector<256x16xf32>
    %cst_19 = arith.constant 0.000000e+00 : f32
    %32 = vector.broadcast %cst_19 : f32 to vector<256x16xf32>
    %33 = arith.maximumf %31, %32 : vector<256x16xf32>
    %34 = vector.shape_cast %33 : vector<256x16xf32> to vector<16x16x16xf32>
    %c1 = arith.constant 1 : index
    %c1_20 = arith.constant 1 : index
    %c0_21 = arith.constant 0 : index
    %35 = vector.load %arg13[%c1, %c1_20, %c0_21] : memref<18x18x16xf32, #tpu.memory_space<vmem>>, vector<16x16x16xf32>
    tpu.vector_store %arg13[%c1, %c1_20, %c0_21], %34 {strides = array<i32>} : memref<18x18x16xf32, #tpu.memory_space<vmem>>, vector<16x16x16xf32>,
    %c0_22 = arith.constant 0 : index
    %c0_23 = arith.constant 0 : index
    %c0_24 = arith.constant 0 : index
    %36 = vector.load %arg13[%c0_22, %c0_23, %c0_24] : memref<18x18x16xf32, #tpu.memory_space<vmem>>, vector<18x18x16xf32>
    %37 = vector.shape_cast %36 : vector<18x18x16xf32> to vector<18x9x2x16xf32>
    %38 = vector.extract_strided_slice %37 {offsets = [0, 0, 0, 0], sizes = [18, 9, 1, 16], strides = [1, 1, 1, 1]} : vector<18x9x2x16xf32> to vector<18x9x1x16xf32>
    %39 = vector.shape_cast %38 : vector<18x9x1x16xf32> to vector<18x9x16xf32>
    %40 = vector.extract_strided_slice %37 {offsets = [0, 0, 1, 0], sizes = [18, 9, 1, 16], strides = [1, 1, 1, 1]} : vector<18x9x2x16xf32> to vector<18x9x1x16xf32>
    %41 = vector.shape_cast %40 : vector<18x9x1x16xf32> to vector<18x9x16xf32>
    %42 = vector.extract_strided_slice %39 {offsets = [0, 0, 0], sizes = [16, 9, 16], strides = [1, 1, 1]} : vector<18x9x16xf32> to vector<16x9x16xf32>
    %43 = vector.shape_cast %42 : vector<16x9x16xf32> to vector<8x2x9x16xf32>
    %44 = vector.extract_strided_slice %43 {offsets = [0, 0, 0, 0], sizes = [8, 1, 9, 16], strides = [1, 1, 1, 1]} : vector<8x2x9x16xf32> to vector<8x1x9x16xf32>
    %45 = vector.shape_cast %44 : vector<8x1x9x16xf32> to vector<8x9x16xf32>
    %46 = vector.extract_strided_slice %41 {offsets = [0, 0, 0], sizes = [16, 9, 16], strides = [1, 1, 1]} : vector<18x9x16xf32> to vector<16x9x16xf32>
    %47 = vector.shape_cast %46 : vector<16x9x16xf32> to vector<8x2x9x16xf32>
    %48 = vector.extract_strided_slice %47 {offsets = [0, 0, 0, 0], sizes = [8, 1, 9, 16], strides = [1, 1, 1, 1]} : vector<8x2x9x16xf32> to vector<8x1x9x16xf32>
    %49 = vector.shape_cast %48 : vector<8x1x9x16xf32> to vector<8x9x16xf32>
    %50 = vector.extract_strided_slice %45 {offsets = [0, 0, 0], sizes = [8, 8, 16], strides = [1, 1, 1]} : vector<8x9x16xf32> to vector<8x8x16xf32>
    %51 = vector.shape_cast %50 : vector<8x8x16xf32> to vector<64x16xf32>
    %52 = vector.extract_strided_slice %49 {offsets = [0, 0, 0], sizes = [8, 8, 16], strides = [1, 1, 1]} : vector<8x9x16xf32> to vector<8x8x16xf32>
    %53 = vector.shape_cast %52 : vector<8x8x16xf32> to vector<64x16xf32>
    %54 = vector.extract_strided_slice %45 {offsets = [0, 1, 0], sizes = [8, 8, 16], strides = [1, 1, 1]} : vector<8x9x16xf32> to vector<8x8x16xf32>
    %55 = vector.shape_cast %54 : vector<8x8x16xf32> to vector<64x16xf32>
    %56 = vector.extract_strided_slice %39 {offsets = [1, 0, 0], sizes = [16, 9, 16], strides = [1, 1, 1]} : vector<18x9x16xf32> to vector<16x9x16xf32>
    %57 = vector.shape_cast %56 : vector<16x9x16xf32> to vector<8x2x9x16xf32>
    %58 = vector.extract_strided_slice %57 {offsets = [0, 0, 0, 0], sizes = [8, 1, 9, 16], strides = [1, 1, 1, 1]} : vector<8x2x9x16xf32> to vector<8x1x9x16xf32>
    %59 = vector.shape_cast %58 : vector<8x1x9x16xf32> to vector<8x9x16xf32>
    %60 = vector.extract_strided_slice %41 {offsets = [1, 0, 0], sizes = [16, 9, 16], strides = [1, 1, 1]} : vector<18x9x16xf32> to vector<16x9x16xf32>
    %61 = vector.shape_cast %60 : vector<16x9x16xf32> to vector<8x2x9x16xf32>
    %62 = vector.extract_strided_slice %61 {offsets = [0, 0, 0, 0], sizes = [8, 1, 9, 16], strides = [1, 1, 1, 1]} : vector<8x2x9x16xf32> to vector<8x1x9x16xf32>
    %63 = vector.shape_cast %62 : vector<8x1x9x16xf32> to vector<8x9x16xf32>
    %64 = vector.extract_strided_slice %59 {offsets = [0, 0, 0], sizes = [8, 8, 16], strides = [1, 1, 1]} : vector<8x9x16xf32> to vector<8x8x16xf32>
    %65 = vector.shape_cast %64 : vector<8x8x16xf32> to vector<64x16xf32>
    %66 = vector.extract_strided_slice %63 {offsets = [0, 0, 0], sizes = [8, 8, 16], strides = [1, 1, 1]} : vector<8x9x16xf32> to vector<8x8x16xf32>
    %67 = vector.shape_cast %66 : vector<8x8x16xf32> to vector<64x16xf32>
    %68 = vector.extract_strided_slice %59 {offsets = [0, 1, 0], sizes = [8, 8, 16], strides = [1, 1, 1]} : vector<8x9x16xf32> to vector<8x8x16xf32>
    %69 = vector.shape_cast %68 : vector<8x8x16xf32> to vector<64x16xf32>
    %70 = vector.extract_strided_slice %39 {offsets = [2, 0, 0], sizes = [16, 9, 16], strides = [1, 1, 1]} : vector<18x9x16xf32> to vector<16x9x16xf32>
    %71 = vector.shape_cast %70 : vector<16x9x16xf32> to vector<8x2x9x16xf32>
    %72 = vector.extract_strided_slice %71 {offsets = [0, 0, 0, 0], sizes = [8, 1, 9, 16], strides = [1, 1, 1, 1]} : vector<8x2x9x16xf32> to vector<8x1x9x16xf32>
    %73 = vector.shape_cast %72 : vector<8x1x9x16xf32> to vector<8x9x16xf32>
    %74 = vector.extract_strided_slice %41 {offsets = [2, 0, 0], sizes = [16, 9, 16], strides = [1, 1, 1]} : vector<18x9x16xf32> to vector<16x9x16xf32>
    %75 = vector.shape_cast %74 : vector<16x9x16xf32> to vector<8x2x9x16xf32>
    %76 = vector.extract_strided_slice %75 {offsets = [0, 0, 0, 0], sizes = [8, 1, 9, 16], strides = [1, 1, 1, 1]} : vector<8x2x9x16xf32> to vector<8x1x9x16xf32>
    %77 = vector.shape_cast %76 : vector<8x1x9x16xf32> to vector<8x9x16xf32>
    %78 = vector.extract_strided_slice %73 {offsets = [0, 0, 0], sizes = [8, 8, 16], strides = [1, 1, 1]} : vector<8x9x16xf32> to vector<8x8x16xf32>
    %79 = vector.shape_cast %78 : vector<8x8x16xf32> to vector<64x16xf32>
    %80 = vector.extract_strided_slice %77 {offsets = [0, 0, 0], sizes = [8, 8, 16], strides = [1, 1, 1]} : vector<8x9x16xf32> to vector<8x8x16xf32>
    %81 = vector.shape_cast %80 : vector<8x8x16xf32> to vector<64x16xf32>
    %82 = vector.extract_strided_slice %73 {offsets = [0, 1, 0], sizes = [8, 8, 16], strides = [1, 1, 1]} : vector<8x9x16xf32> to vector<8x8x16xf32>
    %83 = vector.shape_cast %82 : vector<8x8x16xf32> to vector<64x16xf32>
    %84 = tpu.concatenate %51, %53, %55, %65, %67, %69, %79, %81, %83 in 1 : vector<64x16xf32>, vector<64x16xf32>, vector<64x16xf32>, vector<64x16xf32>, vector<64x16xf32>, vector<64x16xf32>, vector<64x16xf32>, vector<64x16xf32>, vector<64x16xf32> -> vector<64x144xf32>
    %c0_25 = arith.constant 0 : index
    %c0_26 = arith.constant 0 : index
    %85 = vector.load %arg4[%c0_25, %c0_26] : memref<144x32xf32, #tpu.memory_space<vmem>>, vector<144x32xf32>
    %cst_27 = arith.constant dense<0.000000e+00> : vector<64x32xf32>
    %86 = tpu.matmul %84, %85, %cst_27 {dimension_numbers = #tpu.dot_dimension_numbers<[1], [0], [0], [1], [0, 0, 1, 1], [], []>} : vector<64x144xf32>, vector<144x32xf32>, vector<64x32xf32> -> vector<64x32xf32>
    %c0_28 = arith.constant 0 : index
    %c0_29 = arith.constant 0 : index
    %87 = vector.load %arg5[%c0_28, %c0_29] : memref<1x32xf32, #tpu.memory_space<vmem>>, vector<1x32xf32>
    %88 = vector.broadcast %87 : vector<1x32xf32> to vector<64x32xf32>
    %89 = arith.addf %86, %88 : vector<64x32xf32>
    %cst_30 = arith.constant 0.000000e+00 : f32
    %90 = vector.broadcast %cst_30 : f32 to vector<64x32xf32>
    %91 = arith.maximumf %89, %90 : vector<64x32xf32>
    %92 = vector.shape_cast %91 : vector<64x32xf32> to vector<8x8x32xf32>
    %c1_31 = arith.constant 1 : index
    %c1_32 = arith.constant 1 : index
    %c0_33 = arith.constant 0 : index
    %93 = vector.load %arg14[%c1_31, %c1_32, %c0_33] : memref<10x10x32xf32, #tpu.memory_space<vmem>>, vector<8x8x32xf32>
    tpu.vector_store %arg14[%c1_31, %c1_32, %c0_33], %92 {strides = array<i32>} : memref<10x10x32xf32, #tpu.memory_space<vmem>>, vector<8x8x32xf32>,
    %c0_34 = arith.constant 0 : index
    %c0_35 = arith.constant 0 : index
    %c0_36 = arith.constant 0 : index
    %94 = vector.load %arg14[%c0_34, %c0_35, %c0_36] : memref<10x10x32xf32, #tpu.memory_space<vmem>>, vector<10x10x32xf32>
    %95 = vector.shape_cast %94 : vector<10x10x32xf32> to vector<10x5x2x32xf32>
    %96 = vector.extract_strided_slice %95 {offsets = [0, 0, 0, 0], sizes = [10, 5, 1, 32], strides = [1, 1, 1, 1]} : vector<10x5x2x32xf32> to vector<10x5x1x32xf32>
    %97 = vector.shape_cast %96 : vector<10x5x1x32xf32> to vector<10x5x32xf32>
    %98 = vector.extract_strided_slice %95 {offsets = [0, 0, 1, 0], sizes = [10, 5, 1, 32], strides = [1, 1, 1, 1]} : vector<10x5x2x32xf32> to vector<10x5x1x32xf32>
    %99 = vector.shape_cast %98 : vector<10x5x1x32xf32> to vector<10x5x32xf32>
    %100 = vector.extract_strided_slice %97 {offsets = [0, 0, 0], sizes = [8, 5, 32], strides = [1, 1, 1]} : vector<10x5x32xf32> to vector<8x5x32xf32>
    %101 = vector.shape_cast %100 : vector<8x5x32xf32> to vector<4x2x5x32xf32>
    %102 = vector.extract_strided_slice %101 {offsets = [0, 0, 0, 0], sizes = [4, 1, 5, 32], strides = [1, 1, 1, 1]} : vector<4x2x5x32xf32> to vector<4x1x5x32xf32>
    %103 = vector.shape_cast %102 : vector<4x1x5x32xf32> to vector<4x5x32xf32>
    %104 = vector.extract_strided_slice %99 {offsets = [0, 0, 0], sizes = [8, 5, 32], strides = [1, 1, 1]} : vector<10x5x32xf32> to vector<8x5x32xf32>
    %105 = vector.shape_cast %104 : vector<8x5x32xf32> to vector<4x2x5x32xf32>
    %106 = vector.extract_strided_slice %105 {offsets = [0, 0, 0, 0], sizes = [4, 1, 5, 32], strides = [1, 1, 1, 1]} : vector<4x2x5x32xf32> to vector<4x1x5x32xf32>
    %107 = vector.shape_cast %106 : vector<4x1x5x32xf32> to vector<4x5x32xf32>
    %108 = vector.extract_strided_slice %103 {offsets = [0, 0, 0], sizes = [4, 4, 32], strides = [1, 1, 1]} : vector<4x5x32xf32> to vector<4x4x32xf32>
    %109 = vector.shape_cast %108 : vector<4x4x32xf32> to vector<16x32xf32>
    %110 = vector.extract_strided_slice %107 {offsets = [0, 0, 0], sizes = [4, 4, 32], strides = [1, 1, 1]} : vector<4x5x32xf32> to vector<4x4x32xf32>
    %111 = vector.shape_cast %110 : vector<4x4x32xf32> to vector<16x32xf32>
    %112 = vector.extract_strided_slice %103 {offsets = [0, 1, 0], sizes = [4, 4, 32], strides = [1, 1, 1]} : vector<4x5x32xf32> to vector<4x4x32xf32>
    %113 = vector.shape_cast %112 : vector<4x4x32xf32> to vector<16x32xf32>
    %114 = vector.extract_strided_slice %97 {offsets = [1, 0, 0], sizes = [8, 5, 32], strides = [1, 1, 1]} : vector<10x5x32xf32> to vector<8x5x32xf32>
    %115 = vector.shape_cast %114 : vector<8x5x32xf32> to vector<4x2x5x32xf32>
    %116 = vector.extract_strided_slice %115 {offsets = [0, 0, 0, 0], sizes = [4, 1, 5, 32], strides = [1, 1, 1, 1]} : vector<4x2x5x32xf32> to vector<4x1x5x32xf32>
    %117 = vector.shape_cast %116 : vector<4x1x5x32xf32> to vector<4x5x32xf32>
    %118 = vector.extract_strided_slice %99 {offsets = [1, 0, 0], sizes = [8, 5, 32], strides = [1, 1, 1]} : vector<10x5x32xf32> to vector<8x5x32xf32>
    %119 = vector.shape_cast %118 : vector<8x5x32xf32> to vector<4x2x5x32xf32>
    %120 = vector.extract_strided_slice %119 {offsets = [0, 0, 0, 0], sizes = [4, 1, 5, 32], strides = [1, 1, 1, 1]} : vector<4x2x5x32xf32> to vector<4x1x5x32xf32>
    %121 = vector.shape_cast %120 : vector<4x1x5x32xf32> to vector<4x5x32xf32>
    %122 = vector.extract_strided_slice %117 {offsets = [0, 0, 0], sizes = [4, 4, 32], strides = [1, 1, 1]} : vector<4x5x32xf32> to vector<4x4x32xf32>
    %123 = vector.shape_cast %122 : vector<4x4x32xf32> to vector<16x32xf32>
    %124 = vector.extract_strided_slice %121 {offsets = [0, 0, 0], sizes = [4, 4, 32], strides = [1, 1, 1]} : vector<4x5x32xf32> to vector<4x4x32xf32>
    %125 = vector.shape_cast %124 : vector<4x4x32xf32> to vector<16x32xf32>
    %126 = vector.extract_strided_slice %117 {offsets = [0, 1, 0], sizes = [4, 4, 32], strides = [1, 1, 1]} : vector<4x5x32xf32> to vector<4x4x32xf32>
    %127 = vector.shape_cast %126 : vector<4x4x32xf32> to vector<16x32xf32>
    %128 = vector.extract_strided_slice %97 {offsets = [2, 0, 0], sizes = [8, 5, 32], strides = [1, 1, 1]} : vector<10x5x32xf32> to vector<8x5x32xf32>
    %129 = vector.shape_cast %128 : vector<8x5x32xf32> to vector<4x2x5x32xf32>
    %130 = vector.extract_strided_slice %129 {offsets = [0, 0, 0, 0], sizes = [4, 1, 5, 32], strides = [1, 1, 1, 1]} : vector<4x2x5x32xf32> to vector<4x1x5x32xf32>
    %131 = vector.shape_cast %130 : vector<4x1x5x32xf32> to vector<4x5x32xf32>
    %132 = vector.extract_strided_slice %99 {offsets = [2, 0, 0], sizes = [8, 5, 32], strides = [1, 1, 1]} : vector<10x5x32xf32> to vector<8x5x32xf32>
    %133 = vector.shape_cast %132 : vector<8x5x32xf32> to vector<4x2x5x32xf32>
    %134 = vector.extract_strided_slice %133 {offsets = [0, 0, 0, 0], sizes = [4, 1, 5, 32], strides = [1, 1, 1, 1]} : vector<4x2x5x32xf32> to vector<4x1x5x32xf32>
    %135 = vector.shape_cast %134 : vector<4x1x5x32xf32> to vector<4x5x32xf32>
    %136 = vector.extract_strided_slice %131 {offsets = [0, 0, 0], sizes = [4, 4, 32], strides = [1, 1, 1]} : vector<4x5x32xf32> to vector<4x4x32xf32>
    %137 = vector.shape_cast %136 : vector<4x4x32xf32> to vector<16x32xf32>
    %138 = vector.extract_strided_slice %135 {offsets = [0, 0, 0], sizes = [4, 4, 32], strides = [1, 1, 1]} : vector<4x5x32xf32> to vector<4x4x32xf32>
    %139 = vector.shape_cast %138 : vector<4x4x32xf32> to vector<16x32xf32>
    %140 = vector.extract_strided_slice %131 {offsets = [0, 1, 0], sizes = [4, 4, 32], strides = [1, 1, 1]} : vector<4x5x32xf32> to vector<4x4x32xf32>
    %141 = vector.shape_cast %140 : vector<4x4x32xf32> to vector<16x32xf32>
    %142 = tpu.concatenate %109, %111, %113, %123, %125, %127, %137, %139, %141 in 1 : vector<16x32xf32>, vector<16x32xf32>, vector<16x32xf32>, vector<16x32xf32>, vector<16x32xf32>, vector<16x32xf32>, vector<16x32xf32>, vector<16x32xf32>, vector<16x32xf32> -> vector<16x288xf32>
    %c0_37 = arith.constant 0 : index
    %c0_38 = arith.constant 0 : index
    %143 = vector.load %arg6[%c0_37, %c0_38] : memref<288x32xf32, #tpu.memory_space<vmem>>, vector<288x32xf32>
    %cst_39 = arith.constant dense<0.000000e+00> : vector<16x32xf32>
    %144 = tpu.matmul %142, %143, %cst_39 {dimension_numbers = #tpu.dot_dimension_numbers<[1], [0], [0], [1], [0, 0, 1, 1], [], []>} : vector<16x288xf32>, vector<288x32xf32>, vector<16x32xf32> -> vector<16x32xf32>
    %c0_40 = arith.constant 0 : index
    %c0_41 = arith.constant 0 : index
    %145 = vector.load %arg7[%c0_40, %c0_41] : memref<1x32xf32, #tpu.memory_space<vmem>>, vector<1x32xf32>
    %146 = vector.broadcast %145 : vector<1x32xf32> to vector<16x32xf32>
    %147 = arith.addf %144, %146 : vector<16x32xf32>
    %cst_42 = arith.constant 0.000000e+00 : f32
    %148 = vector.broadcast %cst_42 : f32 to vector<16x32xf32>
    %149 = arith.maximumf %147, %148 : vector<16x32xf32>
    %150 = vector.shape_cast %149 : vector<16x32xf32> to vector<4x4x32xf32>
    %c1_43 = arith.constant 1 : index
    %c1_44 = arith.constant 1 : index
    %c0_45 = arith.constant 0 : index
    %151 = vector.load %arg15[%c1_43, %c1_44, %c0_45] : memref<6x6x32xf32, #tpu.memory_space<vmem>>, vector<4x4x32xf32>
    tpu.vector_store %arg15[%c1_43, %c1_44, %c0_45], %150 {strides = array<i32>} : memref<6x6x32xf32, #tpu.memory_space<vmem>>, vector<4x4x32xf32>,
    %c0_46 = arith.constant 0 : index
    %c0_47 = arith.constant 0 : index
    %c0_48 = arith.constant 0 : index
    %152 = vector.load %arg15[%c0_46, %c0_47, %c0_48] : memref<6x6x32xf32, #tpu.memory_space<vmem>>, vector<6x6x32xf32>
    %153 = vector.shape_cast %152 : vector<6x6x32xf32> to vector<6x3x2x32xf32>
    %154 = vector.extract_strided_slice %153 {offsets = [0, 0, 0, 0], sizes = [6, 3, 1, 32], strides = [1, 1, 1, 1]} : vector<6x3x2x32xf32> to vector<6x3x1x32xf32>
    %155 = vector.shape_cast %154 : vector<6x3x1x32xf32> to vector<6x3x32xf32>
    %156 = vector.extract_strided_slice %153 {offsets = [0, 0, 1, 0], sizes = [6, 3, 1, 32], strides = [1, 1, 1, 1]} : vector<6x3x2x32xf32> to vector<6x3x1x32xf32>
    %157 = vector.shape_cast %156 : vector<6x3x1x32xf32> to vector<6x3x32xf32>
    %158 = vector.extract_strided_slice %155 {offsets = [0, 0, 0], sizes = [4, 3, 32], strides = [1, 1, 1]} : vector<6x3x32xf32> to vector<4x3x32xf32>
    %159 = vector.shape_cast %158 : vector<4x3x32xf32> to vector<2x2x3x32xf32>
    %160 = vector.extract_strided_slice %159 {offsets = [0, 0, 0, 0], sizes = [2, 1, 3, 32], strides = [1, 1, 1, 1]} : vector<2x2x3x32xf32> to vector<2x1x3x32xf32>
    %161 = vector.shape_cast %160 : vector<2x1x3x32xf32> to vector<2x3x32xf32>
    %162 = vector.extract_strided_slice %157 {offsets = [0, 0, 0], sizes = [4, 3, 32], strides = [1, 1, 1]} : vector<6x3x32xf32> to vector<4x3x32xf32>
    %163 = vector.shape_cast %162 : vector<4x3x32xf32> to vector<2x2x3x32xf32>
    %164 = vector.extract_strided_slice %163 {offsets = [0, 0, 0, 0], sizes = [2, 1, 3, 32], strides = [1, 1, 1, 1]} : vector<2x2x3x32xf32> to vector<2x1x3x32xf32>
    %165 = vector.shape_cast %164 : vector<2x1x3x32xf32> to vector<2x3x32xf32>
    %166 = vector.extract_strided_slice %161 {offsets = [0, 0, 0], sizes = [2, 2, 32], strides = [1, 1, 1]} : vector<2x3x32xf32> to vector<2x2x32xf32>
    %167 = vector.shape_cast %166 : vector<2x2x32xf32> to vector<4x32xf32>
    %168 = vector.extract_strided_slice %165 {offsets = [0, 0, 0], sizes = [2, 2, 32], strides = [1, 1, 1]} : vector<2x3x32xf32> to vector<2x2x32xf32>
    %169 = vector.shape_cast %168 : vector<2x2x32xf32> to vector<4x32xf32>
    %170 = vector.extract_strided_slice %161 {offsets = [0, 1, 0], sizes = [2, 2, 32], strides = [1, 1, 1]} : vector<2x3x32xf32> to vector<2x2x32xf32>
    %171 = vector.shape_cast %170 : vector<2x2x32xf32> to vector<4x32xf32>
    %172 = vector.extract_strided_slice %155 {offsets = [1, 0, 0], sizes = [4, 3, 32], strides = [1, 1, 1]} : vector<6x3x32xf32> to vector<4x3x32xf32>
    %173 = vector.shape_cast %172 : vector<4x3x32xf32> to vector<2x2x3x32xf32>
    %174 = vector.extract_strided_slice %173 {offsets = [0, 0, 0, 0], sizes = [2, 1, 3, 32], strides = [1, 1, 1, 1]} : vector<2x2x3x32xf32> to vector<2x1x3x32xf32>
    %175 = vector.shape_cast %174 : vector<2x1x3x32xf32> to vector<2x3x32xf32>
    %176 = vector.extract_strided_slice %157 {offsets = [1, 0, 0], sizes = [4, 3, 32], strides = [1, 1, 1]} : vector<6x3x32xf32> to vector<4x3x32xf32>
    %177 = vector.shape_cast %176 : vector<4x3x32xf32> to vector<2x2x3x32xf32>
    %178 = vector.extract_strided_slice %177 {offsets = [0, 0, 0, 0], sizes = [2, 1, 3, 32], strides = [1, 1, 1, 1]} : vector<2x2x3x32xf32> to vector<2x1x3x32xf32>
    %179 = vector.shape_cast %178 : vector<2x1x3x32xf32> to vector<2x3x32xf32>
    %180 = vector.extract_strided_slice %175 {offsets = [0, 0, 0], sizes = [2, 2, 32], strides = [1, 1, 1]} : vector<2x3x32xf32> to vector<2x2x32xf32>
    %181 = vector.shape_cast %180 : vector<2x2x32xf32> to vector<4x32xf32>
    %182 = vector.extract_strided_slice %179 {offsets = [0, 0, 0], sizes = [2, 2, 32], strides = [1, 1, 1]} : vector<2x3x32xf32> to vector<2x2x32xf32>
    %183 = vector.shape_cast %182 : vector<2x2x32xf32> to vector<4x32xf32>
    %184 = vector.extract_strided_slice %175 {offsets = [0, 1, 0], sizes = [2, 2, 32], strides = [1, 1, 1]} : vector<2x3x32xf32> to vector<2x2x32xf32>
    %185 = vector.shape_cast %184 : vector<2x2x32xf32> to vector<4x32xf32>
    %186 = vector.extract_strided_slice %155 {offsets = [2, 0, 0], sizes = [4, 3, 32], strides = [1, 1, 1]} : vector<6x3x32xf32> to vector<4x3x32xf32>
    %187 = vector.shape_cast %186 : vector<4x3x32xf32> to vector<2x2x3x32xf32>
    %188 = vector.extract_strided_slice %187 {offsets = [0, 0, 0, 0], sizes = [2, 1, 3, 32], strides = [1, 1, 1, 1]} : vector<2x2x3x32xf32> to vector<2x1x3x32xf32>
    %189 = vector.shape_cast %188 : vector<2x1x3x32xf32> to vector<2x3x32xf32>
    %190 = vector.extract_strided_slice %157 {offsets = [2, 0, 0], sizes = [4, 3, 32], strides = [1, 1, 1]} : vector<6x3x32xf32> to vector<4x3x32xf32>
    %191 = vector.shape_cast %190 : vector<4x3x32xf32> to vector<2x2x3x32xf32>
    %192 = vector.extract_strided_slice %191 {offsets = [0, 0, 0, 0], sizes = [2, 1, 3, 32], strides = [1, 1, 1, 1]} : vector<2x2x3x32xf32> to vector<2x1x3x32xf32>
    %193 = vector.shape_cast %192 : vector<2x1x3x32xf32> to vector<2x3x32xf32>
    %194 = vector.extract_strided_slice %189 {offsets = [0, 0, 0], sizes = [2, 2, 32], strides = [1, 1, 1]} : vector<2x3x32xf32> to vector<2x2x32xf32>
    %195 = vector.shape_cast %194 : vector<2x2x32xf32> to vector<4x32xf32>
    %196 = vector.extract_strided_slice %193 {offsets = [0, 0, 0], sizes = [2, 2, 32], strides = [1, 1, 1]} : vector<2x3x32xf32> to vector<2x2x32xf32>
    %197 = vector.shape_cast %196 : vector<2x2x32xf32> to vector<4x32xf32>
    %198 = vector.extract_strided_slice %189 {offsets = [0, 1, 0], sizes = [2, 2, 32], strides = [1, 1, 1]} : vector<2x3x32xf32> to vector<2x2x32xf32>
    %199 = vector.shape_cast %198 : vector<2x2x32xf32> to vector<4x32xf32>
    %200 = tpu.concatenate %167, %169, %171, %181, %183, %185, %195, %197, %199 in 1 : vector<4x32xf32>, vector<4x32xf32>, vector<4x32xf32>, vector<4x32xf32>, vector<4x32xf32>, vector<4x32xf32>, vector<4x32xf32>, vector<4x32xf32>, vector<4x32xf32> -> vector<4x288xf32>
    %c0_49 = arith.constant 0 : index
    %c0_50 = arith.constant 0 : index
    %201 = vector.load %arg8[%c0_49, %c0_50] : memref<288x32xf32, #tpu.memory_space<vmem>>, vector<288x32xf32>
    %cst_51 = arith.constant dense<0.000000e+00> : vector<4x32xf32>
    %202 = tpu.matmul %200, %201, %cst_51 {dimension_numbers = #tpu.dot_dimension_numbers<[1], [0], [0], [1], [0, 0, 1, 1], [], []>} : vector<4x288xf32>, vector<288x32xf32>, vector<4x32xf32> -> vector<4x32xf32>
    %c0_52 = arith.constant 0 : index
    %c0_53 = arith.constant 0 : index
    %203 = vector.load %arg9[%c0_52, %c0_53] : memref<1x32xf32, #tpu.memory_space<vmem>>, vector<1x32xf32>
    %204 = vector.broadcast %203 : vector<1x32xf32> to vector<4x32xf32>
    %205 = arith.addf %202, %204 : vector<4x32xf32>
    %cst_54 = arith.constant 0.000000e+00 : f32
    %206 = vector.broadcast %cst_54 : f32 to vector<4x32xf32>
    %207 = arith.maximumf %205, %206 : vector<4x32xf32>
    %c0_55 = arith.constant 0 : index
    %c0_56 = arith.constant 0 : index
    %208 = vector.load %arg10[%c0_55, %c0_56] : memref<32x2xf32, #tpu.memory_space<vmem>>, vector<32x2xf32>
    %cst_57 = arith.constant dense<0.000000e+00> : vector<4x2xf32>
    %209 = tpu.matmul %207, %208, %cst_57 {dimension_numbers = #tpu.dot_dimension_numbers<[1], [0], [0], [1], [0, 0, 1, 1], [], []>} : vector<4x32xf32>, vector<32x2xf32>, vector<4x2xf32> -> vector<4x2xf32>
    %c0_58 = arith.constant 0 : index
    %c0_59 = arith.constant 0 : index
    %210 = vector.load %arg11[%c0_58, %c0_59] : memref<1x2xf32, #tpu.memory_space<vmem>>, vector<1x2xf32>
    %211 = vector.broadcast %210 : vector<1x2xf32> to vector<4x2xf32>
    %212 = arith.addf %209, %211 : vector<4x2xf32>
    %213 = vector.shape_cast %212 : vector<4x2xf32> to vector<2x2x2xf32>
    %c0_60 = arith.constant 0 : index
    %c0_61 = arith.constant 0 : index
    %c0_62 = arith.constant 0 : index
    %c0_63 = arith.constant 0 : index
    %214 = vector.load %arg12[%c0_60, %c0_61, %c0_62, %c0_63] : memref<1x2x2x2xf32, #tpu.memory_space<vmem>>, vector<1x2x2x2xf32>
    %215 = vector.shape_cast %214 : vector<1x2x2x2xf32> to vector<2x2x2xf32>
    %216 = vector.shape_cast %213 : vector<2x2x2xf32> to vector<1x2x2x2xf32>
    tpu.vector_store %arg12[%c0_60, %c0_61, %c0_62, %c0_63], %216 {strides = array<i32>} : memref<1x2x2x2xf32, #tpu.memory_space<vmem>>, vector<1x2x2x2xf32>,
    return
  }
  func.func @transform_0(%arg0: i32) -> (i32, i32, i32, i32) {
    %c0_i32 = arith.constant 0 : i32
    %c0_i32_0 = arith.constant 0 : i32
    %c0_i32_1 = arith.constant 0 : i32
    %c0_i32_2 = arith.constant 0 : i32
    return %arg0, %c0_i32, %c0_i32_0, %c0_i32_1 : i32, i32, i32, i32
  }
  func.func @transform_1(%arg0: i32) -> (i32, i32) {
    %c0_i32 = arith.constant 0 : i32
    %c0_i32_0 = arith.constant 0 : i32
    %c0_i32_1 = arith.constant 0 : i32
    return %c0_i32, %c0_i32_0 : i32, i32
  }
  func.func @transform_2(%arg0: i32) -> (i32, i32) {
    %c0_i32 = arith.constant 0 : i32
    %c0_i32_0 = arith.constant 0 : i32
    %c0_i32_1 = arith.constant 0 : i32
    return %c0_i32, %c0_i32_0 : i32, i32
  }
  func.func @transform_3(%arg0: i32) -> (i32, i32) {
    %c0_i32 = arith.constant 0 : i32
    %c0_i32_0 = arith.constant 0 : i32
    %c0_i32_1 = arith.constant 0 : i32
    return %c0_i32, %c0_i32_0 : i32, i32
  }
  func.func @transform_4(%arg0: i32) -> (i32, i32) {
    %c0_i32 = arith.constant 0 : i32
    %c0_i32_0 = arith.constant 0 : i32
    %c0_i32_1 = arith.constant 0 : i32
    return %c0_i32, %c0_i32_0 : i32, i32
  }
  func.func @transform_5(%arg0: i32) -> (i32, i32) {
    %c0_i32 = arith.constant 0 : i32
    %c0_i32_0 = arith.constant 0 : i32
    %c0_i32_1 = arith.constant 0 : i32
    return %c0_i32, %c0_i32_0 : i32, i32
  }
  func.func @transform_6(%arg0: i32) -> (i32, i32) {
    %c0_i32 = arith.constant 0 : i32
    %c0_i32_0 = arith.constant 0 : i32
    %c0_i32_1 = arith.constant 0 : i32
    return %c0_i32, %c0_i32_0 : i32, i32
  }
  func.func @transform_7(%arg0: i32) -> (i32, i32) {
    %c0_i32 = arith.constant 0 : i32
    %c0_i32_0 = arith.constant 0 : i32
    %c0_i32_1 = arith.constant 0 : i32
    return %c0_i32, %c0_i32_0 : i32, i32
  }
  func.func @transform_8(%arg0: i32) -> (i32, i32) {
    %c0_i32 = arith.constant 0 : i32
    %c0_i32_0 = arith.constant 0 : i32
    %c0_i32_1 = arith.constant 0 : i32
    return %c0_i32, %c0_i32_0 : i32, i32
  }
  func.func @transform_9(%arg0: i32) -> (i32, i32) {
    %c0_i32 = arith.constant 0 : i32
    %c0_i32_0 = arith.constant 0 : i32
    %c0_i32_1 = arith.constant 0 : i32
    return %c0_i32, %c0_i32_0 : i32, i32
  }
  func.func @transform_10(%arg0: i32) -> (i32, i32) {
    %c0_i32 = arith.constant 0 : i32
    %c0_i32_0 = arith.constant 0 : i32
    %c0_i32_1 = arith.constant 0 : i32
    return %c0_i32, %c0_i32_0 : i32, i32
  }
  func.func @transform_11(%arg0: i32) -> (i32, i32, i32, i32) {
    %c0_i32 = arith.constant 0 : i32
    %c0_i32_0 = arith.constant 0 : i32
    %c0_i32_1 = arith.constant 0 : i32
    %c0_i32_2 = arith.constant 0 : i32
    return %arg0, %c0_i32, %c0_i32_0, %c0_i32_1 : i32, i32, i32, i32
  }
}

</mosaic_0001>

<llo_original>
// kernel: _drn_forward.1
$region0: #{_drn_forward.1}
  #allocation0 [shape = 'u32[]', space=smem, size = 0x4, offset = 0x4, fixed_abs, tag = 'smem constant byte address 0x4 - core index']
  #allocation1 [shape = 'u32[144,128]{1,0:T(1,128)}', space=vmem, size = 0x12000, scoped, tag = 'internal scratch']
  #allocation2 [shape = 'f32[18,18,16]{2,1,0:T(8,128)}', space=vmem, size = 0x36000, scoped, tag = 'scratch operand']
  #allocation3 [shape = 'f32[10,10,32]{2,1,0:T(8,128)}', space=vmem, size = 0x14000, scoped, tag = 'scratch operand']
  #allocation4 [shape = 'f32[6,6,32]{2,1,0:T(8,128)}', space=vmem, size = 0x6000, scoped, tag = 'scratch operand']
  %s0 = inlined_call_operand.vmem [shape: f32[2,18,18,3], index: 0, kind: input, shape index: {}]
  %s1 = inlined_call_operand.vmem [shape: f32[27,16], index: 1, kind: input, shape index: {}]
  %s2 = inlined_call_operand.vmem [shape: f32[1,16], index: 2, kind: input, shape index: {}]
  %s3 = inlined_call_operand.vmem [shape: f32[144,32], index: 3, kind: input, shape index: {}]
  %s4 = inlined_call_operand.vmem [shape: f32[1,32], index: 4, kind: input, shape index: {}]
  %s5 = inlined_call_operand.vmem [shape: f32[288,32], index: 5, kind: input, shape index: {}]
  %s6 = inlined_call_operand.vmem [shape: f32[1,32], index: 6, kind: input, shape index: {}]
  %s7 = inlined_call_operand.vmem [shape: f32[288,32], index: 7, kind: input, shape index: {}]
  %s8 = inlined_call_operand.vmem [shape: f32[1,32], index: 8, kind: input, shape index: {}]
  %s9 = inlined_call_operand.vmem [shape: f32[32,2], index: 9, kind: input, shape index: {}]
  %s10 = inlined_call_operand.vmem [shape: f32[1,2], index: 10, kind: input, shape index: {}]
  %s11 = inlined_call_operand.vmem [shape: f32[2,2,2,2], index: 11, kind: output, shape index: {}]
  %s12 = sld [smem:[#allocation0]]
  $region77: #{_drn_forward.1} parent=0
    _
  %s14 = ssub.s32 1, %s12
  %s15 = scalar_select 0, %s14, %s12
  loop: start=0, step=1, limit=4
  $region2: #{_drn_forward.1} parent=0 // loop_pre_header
    _
  $region3: #{_drn_forward.1} parent=0 // loop_header
    %s17 = sphi 0, %s21
    %p18 = scmp.ge.s32.totalorder %s17, 4
    %s27 = sphi 0, %s29
    %s30 = sphi 0, %s27
    %s31 = sphi 0, %s30
    %s47 = sphi 0, %s31
    %s51 = sphi 0, %s51
    %s53 = sphi 0, %s51
    %s54 = sphi 0, %s53
    %s68 = sphi 0, %s54
    %s72 = sphi 0, %s72
    %s74 = sphi 0, %s72
    %s75 = sphi 0, %s74
    %s89 = sphi 0, %s75
    %s93 = sphi 0, %s93
    %s95 = sphi 0, %s93
    %s96 = sphi 0, %s95
    %s110 = sphi 0, %s96
    %s114 = sphi 0, %s114
    %s116 = sphi 0, %s114
    %s117 = sphi 0, %s116
    %s131 = sphi 0, %s117
    %s135 = sphi 0, %s135
    %s137 = sphi 0, %s135
    %s138 = sphi 0, %s137
    %s152 = sphi 0, %s138
    %s156 = sphi 0, %s156
    %s158 = sphi 0, %s156
    %s159 = sphi 0, %s158
    %s173 = sphi 0, %s159
    %s177 = sphi 0, %s177
    %s179 = sphi 0, %s177
    %s180 = sphi 0, %s179
    %s194 = sphi 0, %s180
    %s198 = sphi 0, %s198
    %s200 = sphi 0, %s198
    %s201 = sphi 0, %s200
    %s215 = sphi 0, %s201
    %s219 = sphi 0, %s219
    %s221 = sphi 0, %s219
    %s222 = sphi 0, %s221
    %s236 = sphi 0, %s222
    %s240 = sphi 0, %s240
    %s242 = sphi 0, %s240
    %s243 = sphi 0, %s242
    %s257 = sphi 0, %s243
    %s263 = sphi 0, %s265
    %s266 = sphi 0, %s263
    %s267 = sphi 0, %s266
    %s283 = sphi 0, %s267
  $region4: #{_drn_forward.1} parent=0 // loop_header_branch
    %20 = sbr.rel (%p18) target = $region8
  $region5: #{_drn_forward.1} parent=0 // loop_body
    %s22 = ssub.s32 %s17, 1
    %s23 = ssub.s32 %s17, 2
    %s24 = sadd.s32 %s17, 1
    %s25 = ssub.s32 %s17, %s24
    %p26 = scmp.eq.s32.totalorder %s25, 0
    %s28 = sadd.s32 %s27, 1
    %s29 = scalar_select %p26, %s27, %s28
    %p32 = pneg %p26
    %p33 = scmp.eq.s32.totalorder %s17, 1
    %p34 = por %p32, %p33
    %p35 = scmp.ne.s32.totalorder %s27, %s30
    %p36 = scmp.eq.s32.totalorder %s17, 0
    %p37 = por %p35, %p36
    %p38 = scmp.ne.s32.totalorder %s27, %s30
    %p39 = scmp.eq.s32.totalorder %s22, 1
    %p40 = por %p38, %p39
    %p41 = scmp.ne.s32.totalorder %s30, %s31
    %p42 = scmp.eq.s32.totalorder %s22, 0
    %p43 = por %p41, %p42
    %p44 = scmp.ne.s32.totalorder %s30, %s31
    %p45 = scmp.eq.s32.totalorder %s23, 1
    %p46 = por %p44, %p45
    %p48 = scmp.ne.s32.totalorder %s31, %s47
    %p49 = scmp.eq.s32.totalorder %s23, 0
    %p50 = por %p48, %p49
    %s52 = sadd.s32 %s51, 1
    %p55 = scmp.eq.s32.totalorder %s17, 1
    %p56 = scmp.ne.s32.totalorder %s51, %s53
    %p57 = scmp.eq.s32.totalorder %s17, 0
    %p58 = por %p56, %p57
    %p59 = scmp.ne.s32.totalorder %s51, %s53
    %p60 = scmp.eq.s32.totalorder %s22, 1
    %p61 = por %p59, %p60
    %p62 = scmp.ne.s32.totalorder %s53, %s54
    %p63 = scmp.eq.s32.totalorder %s22, 0
    %p64 = por %p62, %p63
    %p65 = scmp.ne.s32.totalorder %s53, %s54
    %p66 = scmp.eq.s32.totalorder %s23, 1
    %p67 = por %p65, %p66
    %p69 = scmp.ne.s32.totalorder %s54, %s68
    %p70 = scmp.eq.s32.totalorder %s23, 0
    %p71 = por %p69, %p70
    %s73 = sadd.s32 %s72, 1
    %p76 = scmp.eq.s32.totalorder %s17, 1
    %p77 = scmp.ne.s32.totalorder %s72, %s74
    %p78 = scmp.eq.s32.totalorder %s17, 0
    %p79 = por %p77, %p78
    %p80 = scmp.ne.s32.totalorder %s72, %s74
    %p81 = scmp.eq.s32.totalorder %s22, 1
    %p82 = por %p80, %p81
    %p83 = scmp.ne.s32.totalorder %s74, %s75
    %p84 = scmp.eq.s32.totalorder %s22, 0
    %p85 = por %p83, %p84
    %p86 = scmp.ne.s32.totalorder %s74, %s75
    %p87 = scmp.eq.s32.totalorder %s23, 1
    %p88 = por %p86, %p87
    %p90 = scmp.ne.s32.totalorder %s75, %s89
    %p91 = scmp.eq.s32.totalorder %s23, 0
    %p92 = por %p90, %p91
    %s94 = sadd.s32 %s93, 1
    %p97 = scmp.eq.s32.totalorder %s17, 1
    %p98 = scmp.ne.s32.totalorder %s93, %s95
    %p99 = scmp.eq.s32.totalorder %s17, 0
    %p100 = por %p98, %p99
    %p101 = scmp.ne.s32.totalorder %s93, %s95
    %p102 = scmp.eq.s32.totalorder %s22, 1
    %p103 = por %p101, %p102
    %p104 = scmp.ne.s32.totalorder %s95, %s96
    %p105 = scmp.eq.s32.totalorder %s22, 0
    %p106 = por %p104, %p105
    %p107 = scmp.ne.s32.totalorder %s95, %s96
    %p108 = scmp.eq.s32.totalorder %s23, 1
    %p109 = por %p107, %p108
    %p111 = scmp.ne.s32.totalorder %s96, %s110
    %p112 = scmp.eq.s32.totalorder %s23, 0
    %p113 = por %p111, %p112
    %s115 = sadd.s32 %s114, 1
    %p118 = scmp.eq.s32.totalorder %s17, 1
    %p119 = scmp.ne.s32.totalorder %s114, %s116
    %p120 = scmp.eq.s32.totalorder %s17, 0
    %p121 = por %p119, %p120
    %p122 = scmp.ne.s32.totalorder %s114, %s116
    %p123 = scmp.eq.s32.totalorder %s22, 1
    %p124 = por %p122, %p123
    %p125 = scmp.ne.s32.totalorder %s116, %s117
    %p126 = scmp.eq.s32.totalorder %s22, 0
    %p127 = por %p125, %p126
    %p128 = scmp.ne.s32.totalorder %s116, %s117
    %p129 = scmp.eq.s32.totalorder %s23, 1
    %p130 = por %p128, %p129
    %p132 = scmp.ne.s32.totalorder %s117, %s131
    %p133 = scmp.eq.s32.totalorder %s23, 0
    %p134 = por %p132, %p133
    %s136 = sadd.s32 %s135, 1
    %p139 = scmp.eq.s32.totalorder %s17, 1
    %p140 = scmp.ne.s32.totalorder %s135, %s137
    %p141 = scmp.eq.s32.totalorder %s17, 0
    %p142 = por %p140, %p141
    %p143 = scmp.ne.s32.totalorder %s135, %s137
    %p144 = scmp.eq.s32.totalorder %s22, 1
    %p145 = por %p143, %p144
    %p146 = scmp.ne.s32.totalorder %s137, %s138
    %p147 = scmp.eq.s32.totalorder %s22, 0
    %p148 = por %p146, %p147
    %p149 = scmp.ne.s32.totalorder %s137, %s138
    %p150 = scmp.eq.s32.totalorder %s23, 1
    %p151 = por %p149, %p150
    %p153 = scmp.ne.s32.totalorder %s138, %s152
    %p154 = scmp.eq.s32.totalorder %s23, 0
    %p155 = por %p153, %p154
    %s157 = sadd.s32 %s156, 1
    %p160 = scmp.eq.s32.totalorder %s17, 1
    %p161 = scmp.ne.s32.totalorder %s156, %s158
    %p162 = scmp.eq.s32.totalorder %s17, 0
    %p163 = por %p161, %p162
    %p164 = scmp.ne.s32.totalorder %s156, %s158
    %p165 = scmp.eq.s32.totalorder %s22, 1
    %p166 = por %p164, %p165
    %p167 = scmp.ne.s32.totalorder %s158, %s159
    %p168 = scmp.eq.s32.totalorder %s22, 0
    %p169 = por %p167, %p168
    %p170 = scmp.ne.s32.totalorder %s158, %s159
    %p171 = scmp.eq.s32.totalorder %s23, 1
    %p172 = por %p170, %p171
    %p174 = scmp.ne.s32.totalorder %s159, %s173
    %p175 = scmp.eq.s32.totalorder %s23, 0
    %p176 = por %p174, %p175
    %s178 = sadd.s32 %s177, 1
    %p181 = scmp.eq.s32.totalorder %s17, 1
    %p182 = scmp.ne.s32.totalorder %s177, %s179
    %p183 = scmp.eq.s32.totalorder %s17, 0
    %p184 = por %p182, %p183
    %p185 = scmp.ne.s32.totalorder %s177, %s179
    %p186 = scmp.eq.s32.totalorder %s22, 1
    %p187 = por %p185, %p186
    %p188 = scmp.ne.s32.totalorder %s179, %s180
    %p189 = scmp.eq.s32.totalorder %s22, 0
    %p190 = por %p188, %p189
    %p191 = scmp.ne.s32.totalorder %s179, %s180
    %p192 = scmp.eq.s32.totalorder %s23, 1
    %p193 = por %p191, %p192
    %p195 = scmp.ne.s32.totalorder %s180, %s194
    %p196 = scmp.eq.s32.totalorder %s23, 0
    %p197 = por %p195, %p196
    %s199 = sadd.s32 %s198, 1
    %p202 = scmp.eq.s32.totalorder %s17, 1
    %p203 = scmp.ne.s32.totalorder %s198, %s200
    %p204 = scmp.eq.s32.totalorder %s17, 0
    %p205 = por %p203, %p204
    %p206 = scmp.ne.s32.totalorder %s198, %s200
    %p207 = scmp.eq.s32.totalorder %s22, 1
    %p208 = por %p206, %p207
    %p209 = scmp.ne.s32.totalorder %s200, %s201
    %p210 = scmp.eq.s32.totalorder %s22, 0
    %p211 = por %p209, %p210
    %p212 = scmp.ne.s32.totalorder %s200, %s201
    %p213 = scmp.eq.s32.totalorder %s23, 1
    %p214 = por %p212, %p213
    %p216 = scmp.ne.s32.totalorder %s201, %s215
    %p217 = scmp.eq.s32.totalorder %s23, 0
    %p218 = por %p216, %p217
    %s220 = sadd.s32 %s219, 1
    %p223 = scmp.eq.s32.totalorder %s17, 1
    %p224 = scmp.ne.s32.totalorder %s219, %s221
    %p225 = scmp.eq.s32.totalorder %s17, 0
    %p226 = por %p224, %p225
    %p227 = scmp.ne.s32.totalorder %s219, %s221
    %p228 = scmp.eq.s32.totalorder %s22, 1
    %p229 = por %p227, %p228
    %p230 = scmp.ne.s32.totalorder %s221, %s222
    %p231 = scmp.eq.s32.totalorder %s22, 0
    %p232 = por %p230, %p231
    %p233 = scmp.ne.s32.totalorder %s221, %s222
    %p234 = scmp.eq.s32.totalorder %s23, 1
    %p235 = por %p233, %p234
    %p237 = scmp.ne.s32.totalorder %s222, %s236
    %p238 = scmp.eq.s32.totalorder %s23, 0
    %p239 = por %p237, %p238
    %s241 = sadd.s32 %s240, 1
    %p244 = scmp.eq.s32.totalorder %s17, 1
    %p245 = scmp.ne.s32.totalorder %s240, %s242
    %p246 = scmp.eq.s32.totalorder %s17, 0
    %p247 = por %p245, %p246
    %p248 = scmp.ne.s32.totalorder %s240, %s242
    %p249 = scmp.eq.s32.totalorder %s22, 1
    %p250 = por %p248, %p249
    %p251 = scmp.ne.s32.totalorder %s242, %s243
    %p252 = scmp.eq.s32.totalorder %s22, 0
    %p253 = por %p251, %p252
    %p254 = scmp.ne.s32.totalorder %s242, %s243
    %p255 = scmp.eq.s32.totalorder %s23, 1
    %p256 = por %p254, %p255
    %p258 = scmp.ne.s32.totalorder %s243, %s257
    %p259 = scmp.eq.s32.totalorder %s23, 0
    %p260 = por %p258, %p259
    %s261 = ssub.s32 %s17, %s24
    %p262 = scmp.eq.s32.totalorder %s261, 0
    %s264 = sadd.s32 %s263, 1
    %s265 = scalar_select %p262, %s263, %s264
    %p268 = pneg %p262
    %p269 = scmp.eq.s32.totalorder %s17, 1
    %p270 = por %p268, %p269
    %p271 = scmp.ne.s32.totalorder %s263, %s266
    %p272 = scmp.eq.s32.totalorder %s17, 0
    %p273 = por %p271, %p272
    %p274 = scmp.ne.s32.totalorder %s263, %s266
    %p275 = scmp.eq.s32.totalorder %s22, 1
    %p276 = por %p274, %p275
    %p277 = scmp.ne.s32.totalorder %s266, %s267
    %p278 = scmp.eq.s32.totalorder %s22, 0
    %p279 = por %p277, %p278
    %p280 = scmp.ne.s32.totalorder %s266, %s267
    %p281 = scmp.eq.s32.totalorder %s23, 1
    %p282 = por %p280, %p281
    %p284 = scmp.ne.s32.totalorder %s267, %s283
    %p285 = scmp.eq.s32.totalorder %s23, 0
    %p286 = por %p284, %p285
    %p287 = scmp.le.s32.totalorder 1, %s17
    %p288 = scmp.lt.s32.totalorder %s17, 3
    %p289 = pnand %p287, %p288
    %p290 = pneg %p289
    // Predicated region
    $region9: #{_drn_forward.1} parent=5 // pred_check
      _
    $region10: #{_drn_forward.1} parent=5 // pred_check_branch
      %292 = sbr.rel (%p289) target = $region12
    $region11: #{_drn_forward.1} parent=5 // pred_region
      %s293 = ssub.s32 %s17, 1
      // Predicated region
      $region13: #{_drn_forward.1} parent=11 // pred_check
        %p294 = pneg %p64
      $region14: #{_drn_forward.1} parent=11 // pred_check_branch
        %296 = sbr.rel (%p294) target = $region16
      $region15: #{_drn_forward.1} parent=11 // pred_region
        _
      $region16: #{_drn_forward.1} parent=11 // pred_fallthru
        _
      // Predicated region
      $region17: #{_drn_forward.1} parent=11 // pred_check
        %p297 = pneg %p85
      $region18: #{_drn_forward.1} parent=11 // pred_check_branch
        %299 = sbr.rel (%p297) target = $region20
      $region19: #{_drn_forward.1} parent=11 // pred_region
        _
      $region20: #{_drn_forward.1} parent=11 // pred_fallthru
        _
      // Predicated region
      $region21: #{_drn_forward.1} parent=11 // pred_check
        %p300 = pneg %p106
      $region22: #{_drn_forward.1} parent=11 // pred_check_branch
        %302 = sbr.rel (%p300) target = $region24
      $region23: #{_drn_forward.1} parent=11 // pred_region
        _
      $region24: #{_drn_forward.1} parent=11 // pred_fallthru
        _
      // Predicated region
      $region25: #{_drn_forward.1} parent=11 // pred_check
        %p303 = pneg %p127
      $region26: #{_drn_forward.1} parent=11 // pred_check_branch
        %305 = sbr.rel (%p303) target = $region28
      $region27: #{_drn_forward.1} parent=11 // pred_region
        _
      $region28: #{_drn_forward.1} parent=11 // pred_fallthru
        _
      // Predicated region
      $region29: #{_drn_forward.1} parent=11 // pred_check
        %p306 = pneg %p148
      $region30: #{_drn_forward.1} parent=11 // pred_check_branch
        %308 = sbr.rel (%p306) target = $region32
      $region31: #{_drn_forward.1} parent=11 // pred_region
        _
      $region32: #{_drn_forward.1} parent=11 // pred_fallthru
        _
      // Predicated region
      $region33: #{_drn_forward.1} parent=11 // pred_check
        %p309 = pneg %p169
      $region34: #{_drn_forward.1} parent=11 // pred_check_branch
        %311 = sbr.rel (%p309) target = $region36
      $region35: #{_drn_forward.1} parent=11 // pred_region
        _
      $region36: #{_drn_forward.1} parent=11 // pred_fallthru
        _
      // Predicated region
      $region37: #{_drn_forward.1} parent=11 // pred_check
        %p312 = pneg %p190
      $region38: #{_drn_forward.1} parent=11 // pred_check_branch
        %314 = sbr.rel (%p312) target = $region40
      $region39: #{_drn_forward.1} parent=11 // pred_region
        _
      $region40: #{_drn_forward.1} parent=11 // pred_fallthru
        _
      // Predicated region
      $region41: #{_drn_forward.1} parent=11 // pred_check
        %p315 = pneg %p211
      $region42: #{_drn_forward.1} parent=11 // pred_check_branch
        %317 = sbr.rel (%p315) target = $region44
      $region43: #{_drn_forward.1} parent=11 // pred_region
        _
      $region44: #{_drn_forward.1} parent=11 // pred_fallthru
        _
      // Predicated region
      $region45: #{_drn_forward.1} parent=11 // pred_check
        %p318 = pneg %p232
      $region46: #{_drn_forward.1} parent=11 // pred_check_branch
        %320 = sbr.rel (%p318) target = $region48
      $region47: #{_drn_forward.1} parent=11 // pred_region
        _
      $region48: #{_drn_forward.1} parent=11 // pred_fallthru
        _
      // Predicated region
      $region49: #{_drn_forward.1} parent=11 // pred_check
        %p321 = pneg %p253
      $region50: #{_drn_forward.1} parent=11 // pred_check_branch
        %323 = sbr.rel (%p321) target = $region52
      $region51: #{_drn_forward.1} parent=11 // pred_region
        _
      $region52: #{_drn_forward.1} parent=11 // pred_fallthru
        _
    $region12: #{_drn_forward.1} parent=5 // pred_fallthru
      _
    %p324 = scmp.lt.s32.totalorder %s17, 2
    // Predicated region
    $region53: #{_drn_forward.1} parent=5 // pred_check
      %p325 = pneg %p324
    $region54: #{_drn_forward.1} parent=5 // pred_check_branch
      %327 = sbr.rel (%p325) target = $region56
    $region55: #{_drn_forward.1} parent=5 // pred_region
      // Predicated region
      $region57: #{_drn_forward.1} parent=55 // pred_check
        %p328 = pneg %p37
      $region58: #{_drn_forward.1} parent=55 // pred_check_branch
        %330 = sbr.rel (%p328) target = $region60
      $region59: #{_drn_forward.1} parent=55 // pred_region
        %p331 = scmp.lt.s32.totalorder %s17, 1
        %s332 = scalar_select %p331, %s17, 1
        %s333 = smul.addr %s332, 54
        %s334 = smul.addr %s333, 8
        %s335 = scalar_lea.vmem %s0, %s334
      $region60: #{_drn_forward.1} parent=55 // pred_fallthru
        _
    $region56: #{_drn_forward.1} parent=5 // pred_fallthru
      _
    %p336 = scmp.le.s32.totalorder 1, %s17
    %p337 = scmp.lt.s32.totalorder %s17, 3
    %p338 = pnand %p336, %p337
    %p339 = pneg %p338
    // Predicated region
    $region61: #{_drn_forward.1} parent=5 // pred_check
      _
    $region62: #{_drn_forward.1} parent=5 // pred_check_branch
      %341 = sbr.rel (%p338) target = $region64
    $region63: #{_drn_forward.1} parent=5 // pred_region
      %s342 = ssub.s32 %s17, 1
      %p343 = scmp.lt.s32.totalorder %s22, 1
      %s344 = scalar_select %p343, %s22, 1
      %s345 = smul.addr %s344, 54
      %s346 = smul.addr %s345, 8
      %s347 = scalar_lea.vmem %s0, %s346
      %p348 = pneg %p43
      %p349 = pneg %p40
      %p350 = pneg %p64
      %p351 = pneg %p61
      %p352 = pneg %p85
      %p353 = pneg %p82
      %p354 = pneg %p106
      %p355 = pneg %p103
      %p356 = pneg %p127
      %p357 = pneg %p124
      %p358 = pneg %p148
      %p359 = pneg %p145
      %p360 = pneg %p169
      %p361 = pneg %p166
      %p362 = pneg %p190
      %p363 = pneg %p187
      %p364 = pneg %p211
      %p365 = pneg %p208
      %p366 = pneg %p232
      %p367 = pneg %p229
      %p368 = pneg %p253
      %p369 = pneg %p250
      %p370 = pneg %p279
      %p371 = pneg %p276
      %p372 = scmp.lt.s32.totalorder %s22, 1
      %s373 = scalar_select %p372, %s22, 1
      %s374 = smul.addr %s373, 2
      %s375 = smul.addr %s374, 2
      %s376 = scalar_lea.vmem %s11, %s375
      %p377 = scmp.lt.s32.totalorder %s22, 1
      %s378 = scalar_select %p377, %s22, 1
      %s379 = smul.addr %s378, 54
      %s380 = smul.addr %s379, 8
      %s381 = scalar_lea.vmem %s0, %s380
      %p382 = scmp.lt.s32.totalorder %s22, 1
      %s383 = scalar_select %p382, %s22, 1
      %s384 = smul.addr %s383, 2
      %s385 = smul.addr %s384, 2
      %s386 = scalar_lea.vmem %s11, %s385
      %vm387 = vcmask 130048
      %388 = vst.msk [vmem:[#allocation2] sm:$0xff] %vm387, 0.0
      %389 = vst.msk [vmem:[#allocation2 + $0x8] sm:$0xff] %vm387, 0.0
      %vm390 = vcmask 123904
      %391 = vst.msk [vmem:[#allocation2 + $0x10] sm:$0x3] %vm390, 0.0
      %392 = vst.msk [vmem:[#allocation2 + $0x18] sm:$0xff] %vm387, 0.0
      %393 = vst.msk [vmem:[#allocation2 + $0x20] sm:$0xff] %vm387, 0.0
      %394 = vst.msk [vmem:[#allocation2 + $0x28] sm:$0x3] %vm390, 0.0
      %395 = vst.msk [vmem:[#allocation2 + $0x30] sm:$0xff] %vm387, 0.0
      %396 = vst.msk [vmem:[#allocation2 + $0x38] sm:$0xff] %vm387, 0.0
      %397 = vst.msk [vmem:[#allocation2 + $0x40] sm:$0x3] %vm390, 0.0
      %398 = vst.msk [vmem:[#allocation2 + $0x48] sm:$0xff] %vm387, 0.0
      %399 = vst.msk [vmem:[#allocation2 + $0x50] sm:$0xff] %vm387, 0.0
      %400 = vst.msk [vmem:[#allocation2 + $0x58] sm:$0x3] %vm390, 0.0
      %401 = vst.msk [vmem:[#allocation2 + $0x60] sm:$0xff] %vm387, 0.0
      %402 = vst.msk [vmem:[#allocation2 + $0x68] sm:$0xff] %vm387, 0.0
      %403 = vst.msk [vmem:[#allocation2 + $0x70] sm:$0x3] %vm390, 0.0
      %404 = vst.msk [vmem:[#allocation2 + $0x78] sm:$0xff] %vm387, 0.0
      %405 = vst.msk [vmem:[#allocation2 + $0x80] sm:$0xff] %vm387, 0.0
      %406 = vst.msk [vmem:[#allocation2 + $0x88] sm:$0x3] %vm390, 0.0
      %407 = vst.msk [vmem:[#allocation2 + $0x90] sm:$0xff] %vm387, 0.0
      %408 = vst.msk [vmem:[#allocation2 + $0x98] sm:$0xff] %vm387, 0.0
      %409 = vst.msk [vmem:[#allocation2 + $0xa0] sm:$0x3] %vm390, 0.0
      %410 = vst.msk [vmem:[#allocation2 + $0xa8] sm:$0xff] %vm387, 0.0
      %411 = vst.msk [vmem:[#allocation2 + $0xb0] sm:$0xff] %vm387, 0.0
      %412 = vst.msk [vmem:[#allocation2 + $0xb8] sm:$0x3] %vm390, 0.0
      %413 = vst.msk [vmem:[#allocation2 + $0xc0] sm:$0xff] %vm387, 0.0
      %414 = vst.msk [vmem:[#allocation2 + $0xc8] sm:$0xff] %vm387, 0.0
      %415 = vst.msk [vmem:[#allocation2 + $0xd0] sm:$0x3] %vm390, 0.0
      %416 = vst.msk [vmem:[#allocation2 + $0xd8] sm:$0xff] %vm387, 0.0
      %417 = vst.msk [vmem:[#allocation2 + $0xe0] sm:$0xff] %vm387, 0.0
      %418 = vst.msk [vmem:[#allocation2 + $0xe8] sm:$0x3] %vm390, 0.0
      %419 = vst.msk [vmem:[#allocation2 + $0xf0] sm:$0xff] %vm387, 0.0
      %420 = vst.msk [vmem:[#allocation2 + $0xf8] sm:$0xff] %vm387, 0.0
      %421 = vst.msk [vmem:[#allocation2 + $0x100] sm:$0x3] %vm390, 0.0
      %422 = vst.msk [vmem:[#allocation2 + $0x108] sm:$0xff] %vm387, 0.0
      %423 = vst.msk [vmem:[#allocation2 + $0x110] sm:$0xff] %vm387, 0.0
      %424 = vst.msk [vmem:[#allocation2 + $0x118] sm:$0x3] %vm390, 0.0
      %425 = vst.msk [vmem:[#allocation2 + $0x120] sm:$0xff] %vm387, 0.0
      %426 = vst.msk [vmem:[#allocation2 + $0x128] sm:$0xff] %vm387, 0.0
      %427 = vst.msk [vmem:[#allocation2 + $0x130] sm:$0x3] %vm390, 0.0
      %428 = vst.msk [vmem:[#allocation2 + $0x138] sm:$0xff] %vm387, 0.0
      %429 = vst.msk [vmem:[#allocation2 + $0x140] sm:$0xff] %vm387, 0.0
      %430 = vst.msk [vmem:[#allocation2 + $0x148] sm:$0x3] %vm390, 0.0
      %431 = vst.msk [vmem:[#allocation2 + $0x150] sm:$0xff] %vm387, 0.0
      %432 = vst.msk [vmem:[#allocation2 + $0x158] sm:$0xff] %vm387, 0.0
      %433 = vst.msk [vmem:[#allocation2 + $0x160] sm:$0x3] %vm390, 0.0
      %434 = vst.msk [vmem:[#allocation2 + $0x168] sm:$0xff] %vm387, 0.0
      %435 = vst.msk [vmem:[#allocation2 + $0x170] sm:$0xff] %vm387, 0.0
      %436 = vst.msk [vmem:[#allocation2 + $0x178] sm:$0x3] %vm390, 0.0
      %437 = vst.msk [vmem:[#allocation2 + $0x180] sm:$0xff] %vm387, 0.0
      %438 = vst.msk [vmem:[#allocation2 + $0x188] sm:$0xff] %vm387, 0.0
      %439 = vst.msk [vmem:[#allocation2 + $0x190] sm:$0x3] %vm390, 0.0
      %440 = vst.msk [vmem:[#allocation2 + $0x198] sm:$0xff] %vm387, 0.0
      %441 = vst.msk [vmem:[#allocation2 + $0x1a0] sm:$0xff] %vm387, 0.0
      %442 = vst.msk [vmem:[#allocation2 + $0x1a8] sm:$0x3] %vm390, 0.0
      %vm443 = vcmask 261120
      %444 = vst.msk [vmem:[#allocation3] sm:$0xff] %vm443, 0.0
      %vm445 = vcmask 254976
      %446 = vst.msk [vmem:[#allocation3 + $0x8] sm:$0x3] %vm445, 0.0
      %447 = vst.msk [vmem:[#allocation3 + $0x10] sm:$0xff] %vm443, 0.0
      %448 = vst.msk [vmem:[#allocation3 + $0x18] sm:$0x3] %vm445, 0.0
      %449 = vst.msk [vmem:[#allocation3 + $0x20] sm:$0xff] %vm443, 0.0
      %450 = vst.msk [vmem:[#allocation3 + $0x28] sm:$0x3] %vm445, 0.0
      %451 = vst.msk [vmem:[#allocation3 + $0x30] sm:$0xff] %vm443, 0.0
      %452 = vst.msk [vmem:[#allocation3 + $0x38] sm:$0x3] %vm445, 0.0
      %453 = vst.msk [vmem:[#allocation3 + $0x40] sm:$0xff] %vm443, 0.0
      %454 = vst.msk [vmem:[#allocation3 + $0x48] sm:$0x3] %vm445, 0.0
      %455 = vst.msk [vmem:[#allocation3 + $0x50] sm:$0xff] %vm443, 0.0
      %456 = vst.msk [vmem:[#allocation3 + $0x58] sm:$0x3] %vm445, 0.0
      %457 = vst.msk [vmem:[#allocation3 + $0x60] sm:$0xff] %vm443, 0.0
      %458 = vst.msk [vmem:[#allocation3 + $0x68] sm:$0x3] %vm445, 0.0
      %459 = vst.msk [vmem:[#allocation3 + $0x70] sm:$0xff] %vm443, 0.0
      %460 = vst.msk [vmem:[#allocation3 + $0x78] sm:$0x3] %vm445, 0.0
      %461 = vst.msk [vmem:[#allocation3 + $0x80] sm:$0xff] %vm443, 0.0
      %462 = vst.msk [vmem:[#allocation3 + $0x88] sm:$0x3] %vm445, 0.0
      %463 = vst.msk [vmem:[#allocation3 + $0x90] sm:$0xff] %vm443, 0.0
      %464 = vst.msk [vmem:[#allocation3 + $0x98] sm:$0x3] %vm445, 0.0
      %vm465 = vcmask 259072
      %466 = vst.msk [vmem:[#allocation4] sm:$0x3f] %vm465, 0.0
      %467 = vst.msk [vmem:[#allocation4 + $0x8] sm:$0x3f] %vm465, 0.0
      %468 = vst.msk [vmem:[#allocation4 + $0x10] sm:$0x3f] %vm465, 0.0
      %469 = vst.msk [vmem:[#allocation4 + $0x18] sm:$0x3f] %vm465, 0.0
      %470 = vst.msk [vmem:[#allocation4 + $0x20] sm:$0x3f] %vm465, 0.0
      %471 = vst.msk [vmem:[#allocation4 + $0x28] sm:$0x3f] %vm465, 0.0
      %v472 = vld [vmem:[%s381] sm:$0xff]
      %v473 = vld [vmem:[%s381 + $0x8] sm:$0xff]
      %v474 = vld [vmem:[%s381 + $0x10] sm:$0x3]
      %v475 = vld [vmem:[%s381 + $0x18] sm:$0xff]
      %v476 = vld [vmem:[%s381 + $0x20] sm:$0xff]
      %v477 = vld [vmem:[%s381 + $0x28] sm:$0x3]
      %v478 = vld [vmem:[%s381 + $0x30] sm:$0xff]
      %v479 = vld [vmem:[%s381 + $0x38] sm:$0xff]
      %v480 = vld [vmem:[%s381 + $0x40] sm:$0x3]
      %v481 = vld [vmem:[%s381 + $0x48] sm:$0xff]
      %v482 = vld [vmem:[%s381 + $0x50] sm:$0xff]
      %v483 = vld [vmem:[%s381 + $0x58] sm:$0x3]
      %v484 = vld [vmem:[%s381 + $0x60] sm:$0xff]
      %v485 = vld [vmem:[%s381 + $0x68] sm:$0xff]
      %v486 = vld [vmem:[%s381 + $0x70] sm:$0x3]
      %v487 = vld [vmem:[%s381 + $0x78] sm:$0xff]
      %v488 = vld [vmem:[%s381 + $0x80] sm:$0xff]
      %v489 = vld [vmem:[%s381 + $0x88] sm:$0x3]
      %v490 = vld [vmem:[%s381 + $0x90] sm:$0xff]
      %v491 = vld [vmem:[%s381 + $0x98] sm:$0xff]
      %v492 = vld [vmem:[%s381 + $0xa0] sm:$0x3]
      %v493 = vld [vmem:[%s381 + $0xa8] sm:$0xff]
      %v494 = vld [vmem:[%s381 + $0xb0] sm:$0xff]
      %v495 = vld [vmem:[%s381 + $0xb8] sm:$0x3]
      %v496 = vld [vmem:[%s381 + $0xc0] sm:$0xff]
      %v497 = vld [vmem:[%s381 + $0xc8] sm:$0xff]
      %v498 = vld [vmem:[%s381 + $0xd0] sm:$0x3]
      %v499 = vld [vmem:[%s381 + $0xd8] sm:$0xff]
      %v500 = vld [vmem:[%s381 + $0xe0] sm:$0xff]
      %v501 = vld [vmem:[%s381 + $0xe8] sm:$0x3]
      %v502 = vld [vmem:[%s381 + $0xf0] sm:$0xff]
      %v503 = vld [vmem:[%s381 + $0xf8] sm:$0xff]
      %v504 = vld [vmem:[%s381 + $0x100] sm:$0x3]
      %v505 = vld [vmem:[%s381 + $0x108] sm:$0xff]
      %v506 = vld [vmem:[%s381 + $0x110] sm:$0xff]
      %v507 = vld [vmem:[%s381 + $0x118] sm:$0x3]
      %v508 = vld [vmem:[%s381 + $0x120] sm:$0xff]
      %v509 = vld [vmem:[%s381 + $0x128] sm:$0xff]
      %v510 = vld [vmem:[%s381 + $0x130] sm:$0x3]
      %v511 = vld [vmem:[%s381 + $0x138] sm:$0xff]
      %v512 = vld [vmem:[%s381 + $0x140] sm:$0xff]
      %v513 = vld [vmem:[%s381 + $0x148] sm:$0x3]
      %v514 = vld [vmem:[%s381 + $0x150] sm:$0xff]
      %v515 = vld [vmem:[%s381 + $0x158] sm:$0xff]
      %v516 = vld [vmem:[%s381 + $0x160] sm:$0x3]
      %v517 = vld [vmem:[%s381 + $0x168] sm:$0xff]
      %v518 = vld [vmem:[%s381 + $0x170] sm:$0xff]
      %v519 = vld [vmem:[%s381 + $0x178] sm:$0x3]
      %v520 = vld [vmem:[%s381 + $0x180] sm:$0xff]
      %v521 = vld [vmem:[%s381 + $0x188] sm:$0xff]
      %v522 = vld [vmem:[%s381 + $0x190] sm:$0x3]
      %v523 = vld [vmem:[%s381 + $0x198] sm:$0xff]
      %v524 = vld [vmem:[%s381 + $0x1a0] sm:$0xff]
      %v525 = vld [vmem:[%s381 + $0x1a8] sm:$0x3]
      %vm574 = vcmask 1046528
      %v575 = vrot.slane %v472, 1
      %v576 = vrot.slane %v473, 1
      %v577 = vsel %vm574, %v575, %v576
      %v578 = vrot.slane %v474, 1
      %v579 = vsel %vm574, %v576, %v578
      %v580 = vrot.slane %v475, 1
      %v581 = vrot.slane %v476, 1
      %v582 = vsel %vm574, %v580, %v581
      %v583 = vrot.slane %v477, 1
      %v584 = vsel %vm574, %v581, %v583
      %v585 = vrot.slane %v478, 1
      %v586 = vrot.slane %v479, 1
      %v587 = vsel %vm574, %v585, %v586
      %v588 = vrot.slane %v480, 1
      %v589 = vsel %vm574, %v586, %v588
      %v590 = vrot.slane %v481, 1
      %v591 = vrot.slane %v482, 1
      %v592 = vsel %vm574, %v590, %v591
      %v593 = vrot.slane %v483, 1
      %v594 = vsel %vm574, %v591, %v593
      %v595 = vrot.slane %v484, 1
      %v596 = vrot.slane %v485, 1
      %v597 = vsel %vm574, %v595, %v596
      %v598 = vrot.slane %v486, 1
      %v599 = vsel %vm574, %v596, %v598
      %v600 = vrot.slane %v487, 1
      %v601 = vrot.slane %v488, 1
      %v602 = vsel %vm574, %v600, %v601
      %v603 = vrot.slane %v489, 1
      %v604 = vsel %vm574, %v601, %v603
      %v605 = vrot.slane %v490, 1
      %v606 = vrot.slane %v491, 1
      %v607 = vsel %vm574, %v605, %v606
      %v608 = vrot.slane %v492, 1
      %v609 = vsel %vm574, %v606, %v608
      %v610 = vrot.slane %v493, 1
      %v611 = vrot.slane %v494, 1
      %v612 = vsel %vm574, %v610, %v611
      %v613 = vrot.slane %v495, 1
      %v614 = vsel %vm574, %v611, %v613
      %v615 = vrot.slane %v496, 1
      %v616 = vrot.slane %v497, 1
      %v617 = vsel %vm574, %v615, %v616
      %v618 = vrot.slane %v498, 1
      %v619 = vsel %vm574, %v616, %v618
      %v620 = vrot.slane %v499, 1
      %v621 = vrot.slane %v500, 1
      %v622 = vsel %vm574, %v620, %v621
      %v623 = vrot.slane %v501, 1
      %v624 = vsel %vm574, %v621, %v623
      %v625 = vrot.slane %v502, 1
      %v626 = vrot.slane %v503, 1
      %v627 = vsel %vm574, %v625, %v626
      %v628 = vrot.slane %v504, 1
      %v629 = vsel %vm574, %v626, %v628
      %v630 = vrot.slane %v505, 1
      %v631 = vrot.slane %v506, 1
      %v632 = vsel %vm574, %v630, %v631
      %v633 = vrot.slane %v507, 1
      %v634 = vsel %vm574, %v631, %v633
      %v635 = vrot.slane %v508, 1
      %v636 = vrot.slane %v509, 1
      %v637 = vsel %vm574, %v635, %v636
      %v638 = vrot.slane %v510, 1
      %v639 = vsel %vm574, %v636, %v638
      %v640 = vrot.slane %v511, 1
      %v641 = vrot.slane %v512, 1
      %v642 = vsel %vm574, %v640, %v641
      %v643 = vrot.slane %v513, 1
      %v644 = vsel %vm574, %v641, %v643
      %v645 = vrot.slane %v514, 1
      %v646 = vrot.slane %v515, 1
      %v647 = vsel %vm574, %v645, %v646
      %v648 = vrot.slane %v516, 1
      %v649 = vsel %vm574, %v646, %v648
      %v650 = vrot.slane %v517, 1
      %v651 = vrot.slane %v518, 1
      %v652 = vsel %vm574, %v650, %v651
      %v653 = vrot.slane %v519, 1
      %v654 = vsel %vm574, %v651, %v653
      %vm655 = vcmask 1045504
      %v656 = vrot.slane %v472, 2
      %v657 = vrot.slane %v473, 2
      %v658 = vsel %vm655, %v656, %v657
      %v659 = vrot.slane %v474, 2
      %v660 = vsel %vm655, %v657, %v659
      %v661 = vrot.slane %v475, 2
      %v662 = vrot.slane %v476, 2
      %v663 = vsel %vm655, %v661, %v662
      %v664 = vrot.slane %v477, 2
      %v665 = vsel %vm655, %v662, %v664
      %v666 = vrot.slane %v478, 2
      %v667 = vrot.slane %v479, 2
      %v668 = vsel %vm655, %v666, %v667
      %v669 = vrot.slane %v480, 2
      %v670 = vsel %vm655, %v667, %v669
      %v671 = vrot.slane %v481, 2
      %v672 = vrot.slane %v482, 2
      %v673 = vsel %vm655, %v671, %v672
      %v674 = vrot.slane %v483, 2
      %v675 = vsel %vm655, %v672, %v674
      %v676 = vrot.slane %v484, 2
      %v677 = vrot.slane %v485, 2
      %v678 = vsel %vm655, %v676, %v677
      %v679 = vrot.slane %v486, 2
      %v680 = vsel %vm655, %v677, %v679
      %v681 = vrot.slane %v487, 2
      %v682 = vrot.slane %v488, 2
      %v683 = vsel %vm655, %v681, %v682
      %v684 = vrot.slane %v489, 2
      %v685 = vsel %vm655, %v682, %v684
      %v686 = vrot.slane %v490, 2
      %v687 = vrot.slane %v491, 2
      %v688 = vsel %vm655, %v686, %v687
      %v689 = vrot.slane %v492, 2
      %v690 = vsel %vm655, %v687, %v689
      %v691 = vrot.slane %v493, 2
      %v692 = vrot.slane %v494, 2
      %v693 = vsel %vm655, %v691, %v692
      %v694 = vrot.slane %v495, 2
      %v695 = vsel %vm655, %v692, %v694
      %v696 = vrot.slane %v496, 2
      %v697 = vrot.slane %v497, 2
      %v698 = vsel %vm655, %v696, %v697
      %v699 = vrot.slane %v498, 2
      %v700 = vsel %vm655, %v697, %v699
      %v701 = vrot.slane %v499, 2
      %v702 = vrot.slane %v500, 2
      %v703 = vsel %vm655, %v701, %v702
      %v704 = vrot.slane %v501, 2
      %v705 = vsel %vm655, %v702, %v704
      %v706 = vrot.slane %v502, 2
      %v707 = vrot.slane %v503, 2
      %v708 = vsel %vm655, %v706, %v707
      %v709 = vrot.slane %v504, 2
      %v710 = vsel %vm655, %v707, %v709
      %v711 = vrot.slane %v505, 2
      %v712 = vrot.slane %v506, 2
      %v713 = vsel %vm655, %v711, %v712
      %v714 = vrot.slane %v507, 2
      %v715 = vsel %vm655, %v712, %v714
      %v716 = vrot.slane %v508, 2
      %v717 = vrot.slane %v509, 2
      %v718 = vsel %vm655, %v716, %v717
      %v719 = vrot.slane %v510, 2
      %v720 = vsel %vm655, %v717, %v719
      %v721 = vrot.slane %v511, 2
      %v722 = vrot.slane %v512, 2
      %v723 = vsel %vm655, %v721, %v722
      %v724 = vrot.slane %v513, 2
      %v725 = vsel %vm655, %v722, %v724
      %v726 = vrot.slane %v514, 2
      %v727 = vrot.slane %v515, 2
      %v728 = vsel %vm655, %v726, %v727
      %v729 = vrot.slane %v516, 2
      %v730 = vsel %vm655, %v727, %v729
      %v731 = vrot.slane %v517, 2
      %v732 = vrot.slane %v518, 2
      %v733 = vsel %vm655, %v731, %v732
      %v734 = vrot.slane %v519, 2
      %v735 = vsel %vm655, %v732, %v734
      %v739 = vrot.slane %v520, 1
      %v740 = vrot.slane %v521, 1
      %v741 = vsel %vm574, %v739, %v740
      %v742 = vrot.slane %v522, 1
      %v743 = vsel %vm574, %v740, %v742
      %v744 = vrot.slane %v520, 2
      %v745 = vrot.slane %v521, 2
      %v746 = vsel %vm655, %v744, %v745
      %v747 = vrot.slane %v522, 2
      %v748 = vsel %vm655, %v745, %v747
      %v752 = vrot.slane %v523, 1
      %v753 = vrot.slane %v524, 1
      %v754 = vsel %vm574, %v752, %v753
      %v755 = vrot.slane %v525, 1
      %v756 = vsel %vm574, %v753, %v755
      %v757 = vrot.slane %v523, 2
      %v758 = vrot.slane %v524, 2
      %v759 = vsel %vm655, %v757, %v758
      %v760 = vrot.slane %v525, 2
      %v761 = vsel %vm655, %v758, %v760
      %762 = vrot.lane.b32.xlu0 %v577, 3
      %v763 = vpop.permute.xlu0 %762
      %764 = vrot.lane.b32.xlu0 %v579, 3
      %v765 = vpop.permute.xlu0 %764
      %766 = vrot.lane.b32.xlu0 %v582, 3
      %v767 = vpop.permute.xlu0 %766
      %768 = vrot.lane.b32.xlu0 %v584, 3
      %v769 = vpop.permute.xlu0 %768
      %770 = vrot.lane.b32.xlu0 %v587, 3
      %v771 = vpop.permute.xlu0 %770
      %772 = vrot.lane.b32.xlu0 %v589, 3
      %v773 = vpop.permute.xlu0 %772
      %774 = vrot.lane.b32.xlu0 %v592, 3
      %v775 = vpop.permute.xlu0 %774
      %776 = vrot.lane.b32.xlu0 %v594, 3
      %v777 = vpop.permute.xlu0 %776
      %778 = vrot.lane.b32.xlu0 %v597, 3
      %v779 = vpop.permute.xlu0 %778
      %780 = vrot.lane.b32.xlu0 %v599, 3
      %v781 = vpop.permute.xlu0 %780
      %782 = vrot.lane.b32.xlu0 %v602, 3
      %v783 = vpop.permute.xlu0 %782
      %784 = vrot.lane.b32.xlu0 %v604, 3
      %v785 = vpop.permute.xlu0 %784
      %786 = vrot.lane.b32.xlu0 %v607, 3
      %v787 = vpop.permute.xlu0 %786
      %788 = vrot.lane.b32.xlu0 %v609, 3
      %v789 = vpop.permute.xlu0 %788
      %790 = vrot.lane.b32.xlu0 %v612, 3
      %v791 = vpop.permute.xlu0 %790
      %792 = vrot.lane.b32.xlu0 %v614, 3
      %v793 = vpop.permute.xlu0 %792
      %794 = vrot.lane.b32.xlu0 %v617, 3
      %v795 = vpop.permute.xlu0 %794
      %796 = vrot.lane.b32.xlu0 %v619, 3
      %v797 = vpop.permute.xlu0 %796
      %798 = vrot.lane.b32.xlu0 %v622, 3
      %v799 = vpop.permute.xlu0 %798
      %800 = vrot.lane.b32.xlu0 %v624, 3
      %v801 = vpop.permute.xlu0 %800
      %802 = vrot.lane.b32.xlu0 %v627, 3
      %v803 = vpop.permute.xlu0 %802
      %804 = vrot.lane.b32.xlu0 %v629, 3
      %v805 = vpop.permute.xlu0 %804
      %806 = vrot.lane.b32.xlu0 %v632, 3
      %v807 = vpop.permute.xlu0 %806
      %808 = vrot.lane.b32.xlu0 %v634, 3
      %v809 = vpop.permute.xlu0 %808
      %810 = vrot.lane.b32.xlu0 %v637, 3
      %v811 = vpop.permute.xlu0 %810
      %812 = vrot.lane.b32.xlu0 %v639, 3
      %v813 = vpop.permute.xlu0 %812
      %814 = vrot.lane.b32.xlu0 %v642, 3
      %v815 = vpop.permute.xlu0 %814
      %816 = vrot.lane.b32.xlu0 %v644, 3
      %v817 = vpop.permute.xlu0 %816
      %818 = vrot.lane.b32.xlu0 %v647, 3
      %v819 = vpop.permute.xlu0 %818
      %820 = vrot.lane.b32.xlu0 %v649, 3
      %v821 = vpop.permute.xlu0 %820
      %822 = vrot.lane.b32.xlu0 %v652, 3
      %v823 = vpop.permute.xlu0 %822
      %824 = vrot.lane.b32.xlu0 %v654, 3
      %v825 = vpop.permute.xlu0 %824
      %858 = vrot.lane.b32.xlu0 %v658, 6
      %v859 = vpop.permute.xlu0 %858
      %860 = vrot.lane.b32.xlu0 %v660, 6
      %v861 = vpop.permute.xlu0 %860
      %862 = vrot.lane.b32.xlu0 %v663, 6
      %v863 = vpop.permute.xlu0 %862
      %864 = vrot.lane.b32.xlu0 %v665, 6
      %v865 = vpop.permute.xlu0 %864
      %866 = vrot.lane.b32.xlu0 %v668, 6
      %v867 = vpop.permute.xlu0 %866
      %868 = vrot.lane.b32.xlu0 %v670, 6
      %v869 = vpop.permute.xlu0 %868
      %870 = vrot.lane.b32.xlu0 %v673, 6
      %v871 = vpop.permute.xlu0 %870
      %872 = vrot.lane.b32.xlu0 %v675, 6
      %v873 = vpop.permute.xlu0 %872
      %874 = vrot.lane.b32.xlu0 %v678, 6
      %v875 = vpop.permute.xlu0 %874
      %876 = vrot.lane.b32.xlu0 %v680, 6
      %v877 = vpop.permute.xlu0 %876
      %878 = vrot.lane.b32.xlu0 %v683, 6
      %v879 = vpop.permute.xlu0 %878
      %880 = vrot.lane.b32.xlu0 %v685, 6
      %v881 = vpop.permute.xlu0 %880
      %882 = vrot.lane.b32.xlu0 %v688, 6
      %v883 = vpop.permute.xlu0 %882
      %884 = vrot.lane.b32.xlu0 %v690, 6
      %v885 = vpop.permute.xlu0 %884
      %886 = vrot.lane.b32.xlu0 %v693, 6
      %v887 = vpop.permute.xlu0 %886
      %888 = vrot.lane.b32.xlu0 %v695, 6
      %v889 = vpop.permute.xlu0 %888
      %890 = vrot.lane.b32.xlu0 %v698, 6
      %v891 = vpop.permute.xlu0 %890
      %892 = vrot.lane.b32.xlu0 %v700, 6
      %v893 = vpop.permute.xlu0 %892
      %894 = vrot.lane.b32.xlu0 %v703, 6
      %v895 = vpop.permute.xlu0 %894
      %896 = vrot.lane.b32.xlu0 %v705, 6
      %v897 = vpop.permute.xlu0 %896
      %898 = vrot.lane.b32.xlu0 %v708, 6
      %v899 = vpop.permute.xlu0 %898
      %900 = vrot.lane.b32.xlu0 %v710, 6
      %v901 = vpop.permute.xlu0 %900
      %902 = vrot.lane.b32.xlu0 %v713, 6
      %v903 = vpop.permute.xlu0 %902
      %904 = vrot.lane.b32.xlu0 %v715, 6
      %v905 = vpop.permute.xlu0 %904
      %906 = vrot.lane.b32.xlu0 %v718, 6
      %v907 = vpop.permute.xlu0 %906
      %908 = vrot.lane.b32.xlu0 %v720, 6
      %v909 = vpop.permute.xlu0 %908
      %910 = vrot.lane.b32.xlu0 %v723, 6
      %v911 = vpop.permute.xlu0 %910
      %912 = vrot.lane.b32.xlu0 %v725, 6
      %v913 = vpop.permute.xlu0 %912
      %914 = vrot.lane.b32.xlu0 %v728, 6
      %v915 = vpop.permute.xlu0 %914
      %916 = vrot.lane.b32.xlu0 %v730, 6
      %v917 = vpop.permute.xlu0 %916
      %918 = vrot.lane.b32.xlu0 %v733, 6
      %v919 = vpop.permute.xlu0 %918
      %920 = vrot.lane.b32.xlu0 %v735, 6
      %v921 = vpop.permute.xlu0 %920
      %954 = vrot.lane.b32.xlu0 %v475, 9
      %v955 = vpop.permute.xlu0 %954
      %956 = vrot.lane.b32.xlu0 %v476, 9
      %v957 = vpop.permute.xlu0 %956
      %958 = vrot.lane.b32.xlu0 %v478, 9
      %v959 = vpop.permute.xlu0 %958
      %960 = vrot.lane.b32.xlu0 %v479, 9
      %v961 = vpop.permute.xlu0 %960
      %962 = vrot.lane.b32.xlu0 %v481, 9
      %v963 = vpop.permute.xlu0 %962
      %964 = vrot.lane.b32.xlu0 %v482, 9
      %v965 = vpop.permute.xlu0 %964
      %966 = vrot.lane.b32.xlu0 %v484, 9
      %v967 = vpop.permute.xlu0 %966
      %968 = vrot.lane.b32.xlu0 %v485, 9
      %v969 = vpop.permute.xlu0 %968
      %970 = vrot.lane.b32.xlu0 %v487, 9
      %v971 = vpop.permute.xlu0 %970
      %972 = vrot.lane.b32.xlu0 %v488, 9
      %v973 = vpop.permute.xlu0 %972
      %974 = vrot.lane.b32.xlu0 %v490, 9
      %v975 = vpop.permute.xlu0 %974
      %976 = vrot.lane.b32.xlu0 %v491, 9
      %v977 = vpop.permute.xlu0 %976
      %978 = vrot.lane.b32.xlu0 %v493, 9
      %v979 = vpop.permute.xlu0 %978
      %980 = vrot.lane.b32.xlu0 %v494, 9
      %v981 = vpop.permute.xlu0 %980
      %982 = vrot.lane.b32.xlu0 %v496, 9
      %v983 = vpop.permute.xlu0 %982
      %984 = vrot.lane.b32.xlu0 %v497, 9
      %v985 = vpop.permute.xlu0 %984
      %986 = vrot.lane.b32.xlu0 %v499, 9
      %v987 = vpop.permute.xlu0 %986
      %988 = vrot.lane.b32.xlu0 %v500, 9
      %v989 = vpop.permute.xlu0 %988
      %990 = vrot.lane.b32.xlu0 %v502, 9
      %v991 = vpop.permute.xlu0 %990
      %992 = vrot.lane.b32.xlu0 %v503, 9
      %v993 = vpop.permute.xlu0 %992
      %994 = vrot.lane.b32.xlu0 %v505, 9
      %v995 = vpop.permute.xlu0 %994
      %996 = vrot.lane.b32.xlu0 %v506, 9
      %v997 = vpop.permute.xlu0 %996
      %998 = vrot.lane.b32.xlu0 %v508, 9
      %v999 = vpop.permute.xlu0 %998
      %1000 = vrot.lane.b32.xlu0 %v509, 9
      %v1001 = vpop.permute.xlu0 %1000
      %1002 = vrot.lane.b32.xlu0 %v511, 9
      %v1003 = vpop.permute.xlu0 %1002
      %1004 = vrot.lane.b32.xlu0 %v512, 9
      %v1005 = vpop.permute.xlu0 %1004
      %1006 = vrot.lane.b32.xlu0 %v514, 9
      %v1007 = vpop.permute.xlu0 %1006
      %1008 = vrot.lane.b32.xlu0 %v515, 9
      %v1009 = vpop.permute.xlu0 %1008
      %1010 = vrot.lane.b32.xlu0 %v517, 9
      %v1011 = vpop.permute.xlu0 %1010
      %1012 = vrot.lane.b32.xlu0 %v518, 9
      %v1013 = vpop.permute.xlu0 %1012
      %1014 = vrot.lane.b32.xlu0 %v520, 9
      %v1015 = vpop.permute.xlu0 %1014
      %1016 = vrot.lane.b32.xlu0 %v521, 9
      %v1017 = vpop.permute.xlu0 %1016
      %1050 = vrot.lane.b32.xlu0 %v582, 12
      %v1051 = vpop.permute.xlu0 %1050
      %1052 = vrot.lane.b32.xlu0 %v584, 12
      %v1053 = vpop.permute.xlu0 %1052
      %1054 = vrot.lane.b32.xlu0 %v587, 12
      %v1055 = vpop.permute.xlu0 %1054
      %1056 = vrot.lane.b32.xlu0 %v589, 12
      %v1057 = vpop.permute.xlu0 %1056
      %1058 = vrot.lane.b32.xlu0 %v592, 12
      %v1059 = vpop.permute.xlu0 %1058
      %1060 = vrot.lane.b32.xlu0 %v594, 12
      %v1061 = vpop.permute.xlu0 %1060
      %1062 = vrot.lane.b32.xlu0 %v597, 12
      %v1063 = vpop.permute.xlu0 %1062
      %1064 = vrot.lane.b32.xlu0 %v599, 12
      %v1065 = vpop.permute.xlu0 %1064
      %1066 = vrot.lane.b32.xlu0 %v602, 12
      %v1067 = vpop.permute.xlu0 %1066
      %1068 = vrot.lane.b32.xlu0 %v604, 12
      %v1069 = vpop.permute.xlu0 %1068
      %1070 = vrot.lane.b32.xlu0 %v607, 12
      %v1071 = vpop.permute.xlu0 %1070
      %1072 = vrot.lane.b32.xlu0 %v609, 12
      %v1073 = vpop.permute.xlu0 %1072
      %1074 = vrot.lane.b32.xlu0 %v612, 12
      %v1075 = vpop.permute.xlu0 %1074
      %1076 = vrot.lane.b32.xlu0 %v614, 12
      %v1077 = vpop.permute.xlu0 %1076
      %1078 = vrot.lane.b32.xlu0 %v617, 12
      %v1079 = vpop.permute.xlu0 %1078
      %1080 = vrot.lane.b32.xlu0 %v619, 12
      %v1081 = vpop.permute.xlu0 %1080
      %1082 = vrot.lane.b32.xlu0 %v622, 12
      %v1083 = vpop.permute.xlu0 %1082
      %1084 = vrot.lane.b32.xlu0 %v624, 12
      %v1085 = vpop.permute.xlu0 %1084
      %1086 = vrot.lane.b32.xlu0 %v627, 12
      %v1087 = vpop.permute.xlu0 %1086
      %1088 = vrot.lane.b32.xlu0 %v629, 12
      %v1089 = vpop.permute.xlu0 %1088
      %1090 = vrot.lane.b32.xlu0 %v632, 12
      %v1091 = vpop.permute.xlu0 %1090
      %1092 = vrot.lane.b32.xlu0 %v634, 12
      %v1093 = vpop.permute.xlu0 %1092
      %1094 = vrot.lane.b32.xlu0 %v637, 12
      %v1095 = vpop.permute.xlu0 %1094
      %1096 = vrot.lane.b32.xlu0 %v639, 12
      %v1097 = vpop.permute.xlu0 %1096
      %1098 = vrot.lane.b32.xlu0 %v642, 12
      %v1099 = vpop.permute.xlu0 %1098
      %1100 = vrot.lane.b32.xlu0 %v644, 12
      %v1101 = vpop.permute.xlu0 %1100
      %1102 = vrot.lane.b32.xlu0 %v647, 12
      %v1103 = vpop.permute.xlu0 %1102
      %1104 = vrot.lane.b32.xlu0 %v649, 12
      %v1105 = vpop.permute.xlu0 %1104
      %1106 = vrot.lane.b32.xlu0 %v652, 12
      %v1107 = vpop.permute.xlu0 %1106
      %1108 = vrot.lane.b32.xlu0 %v654, 12
      %v1109 = vpop.permute.xlu0 %1108
      %1110 = vrot.lane.b32.xlu0 %v741, 12
      %v1111 = vpop.permute.xlu0 %1110
      %1112 = vrot.lane.b32.xlu0 %v743, 12
      %v1113 = vpop.permute.xlu0 %1112
      %1146 = vrot.lane.b32.xlu0 %v663, 15
      %v1147 = vpop.permute.xlu0 %1146
      %1148 = vrot.lane.b32.xlu0 %v665, 15
      %v1149 = vpop.permute.xlu0 %1148
      %1150 = vrot.lane.b32.xlu0 %v668, 15
      %v1151 = vpop.permute.xlu0 %1150
      %1152 = vrot.lane.b32.xlu0 %v670, 15
      %v1153 = vpop.permute.xlu0 %1152
      %1154 = vrot.lane.b32.xlu0 %v673, 15
      %v1155 = vpop.permute.xlu0 %1154
      %1156 = vrot.lane.b32.xlu0 %v675, 15
      %v1157 = vpop.permute.xlu0 %1156
      %1158 = vrot.lane.b32.xlu0 %v678, 15
      %v1159 = vpop.permute.xlu0 %1158
      %1160 = vrot.lane.b32.xlu0 %v680, 15
      %v1161 = vpop.permute.xlu0 %1160
      %1162 = vrot.lane.b32.xlu0 %v683, 15
      %v1163 = vpop.permute.xlu0 %1162
      %1164 = vrot.lane.b32.xlu0 %v685, 15
      %v1165 = vpop.permute.xlu0 %1164
      %1166 = vrot.lane.b32.xlu0 %v688, 15
      %v1167 = vpop.permute.xlu0 %1166
      %1168 = vrot.lane.b32.xlu0 %v690, 15
      %v1169 = vpop.permute.xlu0 %1168
      %1170 = vrot.lane.b32.xlu0 %v693, 15
      %v1171 = vpop.permute.xlu0 %1170
      %1172 = vrot.lane.b32.xlu0 %v695, 15
      %v1173 = vpop.permute.xlu0 %1172
      %1174 = vrot.lane.b32.xlu0 %v698, 15
      %v1175 = vpop.permute.xlu0 %1174
      %1176 = vrot.lane.b32.xlu0 %v700, 15
      %v1177 = vpop.permute.xlu0 %1176
      %1178 = vrot.lane.b32.xlu0 %v703, 15
      %v1179 = vpop.permute.xlu0 %1178
      %1180 = vrot.lane.b32.xlu0 %v705, 15
      %v1181 = vpop.permute.xlu0 %1180
      %1182 = vrot.lane.b32.xlu0 %v708, 15
      %v1183 = vpop.permute.xlu0 %1182
      %1184 = vrot.lane.b32.xlu0 %v710, 15
      %v1185 = vpop.permute.xlu0 %1184
      %1186 = vrot.lane.b32.xlu0 %v713, 15
      %v1187 = vpop.permute.xlu0 %1186
      %1188 = vrot.lane.b32.xlu0 %v715, 15
      %v1189 = vpop.permute.xlu0 %1188
      %1190 = vrot.lane.b32.xlu0 %v718, 15
      %v1191 = vpop.permute.xlu0 %1190
      %1192 = vrot.lane.b32.xlu0 %v720, 15
      %v1193 = vpop.permute.xlu0 %1192
      %1194 = vrot.lane.b32.xlu0 %v723, 15
      %v1195 = vpop.permute.xlu0 %1194
      %1196 = vrot.lane.b32.xlu0 %v725, 15
      %v1197 = vpop.permute.xlu0 %1196
      %1198 = vrot.lane.b32.xlu0 %v728, 15
      %v1199 = vpop.permute.xlu0 %1198
      %1200 = vrot.lane.b32.xlu0 %v730, 15
      %v1201 = vpop.permute.xlu0 %1200
      %1202 = vrot.lane.b32.xlu0 %v733, 15
      %v1203 = vpop.permute.xlu0 %1202
      %1204 = vrot.lane.b32.xlu0 %v735, 15
      %v1205 = vpop.permute.xlu0 %1204
      %1206 = vrot.lane.b32.xlu0 %v746, 15
      %v1207 = vpop.permute.xlu0 %1206
      %1208 = vrot.lane.b32.xlu0 %v748, 15
      %v1209 = vpop.permute.xlu0 %1208
      %1242 = vrot.lane.b32.xlu0 %v478, 18
      %v1243 = vpop.permute.xlu0 %1242
      %1244 = vrot.lane.b32.xlu0 %v479, 18
      %v1245 = vpop.permute.xlu0 %1244
      %1246 = vrot.lane.b32.xlu0 %v481, 18
      %v1247 = vpop.permute.xlu0 %1246
      %1248 = vrot.lane.b32.xlu0 %v482, 18
      %v1249 = vpop.permute.xlu0 %1248
      %1250 = vrot.lane.b32.xlu0 %v484, 18
      %v1251 = vpop.permute.xlu0 %1250
      %1252 = vrot.lane.b32.xlu0 %v485, 18
      %v1253 = vpop.permute.xlu0 %1252
      %1254 = vrot.lane.b32.xlu0 %v487, 18
      %v1255 = vpop.permute.xlu0 %1254
      %1256 = vrot.lane.b32.xlu0 %v488, 18
      %v1257 = vpop.permute.xlu0 %1256
      %1258 = vrot.lane.b32.xlu0 %v490, 18
      %v1259 = vpop.permute.xlu0 %1258
      %1260 = vrot.lane.b32.xlu0 %v491, 18
      %v1261 = vpop.permute.xlu0 %1260
      %1262 = vrot.lane.b32.xlu0 %v493, 18
      %v1263 = vpop.permute.xlu0 %1262
      %1264 = vrot.lane.b32.xlu0 %v494, 18
      %v1265 = vpop.permute.xlu0 %1264
      %1266 = vrot.lane.b32.xlu0 %v496, 18
      %v1267 = vpop.permute.xlu0 %1266
      %1268 = vrot.lane.b32.xlu0 %v497, 18
      %v1269 = vpop.permute.xlu0 %1268
      %1270 = vrot.lane.b32.xlu0 %v499, 18
      %v1271 = vpop.permute.xlu0 %1270
      %1272 = vrot.lane.b32.xlu0 %v500, 18
      %v1273 = vpop.permute.xlu0 %1272
      %1274 = vrot.lane.b32.xlu0 %v502, 18
      %v1275 = vpop.permute.xlu0 %1274
      %1276 = vrot.lane.b32.xlu0 %v503, 18
      %v1277 = vpop.permute.xlu0 %1276
      %1278 = vrot.lane.b32.xlu0 %v505, 18
      %v1279 = vpop.permute.xlu0 %1278
      %1280 = vrot.lane.b32.xlu0 %v506, 18
      %v1281 = vpop.permute.xlu0 %1280
      %1282 = vrot.lane.b32.xlu0 %v508, 18
      %v1283 = vpop.permute.xlu0 %1282
      %1284 = vrot.lane.b32.xlu0 %v509, 18
      %v1285 = vpop.permute.xlu0 %1284
      %1286 = vrot.lane.b32.xlu0 %v511, 18
      %v1287 = vpop.permute.xlu0 %1286
      %1288 = vrot.lane.b32.xlu0 %v512, 18
      %v1289 = vpop.permute.xlu0 %1288
      %1290 = vrot.lane.b32.xlu0 %v514, 18
      %v1291 = vpop.permute.xlu0 %1290
      %1292 = vrot.lane.b32.xlu0 %v515, 18
      %v1293 = vpop.permute.xlu0 %1292
      %1294 = vrot.lane.b32.xlu0 %v517, 18
      %v1295 = vpop.permute.xlu0 %1294
      %1296 = vrot.lane.b32.xlu0 %v518, 18
      %v1297 = vpop.permute.xlu0 %1296
      %1298 = vrot.lane.b32.xlu0 %v520, 18
      %v1299 = vpop.permute.xlu0 %1298
      %1300 = vrot.lane.b32.xlu0 %v521, 18
      %v1301 = vpop.permute.xlu0 %1300
      %1302 = vrot.lane.b32.xlu0 %v523, 18
      %v1303 = vpop.permute.xlu0 %1302
      %1304 = vrot.lane.b32.xlu0 %v524, 18
      %v1305 = vpop.permute.xlu0 %1304
      %1338 = vrot.lane.b32.xlu0 %v587, 21
      %v1339 = vpop.permute.xlu0 %1338
      %1340 = vrot.lane.b32.xlu0 %v589, 21
      %v1341 = vpop.permute.xlu0 %1340
      %1342 = vrot.lane.b32.xlu0 %v592, 21
      %v1343 = vpop.permute.xlu0 %1342
      %1344 = vrot.lane.b32.xlu0 %v594, 21
      %v1345 = vpop.permute.xlu0 %1344
      %1346 = vrot.lane.b32.xlu0 %v597, 21
      %v1347 = vpop.permute.xlu0 %1346
      %1348 = vrot.lane.b32.xlu0 %v599, 21
      %v1349 = vpop.permute.xlu0 %1348
      %1350 = vrot.lane.b32.xlu0 %v602, 21
      %v1351 = vpop.permute.xlu0 %1350
      %1352 = vrot.lane.b32.xlu0 %v604, 21
      %v1353 = vpop.permute.xlu0 %1352
      %1354 = vrot.lane.b32.xlu0 %v607, 21
      %v1355 = vpop.permute.xlu0 %1354
      %1356 = vrot.lane.b32.xlu0 %v609, 21
      %v1357 = vpop.permute.xlu0 %1356
      %1358 = vrot.lane.b32.xlu0 %v612, 21
      %v1359 = vpop.permute.xlu0 %1358
      %1360 = vrot.lane.b32.xlu0 %v614, 21
      %v1361 = vpop.permute.xlu0 %1360
      %1362 = vrot.lane.b32.xlu0 %v617, 21
      %v1363 = vpop.permute.xlu0 %1362
      %1364 = vrot.lane.b32.xlu0 %v619, 21
      %v1365 = vpop.permute.xlu0 %1364
      %1366 = vrot.lane.b32.xlu0 %v622, 21
      %v1367 = vpop.permute.xlu0 %1366
      %1368 = vrot.lane.b32.xlu0 %v624, 21
      %v1369 = vpop.permute.xlu0 %1368
      %1370 = vrot.lane.b32.xlu0 %v627, 21
      %v1371 = vpop.permute.xlu0 %1370
      %1372 = vrot.lane.b32.xlu0 %v629, 21
      %v1373 = vpop.permute.xlu0 %1372
      %1374 = vrot.lane.b32.xlu0 %v632, 21
      %v1375 = vpop.permute.xlu0 %1374
      %1376 = vrot.lane.b32.xlu0 %v634, 21
      %v1377 = vpop.permute.xlu0 %1376
      %1378 = vrot.lane.b32.xlu0 %v637, 21
      %v1379 = vpop.permute.xlu0 %1378
      %1380 = vrot.lane.b32.xlu0 %v639, 21
      %v1381 = vpop.permute.xlu0 %1380
      %1382 = vrot.lane.b32.xlu0 %v642, 21
      %v1383 = vpop.permute.xlu0 %1382
      %1384 = vrot.lane.b32.xlu0 %v644, 21
      %v1385 = vpop.permute.xlu0 %1384
      %1386 = vrot.lane.b32.xlu0 %v647, 21
      %v1387 = vpop.permute.xlu0 %1386
      %1388 = vrot.lane.b32.xlu0 %v649, 21
      %v1389 = vpop.permute.xlu0 %1388
      %1390 = vrot.lane.b32.xlu0 %v652, 21
      %v1391 = vpop.permute.xlu0 %1390
      %1392 = vrot.lane.b32.xlu0 %v654, 21
      %v1393 = vpop.permute.xlu0 %1392
      %1394 = vrot.lane.b32.xlu0 %v741, 21
      %v1395 = vpop.permute.xlu0 %1394
      %1396 = vrot.lane.b32.xlu0 %v743, 21
      %v1397 = vpop.permute.xlu0 %1396
      %1398 = vrot.lane.b32.xlu0 %v754, 21
      %v1399 = vpop.permute.xlu0 %1398
      %1400 = vrot.lane.b32.xlu0 %v756, 21
      %v1401 = vpop.permute.xlu0 %1400
      %1434 = vrot.lane.b32.xlu0 %v668, 24
      %v1435 = vpop.permute.xlu0 %1434
      %1436 = vrot.lane.b32.xlu0 %v670, 24
      %v1437 = vpop.permute.xlu0 %1436
      %1438 = vrot.lane.b32.xlu0 %v673, 24
      %v1439 = vpop.permute.xlu0 %1438
      %1440 = vrot.lane.b32.xlu0 %v675, 24
      %v1441 = vpop.permute.xlu0 %1440
      %1442 = vrot.lane.b32.xlu0 %v678, 24
      %v1443 = vpop.permute.xlu0 %1442
      %1444 = vrot.lane.b32.xlu0 %v680, 24
      %v1445 = vpop.permute.xlu0 %1444
      %1446 = vrot.lane.b32.xlu0 %v683, 24
      %v1447 = vpop.permute.xlu0 %1446
      %1448 = vrot.lane.b32.xlu0 %v685, 24
      %v1449 = vpop.permute.xlu0 %1448
      %1450 = vrot.lane.b32.xlu0 %v688, 24
      %v1451 = vpop.permute.xlu0 %1450
      %1452 = vrot.lane.b32.xlu0 %v690, 24
      %v1453 = vpop.permute.xlu0 %1452
      %1454 = vrot.lane.b32.xlu0 %v693, 24
      %v1455 = vpop.permute.xlu0 %1454
      %1456 = vrot.lane.b32.xlu0 %v695, 24
      %v1457 = vpop.permute.xlu0 %1456
      %1458 = vrot.lane.b32.xlu0 %v698, 24
      %v1459 = vpop.permute.xlu0 %1458
      %1460 = vrot.lane.b32.xlu0 %v700, 24
      %v1461 = vpop.permute.xlu0 %1460
      %1462 = vrot.lane.b32.xlu0 %v703, 24
      %v1463 = vpop.permute.xlu0 %1462
      %1464 = vrot.lane.b32.xlu0 %v705, 24
      %v1465 = vpop.permute.xlu0 %1464
      %1466 = vrot.lane.b32.xlu0 %v708, 24
      %v1467 = vpop.permute.xlu0 %1466
      %1468 = vrot.lane.b32.xlu0 %v710, 24
      %v1469 = vpop.permute.xlu0 %1468
      %1470 = vrot.lane.b32.xlu0 %v713, 24
      %v1471 = vpop.permute.xlu0 %1470
      %1472 = vrot.lane.b32.xlu0 %v715, 24
      %v1473 = vpop.permute.xlu0 %1472
      %1474 = vrot.lane.b32.xlu0 %v718, 24
      %v1475 = vpop.permute.xlu0 %1474
      %1476 = vrot.lane.b32.xlu0 %v720, 24
      %v1477 = vpop.permute.xlu0 %1476
      %1478 = vrot.lane.b32.xlu0 %v723, 24
      %v1479 = vpop.permute.xlu0 %1478
      %1480 = vrot.lane.b32.xlu0 %v725, 24
      %v1481 = vpop.permute.xlu0 %1480
      %1482 = vrot.lane.b32.xlu0 %v728, 24
      %v1483 = vpop.permute.xlu0 %1482
      %1484 = vrot.lane.b32.xlu0 %v730, 24
      %v1485 = vpop.permute.xlu0 %1484
      %1486 = vrot.lane.b32.xlu0 %v733, 24
      %v1487 = vpop.permute.xlu0 %1486
      %1488 = vrot.lane.b32.xlu0 %v735, 24
      %v1489 = vpop.permute.xlu0 %1488
      %1490 = vrot.lane.b32.xlu0 %v746, 24
      %v1491 = vpop.permute.xlu0 %1490
      %1492 = vrot.lane.b32.xlu0 %v748, 24
      %v1493 = vpop.permute.xlu0 %1492
      %1494 = vrot.lane.b32.xlu0 %v759, 24
      %v1495 = vpop.permute.xlu0 %1494
      %1496 = vrot.lane.b32.xlu0 %v761, 24
      %v1497 = vpop.permute.xlu0 %1496
      %vm1530 = vcmask 23552
      %v1531 = vsel %vm1530, %v472, %v763
      %v1532 = vsel %vm1530, %v473, %v765
      %v1533 = vsel %vm1530, %v475, %v767
      %v1534 = vsel %vm1530, %v476, %v769
      %v1535 = vsel %vm1530, %v478, %v771
      %v1536 = vsel %vm1530, %v479, %v773
      %v1537 = vsel %vm1530, %v481, %v775
      %v1538 = vsel %vm1530, %v482, %v777
      %v1539 = vsel %vm1530, %v484, %v779
      %v1540 = vsel %vm1530, %v485, %v781
      %v1541 = vsel %vm1530, %v487, %v783
      %v1542 = vsel %vm1530, %v488, %v785
      %v1543 = vsel %vm1530, %v490, %v787
      %v1544 = vsel %vm1530, %v491, %v789
      %v1545 = vsel %vm1530, %v493, %v791
      %v1546 = vsel %vm1530, %v494, %v793
      %v1547 = vsel %vm1530, %v496, %v795
      %v1548 = vsel %vm1530, %v497, %v797
      %v1549 = vsel %vm1530, %v499, %v799
      %v1550 = vsel %vm1530, %v500, %v801
      %v1551 = vsel %vm1530, %v502, %v803
      %v1552 = vsel %vm1530, %v503, %v805
      %v1553 = vsel %vm1530, %v505, %v807
      %v1554 = vsel %vm1530, %v506, %v809
      %v1555 = vsel %vm1530, %v508, %v811
      %v1556 = vsel %vm1530, %v509, %v813
      %v1557 = vsel %vm1530, %v511, %v815
      %v1558 = vsel %vm1530, %v512, %v817
      %v1559 = vsel %vm1530, %v514, %v819
      %v1560 = vsel %vm1530, %v515, %v821
      %v1561 = vsel %vm1530, %v517, %v823
      %v1562 = vsel %vm1530, %v518, %v825
      %vm1563 = vcmask 48128
      %v1564 = vsel %vm1563, %v1531, %v859
      %v1565 = vsel %vm1563, %v1532, %v861
      %v1566 = vsel %vm1563, %v1533, %v863
      %v1567 = vsel %vm1563, %v1534, %v865
      %v1568 = vsel %vm1563, %v1535, %v867
      %v1569 = vsel %vm1563, %v1536, %v869
      %v1570 = vsel %vm1563, %v1537, %v871
      %v1571 = vsel %vm1563, %v1538, %v873
      %v1572 = vsel %vm1563, %v1539, %v875
      %v1573 = vsel %vm1563, %v1540, %v877
      %v1574 = vsel %vm1563, %v1541, %v879
      %v1575 = vsel %vm1563, %v1542, %v881
      %v1576 = vsel %vm1563, %v1543, %v883
      %v1577 = vsel %vm1563, %v1544, %v885
      %v1578 = vsel %vm1563, %v1545, %v887
      %v1579 = vsel %vm1563, %v1546, %v889
      %v1580 = vsel %vm1563, %v1547, %v891
      %v1581 = vsel %vm1563, %v1548, %v893
      %v1582 = vsel %vm1563, %v1549, %v895
      %v1583 = vsel %vm1563, %v1550, %v897
      %v1584 = vsel %vm1563, %v1551, %v899
      %v1585 = vsel %vm1563, %v1552, %v901
      %v1586 = vsel %vm1563, %v1553, %v903
      %v1587 = vsel %vm1563, %v1554, %v905
      %v1588 = vsel %vm1563, %v1555, %v907
      %v1589 = vsel %vm1563, %v1556, %v909
      %v1590 = vsel %vm1563, %v1557, %v911
      %v1591 = vsel %vm1563, %v1558, %v913
      %v1592 = vsel %vm1563, %v1559, %v915
      %v1593 = vsel %vm1563, %v1560, %v917
      %v1594 = vsel %vm1563, %v1561, %v919
      %v1595 = vsel %vm1563, %v1562, %v921
      %vm1596 = vcmask 72704
      %v1597 = vsel %vm1596, %v1564, %v955
      %v1598 = vsel %vm1596, %v1565, %v957
      %v1599 = vsel %vm1596, %v1566, %v959
      %v1600 = vsel %vm1596, %v1567, %v961
      %v1601 = vsel %vm1596, %v1568, %v963
      %v1602 = vsel %vm1596, %v1569, %v965
      %v1603 = vsel %vm1596, %v1570, %v967
      %v1604 = vsel %vm1596, %v1571, %v969
      %v1605 = vsel %vm1596, %v1572, %v971
      %v1606 = vsel %vm1596, %v1573, %v973
      %v1607 = vsel %vm1596, %v1574, %v975
      %v1608 = vsel %vm1596, %v1575, %v977
      %v1609 = vsel %vm1596, %v1576, %v979
      %v1610 = vsel %vm1596, %v1577, %v981
      %v1611 = vsel %vm1596, %v1578, %v983
      %v1612 = vsel %vm1596, %v1579, %v985
      %v1613 = vsel %vm1596, %v1580, %v987
      %v1614 = vsel %vm1596, %v1581, %v989
      %v1615 = vsel %vm1596, %v1582, %v991
      %v1616 = vsel %vm1596, %v1583, %v993
      %v1617 = vsel %vm1596, %v1584, %v995
      %v1618 = vsel %vm1596, %v1585, %v997
      %v1619 = vsel %vm1596, %v1586, %v999
      %v1620 = vsel %vm1596, %v1587, %v1001
      %v1621 = vsel %vm1596, %v1588, %v1003
      %v1622 = vsel %vm1596, %v1589, %v1005
      %v1623 = vsel %vm1596, %v1590, %v1007
      %v1624 = vsel %vm1596, %v1591, %v1009
      %v1625 = vsel %vm1596, %v1592, %v1011
      %v1626 = vsel %vm1596, %v1593, %v1013
      %v1627 = vsel %vm1596, %v1594, %v1015
      %v1628 = vsel %vm1596, %v1595, %v1017
      %vm1629 = vcmask 97280
      %v1630 = vsel %vm1629, %v1597, %v1051
      %v1631 = vsel %vm1629, %v1598, %v1053
      %v1632 = vsel %vm1629, %v1599, %v1055
      %v1633 = vsel %vm1629, %v1600, %v1057
      %v1634 = vsel %vm1629, %v1601, %v1059
      %v1635 = vsel %vm1629, %v1602, %v1061
      %v1636 = vsel %vm1629, %v1603, %v1063
      %v1637 = vsel %vm1629, %v1604, %v1065
      %v1638 = vsel %vm1629, %v1605, %v1067
      %v1639 = vsel %vm1629, %v1606, %v1069
      %v1640 = vsel %vm1629, %v1607, %v1071
      %v1641 = vsel %vm1629, %v1608, %v1073
      %v1642 = vsel %vm1629, %v1609, %v1075
      %v1643 = vsel %vm1629, %v1610, %v1077
      %v1644 = vsel %vm1629, %v1611, %v1079
      %v1645 = vsel %vm1629, %v1612, %v1081
      %v1646 = vsel %vm1629, %v1613, %v1083
      %v1647 = vsel %vm1629, %v1614, %v1085
      %v1648 = vsel %vm1629, %v1615, %v1087
      %v1649 = vsel %vm1629, %v1616, %v1089
      %v1650 = vsel %vm1629, %v1617, %v1091
      %v1651 = vsel %vm1629, %v1618, %v1093
      %v1652 = vsel %vm1629, %v1619, %v1095
      %v1653 = vsel %vm1629, %v1620, %v1097
      %v1654 = vsel %vm1629, %v1621, %v1099
      %v1655 = vsel %vm1629, %v1622, %v1101
      %v1656 = vsel %vm1629, %v1623, %v1103
      %v1657 = vsel %vm1629, %v1624, %v1105
      %v1658 = vsel %vm1629, %v1625, %v1107
      %v1659 = vsel %vm1629, %v1626, %v1109
      %v1660 = vsel %vm1629, %v1627, %v1111
      %v1661 = vsel %vm1629, %v1628, %v1113
      %vm1662 = vcmask 121856
      %v1663 = vsel %vm1662, %v1630, %v1147
      %v1664 = vsel %vm1662, %v1631, %v1149
      %v1665 = vsel %vm1662, %v1632, %v1151
      %v1666 = vsel %vm1662, %v1633, %v1153
      %v1667 = vsel %vm1662, %v1634, %v1155
      %v1668 = vsel %vm1662, %v1635, %v1157
      %v1669 = vsel %vm1662, %v1636, %v1159
      %v1670 = vsel %vm1662, %v1637, %v1161
      %v1671 = vsel %vm1662, %v1638, %v1163
      %v1672 = vsel %vm1662, %v1639, %v1165
      %v1673 = vsel %vm1662, %v1640, %v1167
      %v1674 = vsel %vm1662, %v1641, %v1169
      %v1675 = vsel %vm1662, %v1642, %v1171
      %v1676 = vsel %vm1662, %v1643, %v1173
      %v1677 = vsel %vm1662, %v1644, %v1175
      %v1678 = vsel %vm1662, %v1645, %v1177
      %v1679 = vsel %vm1662, %v1646, %v1179
      %v1680 = vsel %vm1662, %v1647, %v1181
      %v1681 = vsel %vm1662, %v1648, %v1183
      %v1682 = vsel %vm1662, %v1649, %v1185
      %v1683 = vsel %vm1662, %v1650, %v1187
      %v1684 = vsel %vm1662, %v1651, %v1189
      %v1685 = vsel %vm1662, %v1652, %v1191
      %v1686 = vsel %vm1662, %v1653, %v1193
      %v1687 = vsel %vm1662, %v1654, %v1195
      %v1688 = vsel %vm1662, %v1655, %v1197
      %v1689 = vsel %vm1662, %v1656, %v1199
      %v1690 = vsel %vm1662, %v1657, %v1201
      %v1691 = vsel %vm1662, %v1658, %v1203
      %v1692 = vsel %vm1662, %v1659, %v1205
      %v1693 = vsel %vm1662, %v1660, %v1207
      %v1694 = vsel %vm1662, %v1661, %v1209
      %vm1695 = vcmask 146432
      %v1696 = vsel %vm1695, %v1663, %v1243
      %v1697 = vsel %vm1695, %v1664, %v1245
      %v1698 = vsel %vm1695, %v1665, %v1247
      %v1699 = vsel %vm1695, %v1666, %v1249
      %v1700 = vsel %vm1695, %v1667, %v1251
      %v1701 = vsel %vm1695, %v1668, %v1253
      %v1702 = vsel %vm1695, %v1669, %v1255
      %v1703 = vsel %vm1695, %v1670, %v1257
      %v1704 = vsel %vm1695, %v1671, %v1259
      %v1705 = vsel %vm1695, %v1672, %v1261
      %v1706 = vsel %vm1695, %v1673, %v1263
      %v1707 = vsel %vm1695, %v1674, %v1265
      %v1708 = vsel %vm1695, %v1675, %v1267
      %v1709 = vsel %vm1695, %v1676, %v1269
      %v1710 = vsel %vm1695, %v1677, %v1271
      %v1711 = vsel %vm1695, %v1678, %v1273
      %v1712 = vsel %vm1695, %v1679, %v1275
      %v1713 = vsel %vm1695, %v1680, %v1277
      %v1714 = vsel %vm1695, %v1681, %v1279
      %v1715 = vsel %vm1695, %v1682, %v1281
      %v1716 = vsel %vm1695, %v1683, %v1283
      %v1717 = vsel %vm1695, %v1684, %v1285
      %v1718 = vsel %vm1695, %v1685, %v1287
      %v1719 = vsel %vm1695, %v1686, %v1289
      %v1720 = vsel %vm1695, %v1687, %v1291
      %v1721 = vsel %vm1695, %v1688, %v1293
      %v1722 = vsel %vm1695, %v1689, %v1295
      %v1723 = vsel %vm1695, %v1690, %v1297
      %v1724 = vsel %vm1695, %v1691, %v1299
      %v1725 = vsel %vm1695, %v1692, %v1301
      %v1726 = vsel %vm1695, %v1693, %v1303
      %v1727 = vsel %vm1695, %v1694, %v1305
      %vm1728 = vcmask 171008
      %v1729 = vsel %vm1728, %v1696, %v1339
      %v1730 = vsel %vm1728, %v1697, %v1341
      %v1731 = vsel %vm1728, %v1698, %v1343
      %v1732 = vsel %vm1728, %v1699, %v1345
      %v1733 = vsel %vm1728, %v1700, %v1347
      %v1734 = vsel %vm1728, %v1701, %v1349
      %v1735 = vsel %vm1728, %v1702, %v1351
      %v1736 = vsel %vm1728, %v1703, %v1353
      %v1737 = vsel %vm1728, %v1704, %v1355
      %v1738 = vsel %vm1728, %v1705, %v1357
      %v1739 = vsel %vm1728, %v1706, %v1359
      %v1740 = vsel %vm1728, %v1707, %v1361
      %v1741 = vsel %vm1728, %v1708, %v1363
      %v1742 = vsel %vm1728, %v1709, %v1365
      %v1743 = vsel %vm1728, %v1710, %v1367
      %v1744 = vsel %vm1728, %v1711, %v1369
      %v1745 = vsel %vm1728, %v1712, %v1371
      %v1746 = vsel %vm1728, %v1713, %v1373
      %v1747 = vsel %vm1728, %v1714, %v1375
      %v1748 = vsel %vm1728, %v1715, %v1377
      %v1749 = vsel %vm1728, %v1716, %v1379
      %v1750 = vsel %vm1728, %v1717, %v1381
      %v1751 = vsel %vm1728, %v1718, %v1383
      %v1752 = vsel %vm1728, %v1719, %v1385
      %v1753 = vsel %vm1728, %v1720, %v1387
      %v1754 = vsel %vm1728, %v1721, %v1389
      %v1755 = vsel %vm1728, %v1722, %v1391
      %v1756 = vsel %vm1728, %v1723, %v1393
      %v1757 = vsel %vm1728, %v1724, %v1395
      %v1758 = vsel %vm1728, %v1725, %v1397
      %v1759 = vsel %vm1728, %v1726, %v1399
      %v1760 = vsel %vm1728, %v1727, %v1401
      %vm1761 = vcmask 195584
      %v1762 = vsel %vm1761, %v1729, %v1435
      %v1763 = vsel %vm1761, %v1730, %v1437
      %v1764 = vsel %vm1761, %v1731, %v1439
      %v1765 = vsel %vm1761, %v1732, %v1441
      %v1766 = vsel %vm1761, %v1733, %v1443
      %v1767 = vsel %vm1761, %v1734, %v1445
      %v1768 = vsel %vm1761, %v1735, %v1447
      %v1769 = vsel %vm1761, %v1736, %v1449
      %v1770 = vsel %vm1761, %v1737, %v1451
      %v1771 = vsel %vm1761, %v1738, %v1453
      %v1772 = vsel %vm1761, %v1739, %v1455
      %v1773 = vsel %vm1761, %v1740, %v1457
      %v1774 = vsel %vm1761, %v1741, %v1459
      %v1775 = vsel %vm1761, %v1742, %v1461
      %v1776 = vsel %vm1761, %v1743, %v1463
      %v1777 = vsel %vm1761, %v1744, %v1465
      %v1778 = vsel %vm1761, %v1745, %v1467
      %v1779 = vsel %vm1761, %v1746, %v1469
      %v1780 = vsel %vm1761, %v1747, %v1471
      %v1781 = vsel %vm1761, %v1748, %v1473
      %v1782 = vsel %vm1761, %v1749, %v1475
      %v1783 = vsel %vm1761, %v1750, %v1477
      %v1784 = vsel %vm1761, %v1751, %v1479
      %v1785 = vsel %vm1761, %v1752, %v1481
      %v1786 = vsel %vm1761, %v1753, %v1483
      %v1787 = vsel %vm1761, %v1754, %v1485
      %v1788 = vsel %vm1761, %v1755, %v1487
      %v1789 = vsel %vm1761, %v1756, %v1489
      %v1790 = vsel %vm1761, %v1757, %v1491
      %v1791 = vsel %vm1761, %v1758, %v1493
      %v1792 = vsel %vm1761, %v1759, %v1495
      %v1793 = vsel %vm1761, %v1760, %v1497
      %v1794 = vld [vmem:[%s1] sm:$0xff]
      %v1795 = vld [vmem:[%s1 + $0x8] sm:$0xff]
      %v1796 = vld [vmem:[%s1 + $0x10] sm:$0xff]
      %v1797 = vld [vmem:[%s1 + $0x18] sm:$0x7]
      %v1798 = vld [vmem:[%s2] sm:$0x1]
      %v1800 = vlaneseq
      %v1801 = vshrl.u32 %v1800, 7
      %v1802 = vsub.s32 0, %v1801
      %v1803 = vrot.slane %v1798, %v1802
      %vm1805 = vcmask 220160
      %v1807 = vsel %vm1805, %v1762, 0
      %v1810 = vsel %vm1805, %v1763, 0
      %v1813 = vsel %vm1805, %v1764, 0
      %v1816 = vsel %vm1805, %v1765, 0
      %v1819 = vsel %vm1805, %v1766, 0
      %v1822 = vsel %vm1805, %v1767, 0
      %v1825 = vsel %vm1805, %v1768, 0
      %v1828 = vsel %vm1805, %v1769, 0
      %v1831 = vsel %vm1805, %v1770, 0
      %v1834 = vsel %vm1805, %v1771, 0
      %v1837 = vsel %vm1805, %v1772, 0
      %v1840 = vsel %vm1805, %v1773, 0
      %v1843 = vsel %vm1805, %v1774, 0
      %v1846 = vsel %vm1805, %v1775, 0
      %v1849 = vsel %vm1805, %v1776, 0
      %v1852 = vsel %vm1805, %v1777, 0
      %v1855 = vsel %vm1805, %v1778, 0
      %v1858 = vsel %vm1805, %v1779, 0
      %v1861 = vsel %vm1805, %v1780, 0
      %v1864 = vsel %vm1805, %v1781, 0
      %v1867 = vsel %vm1805, %v1782, 0
      %v1870 = vsel %vm1805, %v1783, 0
      %v1873 = vsel %vm1805, %v1784, 0
      %v1876 = vsel %vm1805, %v1785, 0
      %v1879 = vsel %vm1805, %v1786, 0
      %v1882 = vsel %vm1805, %v1787, 0
      %v1885 = vsel %vm1805, %v1788, 0
      %v1888 = vsel %vm1805, %v1789, 0
      %v1891 = vsel %vm1805, %v1790, 0
      %v1894 = vsel %vm1805, %v1791, 0
      %v1897 = vsel %vm1805, %v1792, 0
      %v1900 = vsel %vm1805, %v1793, 0
      %vm1902 = vcmask 1042432
      %v1904 = vsel %vm1902, %v1797, 0
      %1906 = vmatprep.subr.mxu0 0.0
      %1907 = vmatpush1.msra.mxu0 %v1794
      %1908 = vmatprep.subr.mxu0 0.0
      %1909 = vmatpush1.msra.mxu0 %v1795
      %1910 = vmatprep.subr.mxu0 0.0
      %1911 = vmatpush1.msra.mxu0 %v1796
      %1912 = vmatprep.subr.mxu0 0.0
      %1913 = vmatpush1.msra.mxu0 %v1904
      %1914 = vmatprep.subr.mxu0 0.0
      %1915 = vmatpush1.msra.mxu0 0.0
      %1916 = vmatprep.subr.mxu0 0.0
      %1917 = vmatpush1.msra.mxu0 0.0
      %1918 = vmatprep.subr.mxu0 0.0
      %1919 = vmatpush1.msra.mxu0 0.0
      %1920 = vmatprep.subr.mxu0 0.0
      %1921 = vmatpush1.msra.mxu0 0.0
      %1922 = vmatprep.subr.mxu0 0.0
      %1923 = vmatpush1.msra.mxu0 0.0
      %1924 = vmatprep.subr.mxu0 0.0
      %1925 = vmatpush1.msra.mxu0 0.0
      %1926 = vmatprep.subr.mxu0 0.0
      %1927 = vmatpush1.msra.mxu0 0.0
      %1928 = vmatprep.subr.mxu0 0.0
      %1929 = vmatpush1.msra.mxu0 0.0
      %1930 = vmatprep.subr.mxu0 0.0
      %1931 = vmatpush1.msra.mxu0 0.0
      %1932 = vmatprep.subr.mxu0 0.0
      %1933 = vmatpush1.msra.mxu0 0.0
      %1934 = vmatprep.subr.mxu0 0.0
      %1935 = vmatpush1.msra.mxu0 0.0
      %1936 = vmatprep.subr.mxu0 0.0
      %1937 = vmatpush1.msra.mxu0 0.0
      %1938 = vmatprep.subr.mxu0 0.0
      %1939 = vmatpush1.msra.mxu0 0.0
      %1940 = vmatprep.subr.mxu0 0.0
      %1941 = vmatpush1.msra.mxu0 0.0
      %1942 = vmatprep.subr.mxu0 0.0
      %1943 = vmatpush1.msra.mxu0 0.0
      %1944 = vmatprep.subr.mxu0 0.0
      %1945 = vmatpush1.msra.mxu0 0.0
      %1946 = vmatprep.subr.mxu0 0.0
      %1947 = vmatpush1.msra.mxu0 0.0
      %1948 = vmatprep.subr.mxu0 0.0
      %1949 = vmatpush1.msra.mxu0 0.0
      %1950 = vmatprep.subr.mxu0 0.0
      %1951 = vmatpush1.msra.mxu0 0.0
      %1952 = vmatprep.subr.mxu0 0.0
      %1953 = vmatpush1.msra.mxu0 0.0
      %1954 = vmatprep.subr.mxu0 0.0
      %1955 = vmatpush1.msra.mxu0 0.0
      %1956 = vmatprep.subr.mxu0 0.0
      %1957 = vmatpush1.msra.mxu0 0.0
      %1958 = vmatprep.subr.mxu0 0.0
      %1959 = vmatpush1.msra.mxu0 0.0
      %1960 = vmatprep.subr.mxu0 0.0
      %1961 = vmatpush1.msra.mxu0 0.0
      %1962 = vmatprep.subr.mxu0 0.0
      %1963 = vmatpush1.msra.mxu0 0.0
      %1964 = vmatprep.subr.mxu0 0.0
      %1965 = vmatpush1.msra.mxu0 0.0
      %1966 = vmatprep.subr.mxu0 0.0
      %1967 = vmatpush1.msra.mxu0 0.0
      %1968 = vmatprep.subr.mxu0 0.0
      %1969 = vmatpush1.msra.mxu0 0.0
      %1970 = vmatprep.mubr.f32.mxu0 0.0
      %1971 = vmatmul.mubr.f32.gmra.mrb[0].mxu0 %v1807
      %v1972 = vpop.f32.mrb[0].mxu0
      %v1973 = vadd.f32 %v1803, %v1972
      %v1974 = vpop.f32.mrb[0].mxu0
      %1975 = vmatprep.mubr.f32.mxu0 0.0
      %1976 = vmatmul.mubr.f32.gmra.mrb[0].mxu0 %v1810
      %v1977 = vpop.f32.mrb[0].mxu0
      %v1978 = vadd.f32 %v1803, %v1977
      %v1979 = vpop.f32.mrb[0].mxu0
      %1980 = vmatprep.mubr.f32.mxu0 0.0
      %1981 = vmatmul.mubr.f32.gmra.mrb[0].mxu0 %v1813
      %v1982 = vpop.f32.mrb[0].mxu0
      %v1983 = vadd.f32 %v1803, %v1982
      %v1984 = vpop.f32.mrb[0].mxu0
      %1985 = vmatprep.mubr.f32.mxu0 0.0
      %1986 = vmatmul.mubr.f32.gmra.mrb[0].mxu0 %v1816
      %v1987 = vpop.f32.mrb[0].mxu0
      %v1988 = vadd.f32 %v1803, %v1987
      %v1989 = vpop.f32.mrb[0].mxu0
      %1990 = vmatprep.mubr.f32.mxu0 0.0
      %1991 = vmatmul.mubr.f32.gmra.mrb[0].mxu0 %v1819
      %v1992 = vpop.f32.mrb[0].mxu0
      %v1993 = vadd.f32 %v1803, %v1992
      %v1994 = vpop.f32.mrb[0].mxu0
      %1995 = vmatprep.mubr.f32.mxu0 0.0
      %1996 = vmatmul.mubr.f32.gmra.mrb[0].mxu0 %v1822
      %v1997 = vpop.f32.mrb[0].mxu0
      %v1998 = vadd.f32 %v1803, %v1997
      %v1999 = vpop.f32.mrb[0].mxu0
      %2000 = vmatprep.mubr.f32.mxu0 0.0
      %2001 = vmatmul.mubr.f32.gmra.mrb[0].mxu0 %v1825
      %v2002 = vpop.f32.mrb[0].mxu0
      %v2003 = vadd.f32 %v1803, %v2002
      %v2004 = vpop.f32.mrb[0].mxu0
      %2005 = vmatprep.mubr.f32.mxu0 0.0
      %2006 = vmatmul.mubr.f32.gmra.mrb[0].mxu0 %v1828
      %v2007 = vpop.f32.mrb[0].mxu0
      %v2008 = vadd.f32 %v1803, %v2007
      %v2009 = vpop.f32.mrb[0].mxu0
      %2010 = vmatprep.mubr.f32.mxu0 0.0
      %2011 = vmatmul.mubr.f32.gmra.mrb[0].mxu0 %v1831
      %v2012 = vpop.f32.mrb[0].mxu0
      %v2013 = vadd.f32 %v1803, %v2012
      %v2014 = vpop.f32.mrb[0].mxu0
      %2015 = vmatprep.mubr.f32.mxu0 0.0
      %2016 = vmatmul.mubr.f32.gmra.mrb[0].mxu0 %v1834
      %v2017 = vpop.f32.mrb[0].mxu0
      %v2018 = vadd.f32 %v1803, %v2017
      %v2019 = vpop.f32.mrb[0].mxu0
      %2020 = vmatprep.mubr.f32.mxu0 0.0
      %2021 = vmatmul.mubr.f32.gmra.mrb[0].mxu0 %v1837
      %v2022 = vpop.f32.mrb[0].mxu0
      %v2023 = vadd.f32 %v1803, %v2022
      %v2024 = vpop.f32.mrb[0].mxu0
      %2025 = vmatprep.mubr.f32.mxu0 0.0
      %2026 = vmatmul.mubr.f32.gmra.mrb[0].mxu0 %v1840
      %v2027 = vpop.f32.mrb[0].mxu0
      %v2028 = vadd.f32 %v1803, %v2027
      %v2029 = vpop.f32.mrb[0].mxu0
      %2030 = vmatprep.mubr.f32.mxu0 0.0
      %2031 = vmatmul.mubr.f32.gmra.mrb[0].mxu0 %v1843
      %v2032 = vpop.f32.mrb[0].mxu0
      %v2033 = vadd.f32 %v1803, %v2032
      %v2034 = vpop.f32.mrb[0].mxu0
      %2035 = vmatprep.mubr.f32.mxu0 0.0
      %2036 = vmatmul.mubr.f32.gmra.mrb[0].mxu0 %v1846
      %v2037 = vpop.f32.mrb[0].mxu0
      %v2038 = vadd.f32 %v1803, %v2037
      %v2039 = vpop.f32.mrb[0].mxu0
      %2040 = vmatprep.mubr.f32.mxu0 0.0
      %2041 = vmatmul.mubr.f32.gmra.mrb[0].mxu0 %v1849
      %v2042 = vpop.f32.mrb[0].mxu0
      %v2043 = vadd.f32 %v1803, %v2042
      %v2044 = vpop.f32.mrb[0].mxu0
      %2045 = vmatprep.mubr.f32.mxu0 0.0
      %2046 = vmatmul.mubr.f32.gmra.mrb[0].mxu0 %v1852
      %v2047 = vpop.f32.mrb[0].mxu0
      %v2048 = vadd.f32 %v1803, %v2047
      %v2049 = vpop.f32.mrb[0].mxu0
      %2050 = vmatprep.mubr.f32.mxu0 0.0
      %2051 = vmatmul.mubr.f32.gmra.mrb[0].mxu0 %v1855
      %v2052 = vpop.f32.mrb[0].mxu0
      %v2053 = vadd.f32 %v1803, %v2052
      %v2054 = vpop.f32.mrb[0].mxu0
      %2055 = vmatprep.mubr.f32.mxu0 0.0
      %2056 = vmatmul.mubr.f32.gmra.mrb[0].mxu0 %v1858
      %v2057 = vpop.f32.mrb[0].mxu0
      %v2058 = vadd.f32 %v1803, %v2057
      %v2059 = vpop.f32.mrb[0].mxu0
      %2060 = vmatprep.mubr.f32.mxu0 0.0
      %2061 = vmatmul.mubr.f32.gmra.mrb[0].mxu0 %v1861
      %v2062 = vpop.f32.mrb[0].mxu0
      %v2063 = vadd.f32 %v1803, %v2062
      %v2064 = vpop.f32.mrb[0].mxu0
      %2065 = vmatprep.mubr.f32.mxu0 0.0
      %2066 = vmatmul.mubr.f32.gmra.mrb[0].mxu0 %v1864
      %v2067 = vpop.f32.mrb[0].mxu0
      %v2068 = vadd.f32 %v1803, %v2067
      %v2069 = vpop.f32.mrb[0].mxu0
      %2070 = vmatprep.mubr.f32.mxu0 0.0
      %2071 = vmatmul.mubr.f32.gmra.mrb[0].mxu0 %v1867
      %v2072 = vpop.f32.mrb[0].mxu0
      %v2073 = vadd.f32 %v1803, %v2072
      %v2074 = vpop.f32.mrb[0].mxu0
      %2075 = vmatprep.mubr.f32.mxu0 0.0
      %2076 = vmatmul.mubr.f32.gmra.mrb[0].mxu0 %v1870
      %v2077 = vpop.f32.mrb[0].mxu0
      %v2078 = vadd.f32 %v1803, %v2077
      %v2079 = vpop.f32.mrb[0].mxu0
      %2080 = vmatprep.mubr.f32.mxu0 0.0
      %2081 = vmatmul.mubr.f32.gmra.mrb[0].mxu0 %v1873
      %v2082 = vpop.f32.mrb[0].mxu0
      %v2083 = vadd.f32 %v1803, %v2082
      %v2084 = vpop.f32.mrb[0].mxu0
      %2085 = vmatprep.mubr.f32.mxu0 0.0
      %2086 = vmatmul.mubr.f32.gmra.mrb[0].mxu0 %v1876
      %v2087 = vpop.f32.mrb[0].mxu0
      %v2088 = vadd.f32 %v1803, %v2087
      %v2089 = vpop.f32.mrb[0].mxu0
      %2090 = vmatprep.mubr.f32.mxu0 0.0
      %2091 = vmatmul.mubr.f32.gmra.mrb[0].mxu0 %v1879
      %v2092 = vpop.f32.mrb[0].mxu0
      %v2093 = vadd.f32 %v1803, %v2092
      %v2094 = vpop.f32.mrb[0].mxu0
      %2095 = vmatprep.mubr.f32.mxu0 0.0
      %2096 = vmatmul.mubr.f32.gmra.mrb[0].mxu0 %v1882
      %v2097 = vpop.f32.mrb[0].mxu0
      %v2098 = vadd.f32 %v1803, %v2097
      %v2099 = vpop.f32.mrb[0].mxu0
      %2100 = vmatprep.mubr.f32.mxu0 0.0
      %2101 = vmatmul.mubr.f32.gmra.mrb[0].mxu0 %v1885
      %v2102 = vpop.f32.mrb[0].mxu0
      %v2103 = vadd.f32 %v1803, %v2102
      %v2104 = vpop.f32.mrb[0].mxu0
      %2105 = vmatprep.mubr.f32.mxu0 0.0
      %2106 = vmatmul.mubr.f32.gmra.mrb[0].mxu0 %v1888
      %v2107 = vpop.f32.mrb[0].mxu0
      %v2108 = vadd.f32 %v1803, %v2107
      %v2109 = vpop.f32.mrb[0].mxu0
      %2110 = vmatprep.mubr.f32.mxu0 0.0
      %2111 = vmatmul.mubr.f32.gmra.mrb[0].mxu0 %v1891
      %v2112 = vpop.f32.mrb[0].mxu0
      %v2113 = vadd.f32 %v1803, %v2112
      %v2114 = vpop.f32.mrb[0].mxu0
      %2115 = vmatprep.mubr.f32.mxu0 0.0
      %2116 = vmatmul.mubr.f32.gmra.mrb[0].mxu0 %v1894
      %v2117 = vpop.f32.mrb[0].mxu0
      %v2118 = vadd.f32 %v1803, %v2117
      %v2119 = vpop.f32.mrb[0].mxu0
      %2120 = vmatprep.mubr.f32.mxu0 0.0
      %2121 = vmatmul.mubr.f32.gmra.mrb[0].mxu0 %v1897
      %v2122 = vpop.f32.mrb[0].mxu0
      %v2123 = vadd.f32 %v1803, %v2122
      %v2124 = vpop.f32.mrb[0].mxu0
      %2125 = vmatprep.mubr.f32.mxu0 0.0
      %2126 = vmatmul.mubr.f32.gmra.mrb[0].mxu0 %v1900
      %v2127 = vpop.f32.mrb[0].mxu0
      %v2128 = vadd.f32 %v1803, %v2127
      %v2129 = vpop.f32.mrb[0].mxu0
      %2130 = vdwg.mxu0
      %v2131 = vmax.f32 %v1973, 0.0
      %v2132 = vmax.f32 %v1978, 0.0
      %v2133 = vmax.f32 %v1983, 0.0
      %v2134 = vmax.f32 %v1988, 0.0
      %v2135 = vmax.f32 %v1993, 0.0
      %v2136 = vmax.f32 %v1998, 0.0
      %v2137 = vmax.f32 %v2003, 0.0
      %v2138 = vmax.f32 %v2008, 0.0
      %v2139 = vmax.f32 %v2013, 0.0
      %v2140 = vmax.f32 %v2018, 0.0
      %v2141 = vmax.f32 %v2023, 0.0
      %v2142 = vmax.f32 %v2028, 0.0
      %v2143 = vmax.f32 %v2033, 0.0
      %v2144 = vmax.f32 %v2038, 0.0
      %v2145 = vmax.f32 %v2043, 0.0
      %v2146 = vmax.f32 %v2048, 0.0
      %v2147 = vmax.f32 %v2053, 0.0
      %v2148 = vmax.f32 %v2058, 0.0
      %v2149 = vmax.f32 %v2063, 0.0
      %v2150 = vmax.f32 %v2068, 0.0
      %v2151 = vmax.f32 %v2073, 0.0
      %v2152 = vmax.f32 %v2078, 0.0
      %v2153 = vmax.f32 %v2083, 0.0
      %v2154 = vmax.f32 %v2088, 0.0
      %v2155 = vmax.f32 %v2093, 0.0
      %v2156 = vmax.f32 %v2098, 0.0
      %v2157 = vmax.f32 %v2103, 0.0
      %v2158 = vmax.f32 %v2108, 0.0
      %v2159 = vmax.f32 %v2113, 0.0
      %v2160 = vmax.f32 %v2118, 0.0
      %v2161 = vmax.f32 %v2123, 0.0
      %v2162 = vmax.f32 %v2128, 0.0
      %s2163 = scalar_lea.vmem [#allocation2], 24
      %2164 = vst.msk [vmem:[%s2163 + $0x1] sm:$0xff] %vm387, %v2131
      %2165 = vst.msk [vmem:[%s2163 + $0x9] sm:$0xff] %vm387, %v2132
      %2166 = vst.msk [vmem:[%s2163 + $0x19] sm:$0xff] %vm387, %v2133
      %2167 = vst.msk [vmem:[%s2163 + $0x21] sm:$0xff] %vm387, %v2134
      %2168 = vst.msk [vmem:[%s2163 + $0x31] sm:$0xff] %vm387, %v2135
      %2169 = vst.msk [vmem:[%s2163 + $0x39] sm:$0xff] %vm387, %v2136
      %2170 = vst.msk [vmem:[%s2163 + $0x49] sm:$0xff] %vm387, %v2137
      %2171 = vst.msk [vmem:[%s2163 + $0x51] sm:$0xff] %vm387, %v2138
      %2172 = vst.msk [vmem:[%s2163 + $0x61] sm:$0xff] %vm387, %v2139
      %2173 = vst.msk [vmem:[%s2163 + $0x69] sm:$0xff] %vm387, %v2140
      %2174 = vst.msk [vmem:[%s2163 + $0x79] sm:$0xff] %vm387, %v2141
      %2175 = vst.msk [vmem:[%s2163 + $0x81] sm:$0xff] %vm387, %v2142
      %2176 = vst.msk [vmem:[%s2163 + $0x91] sm:$0xff] %vm387, %v2143
      %2177 = vst.msk [vmem:[%s2163 + $0x99] sm:$0xff] %vm387, %v2144
      %2178 = vst.msk [vmem:[%s2163 + $0xa9] sm:$0xff] %vm387, %v2145
      %2179 = vst.msk [vmem:[%s2163 + $0xb1] sm:$0xff] %vm387, %v2146
      %2180 = vst.msk [vmem:[%s2163 + $0xc1] sm:$0xff] %vm387, %v2147
      %2181 = vst.msk [vmem:[%s2163 + $0xc9] sm:$0xff] %vm387, %v2148
      %2182 = vst.msk [vmem:[%s2163 + $0xd9] sm:$0xff] %vm387, %v2149
      %2183 = vst.msk [vmem:[%s2163 + $0xe1] sm:$0xff] %vm387, %v2150
      %2184 = vst.msk [vmem:[%s2163 + $0xf1] sm:$0xff] %vm387, %v2151
      %2185 = vst.msk [vmem:[%s2163 + $0xf9] sm:$0xff] %vm387, %v2152
      %2186 = vst.msk [vmem:[%s2163 + $0x109] sm:$0xff] %vm387, %v2153
      %2187 = vst.msk [vmem:[%s2163 + $0x111] sm:$0xff] %vm387, %v2154
      %2188 = vst.msk [vmem:[%s2163 + $0x121] sm:$0xff] %vm387, %v2155
      %2189 = vst.msk [vmem:[%s2163 + $0x129] sm:$0xff] %vm387, %v2156
      %2190 = vst.msk [vmem:[%s2163 + $0x139] sm:$0xff] %vm387, %v2157
      %2191 = vst.msk [vmem:[%s2163 + $0x141] sm:$0xff] %vm387, %v2158
      %2192 = vst.msk [vmem:[%s2163 + $0x151] sm:$0xff] %vm387, %v2159
      %2193 = vst.msk [vmem:[%s2163 + $0x159] sm:$0xff] %vm387, %v2160
      %2194 = vst.msk [vmem:[%s2163 + $0x169] sm:$0xff] %vm387, %v2161
      %2195 = vst.msk [vmem:[%s2163 + $0x171] sm:$0xff] %vm387, %v2162
      %v2196 = vld [vmem:[#allocation2] sm:$0xff]
      %v2197 = vld [vmem:[#allocation2 + $0x8] sm:$0xff]
      %v2198 = vld [vmem:[#allocation2 + $0x10] sm:$0x3]
      %v2199 = vld [vmem:[#allocation2 + $0x18] sm:$0xff]
      %v2200 = vld [vmem:[#allocation2 + $0x20] sm:$0xff]
      %v2201 = vld [vmem:[#allocation2 + $0x28] sm:$0x3]
      %v2202 = vld [vmem:[#allocation2 + $0x30] sm:$0xff]
      %v2203 = vld [vmem:[#allocation2 + $0x38] sm:$0xff]
      %v2204 = vld [vmem:[#allocation2 + $0x40] sm:$0x3]
      %v2205 = vld [vmem:[#allocation2 + $0x48] sm:$0xff]
      %v2206 = vld [vmem:[#allocation2 + $0x50] sm:$0xff]
      %v2207 = vld [vmem:[#allocation2 + $0x58] sm:$0x3]
      %v2208 = vld [vmem:[#allocation2 + $0x60] sm:$0xff]
      %v2209 = vld [vmem:[#allocation2 + $0x68] sm:$0xff]
      %v2210 = vld [vmem:[#allocation2 + $0x70] sm:$0x3]
      %v2211 = vld [vmem:[#allocation2 + $0x78] sm:$0xff]
      %v2212 = vld [vmem:[#allocation2 + $0x80] sm:$0xff]
      %v2213 = vld [vmem:[#allocation2 + $0x88] sm:$0x3]
      %v2214 = vld [vmem:[#allocation2 + $0x90] sm:$0xff]
      %v2215 = vld [vmem:[#allocation2 + $0x98] sm:$0xff]
      %v2216 = vld [vmem:[#allocation2 + $0xa0] sm:$0x3]
      %v2217 = vld [vmem:[#allocation2 + $0xa8] sm:$0xff]
      %v2218 = vld [vmem:[#allocation2 + $0xb0] sm:$0xff]
      %v2219 = vld [vmem:[#allocation2 + $0xb8] sm:$0x3]
      %v2220 = vld [vmem:[#allocation2 + $0xc0] sm:$0xff]
      %v2221 = vld [vmem:[#allocation2 + $0xc8] sm:$0xff]
      %v2222 = vld [vmem:[#allocation2 + $0xd0] sm:$0x3]
      %v2223 = vld [vmem:[#allocation2 + $0xd8] sm:$0xff]
      %v2224 = vld [vmem:[#allocation2 + $0xe0] sm:$0xff]
      %v2225 = vld [vmem:[#allocation2 + $0xe8] sm:$0x3]
      %v2226 = vld [vmem:[#allocation2 + $0xf0] sm:$0xff]
      %v2227 = vld [vmem:[#allocation2 + $0xf8] sm:$0xff]
      %v2228 = vld [vmem:[#allocation2 + $0x100] sm:$0x3]
      %v2229 = vld [vmem:[#allocation2 + $0x108] sm:$0xff]
      %v2230 = vld [vmem:[#allocation2 + $0x110] sm:$0xff]
      %v2231 = vld [vmem:[#allocation2 + $0x118] sm:$0x3]
      %v2232 = vld [vmem:[#allocation2 + $0x120] sm:$0xff]
      %v2233 = vld [vmem:[#allocation2 + $0x128] sm:$0xff]
      %v2234 = vld [vmem:[#allocation2 + $0x130] sm:$0x3]
      %v2235 = vld [vmem:[#allocation2 + $0x138] sm:$0xff]
      %v2236 = vld [vmem:[#allocation2 + $0x140] sm:$0xff]
      %v2237 = vld [vmem:[#allocation2 + $0x148] sm:$0x3]
      %v2238 = vld [vmem:[#allocation2 + $0x150] sm:$0xff]
      %v2239 = vld [vmem:[#allocation2 + $0x158] sm:$0xff]
      %v2240 = vld [vmem:[#allocation2 + $0x160] sm:$0x3]
      %v2241 = vld [vmem:[#allocation2 + $0x168] sm:$0xff]
      %v2242 = vld [vmem:[#allocation2 + $0x170] sm:$0xff]
      %v2243 = vld [vmem:[#allocation2 + $0x178] sm:$0x3]
      %v2244 = vld [vmem:[#allocation2 + $0x180] sm:$0xff]
      %v2245 = vld [vmem:[#allocation2 + $0x188] sm:$0xff]
      %v2246 = vld [vmem:[#allocation2 + $0x190] sm:$0x3]
      %v2298 = vcombine.high %v2196, %v2196
      %v2300 = vunpack.c.l.s4 1983009808
      %v2301 = vunpack.c.0.s8 %v2300
      %v2302 = vlaneseq
      %v2303 = vshrl.u32 %v2302, 7
      %v2304 = vsub.s32 %v2301, %v2303
      %v2305 = vrot.slane %v2196, %v2304
      %v2307 = vunpack.c.l.s4 1983009808
      %v2308 = vunpack.c.0.s8 %v2307
      %v2309 = vlaneseq
      %v2310 = vshrl.u32 %v2309, 7
      %v2311 = vsub.s32 %v2308, %v2310
      %v2312 = vrot.slane %v2298, %v2311
      %v2313 = vcombine.high %v2305, %v2305
      %v2314 = vcombine.high %v2312, %v2312
      %v2315 = vcombine.high %v2197, %v2197
      %v2317 = vunpack.c.l.s4 1983009808
      %v2318 = vunpack.c.0.s8 %v2317
      %v2319 = vlaneseq
      %v2320 = vshrl.u32 %v2319, 7
      %v2321 = vsub.s32 %v2318, %v2320
      %v2322 = vrot.slane %v2197, %v2321
      %v2324 = vunpack.c.l.s4 1983009808
      %v2325 = vunpack.c.0.s8 %v2324
      %v2326 = vlaneseq
      %v2327 = vshrl.u32 %v2326, 7
      %v2328 = vsub.s32 %v2325, %v2327
      %v2329 = vrot.slane %v2315, %v2328
      %v2330 = vcombine.high %v2322, %v2322
      %v2331 = vcombine.high %v2329, %v2329
      %v2333 = vunpack.c.l.s4 1983009808
      %v2334 = vunpack.c.0.s8 %v2333
      %v2335 = vlaneseq
      %v2336 = vshrl.u32 %v2335, 7
      %v2337 = vsub.s32 %v2334, %v2336
      %v2338 = vrot.slane %v2198, %v2337
      %v2339 = vcombine.high %v2199, %v2199
      %v2341 = vunpack.c.l.s4 1983009808
      %v2342 = vunpack.c.0.s8 %v2341
      %v2343 = vlaneseq
      %v2344 = vshrl.u32 %v2343, 7
      %v2345 = vsub.s32 %v2342, %v2344
      %v2346 = vrot.slane %v2199, %v2345
      %v2348 = vunpack.c.l.s4 1983009808
      %v2349 = vunpack.c.0.s8 %v2348
      %v2350 = vlaneseq
      %v2351 = vshrl.u32 %v2350, 7
      %v2352 = vsub.s32 %v2349, %v2351
      %v2353 = vrot.slane %v2339, %v2352
      %v2354 = vcombine.high %v2346, %v2346
      %v2355 = vcombine.high %v2353, %v2353
      %v2356 = vcombine.high %v2200, %v2200
      %v2358 = vunpack.c.l.s4 1983009808
      %v2359 = vunpack.c.0.s8 %v2358
      %v2360 = vlaneseq
      %v2361 = vshrl.u32 %v2360, 7
      %v2362 = vsub.s32 %v2359, %v2361
      %v2363 = vrot.slane %v2200, %v2362
      %v2365 = vunpack.c.l.s4 1983009808
      %v2366 = vunpack.c.0.s8 %v2365
      %v2367 = vlaneseq
      %v2368 = vshrl.u32 %v2367, 7
      %v2369 = vsub.s32 %v2366, %v2368
      %v2370 = vrot.slane %v2356, %v2369
      %v2371 = vcombine.high %v2363, %v2363
      %v2372 = vcombine.high %v2370, %v2370
      %v2374 = vunpack.c.l.s4 1983009808
      %v2375 = vunpack.c.0.s8 %v2374
      %v2376 = vlaneseq
      %v2377 = vshrl.u32 %v2376, 7
      %v2378 = vsub.s32 %v2375, %v2377
      %v2379 = vrot.slane %v2201, %v2378
      %v2380 = vcombine.high %v2202, %v2202
      %v2382 = vunpack.c.l.s4 1983009808
      %v2383 = vunpack.c.0.s8 %v2382
      %v2384 = vlaneseq
      %v2385 = vshrl.u32 %v2384, 7
      %v2386 = vsub.s32 %v2383, %v2385
      %v2387 = vrot.slane %v2202, %v2386
      %v2389 = vunpack.c.l.s4 1983009808
      %v2390 = vunpack.c.0.s8 %v2389
      %v2391 = vlaneseq
      %v2392 = vshrl.u32 %v2391, 7
      %v2393 = vsub.s32 %v2390, %v2392
      %v2394 = vrot.slane %v2380, %v2393
      %v2395 = vcombine.high %v2387, %v2387
      %v2396 = vcombine.high %v2394, %v2394
      %v2397 = vcombine.high %v2203, %v2203
      %v2399 = vunpack.c.l.s4 1983009808
      %v2400 = vunpack.c.0.s8 %v2399
      %v2401 = vlaneseq
      %v2402 = vshrl.u32 %v2401, 7
      %v2403 = vsub.s32 %v2400, %v2402
      %v2404 = vrot.slane %v2203, %v2403
      %v2406 = vunpack.c.l.s4 1983009808
      %v2407 = vunpack.c.0.s8 %v2406
      %v2408 = vlaneseq
      %v2409 = vshrl.u32 %v2408, 7
      %v2410 = vsub.s32 %v2407, %v2409
      %v2411 = vrot.slane %v2397, %v2410
      %v2412 = vcombine.high %v2404, %v2404
      %v2413 = vcombine.high %v2411, %v2411
      %v2415 = vunpack.c.l.s4 1983009808
      %v2416 = vunpack.c.0.s8 %v2415
      %v2417 = vlaneseq
      %v2418 = vshrl.u32 %v2417, 7
      %v2419 = vsub.s32 %v2416, %v2418
      %v2420 = vrot.slane %v2204, %v2419
      %v2421 = vcombine.high %v2205, %v2205
      %v2423 = vunpack.c.l.s4 1983009808
      %v2424 = vunpack.c.0.s8 %v2423
      %v2425 = vlaneseq
      %v2426 = vshrl.u32 %v2425, 7
      %v2427 = vsub.s32 %v2424, %v2426
      %v2428 = vrot.slane %v2205, %v2427
      %v2430 = vunpack.c.l.s4 1983009808
      %v2431 = vunpack.c.0.s8 %v2430
      %v2432 = vlaneseq
      %v2433 = vshrl.u32 %v2432, 7
      %v2434 = vsub.s32 %v2431, %v2433
      %v2435 = vrot.slane %v2421, %v2434
      %v2436 = vcombine.high %v2428, %v2428
      %v2437 = vcombine.high %v2435, %v2435
      %v2438 = vcombine.high %v2206, %v2206
      %v2440 = vunpack.c.l.s4 1983009808
      %v2441 = vunpack.c.0.s8 %v2440
      %v2442 = vlaneseq
      %v2443 = vshrl.u32 %v2442, 7
      %v2444 = vsub.s32 %v2441, %v2443
      %v2445 = vrot.slane %v2206, %v2444
      %v2447 = vunpack.c.l.s4 1983009808
      %v2448 = vunpack.c.0.s8 %v2447
      %v2449 = vlaneseq
      %v2450 = vshrl.u32 %v2449, 7
      %v2451 = vsub.s32 %v2448, %v2450
      %v2452 = vrot.slane %v2438, %v2451
      %v2453 = vcombine.high %v2445, %v2445
      %v2454 = vcombine.high %v2452, %v2452
      %v2456 = vunpack.c.l.s4 1983009808
      %v2457 = vunpack.c.0.s8 %v2456
      %v2458 = vlaneseq
      %v2459 = vshrl.u32 %v2458, 7
      %v2460 = vsub.s32 %v2457, %v2459
      %v2461 = vrot.slane %v2207, %v2460
      %v2462 = vcombine.high %v2208, %v2208
      %v2464 = vunpack.c.l.s4 1983009808
      %v2465 = vunpack.c.0.s8 %v2464
      %v2466 = vlaneseq
      %v2467 = vshrl.u32 %v2466, 7
      %v2468 = vsub.s32 %v2465, %v2467
      %v2469 = vrot.slane %v2208, %v2468
      %v2471 = vunpack.c.l.s4 1983009808
      %v2472 = vunpack.c.0.s8 %v2471
      %v2473 = vlaneseq
      %v2474 = vshrl.u32 %v2473, 7
      %v2475 = vsub.s32 %v2472, %v2474
      %v2476 = vrot.slane %v2462, %v2475
      %v2477 = vcombine.high %v2469, %v2469
      %v2478 = vcombine.high %v2476, %v2476
      %v2479 = vcombine.high %v2209, %v2209
      %v2481 = vunpack.c.l.s4 1983009808
      %v2482 = vunpack.c.0.s8 %v2481
      %v2483 = vlaneseq
      %v2484 = vshrl.u32 %v2483, 7
      %v2485 = vsub.s32 %v2482, %v2484
      %v2486 = vrot.slane %v2209, %v2485
      %v2488 = vunpack.c.l.s4 1983009808
      %v2489 = vunpack.c.0.s8 %v2488
      %v2490 = vlaneseq
      %v2491 = vshrl.u32 %v2490, 7
      %v2492 = vsub.s32 %v2489, %v2491
      %v2493 = vrot.slane %v2479, %v2492
      %v2494 = vcombine.high %v2486, %v2486
      %v2495 = vcombine.high %v2493, %v2493
      %v2497 = vunpack.c.l.s4 1983009808
      %v2498 = vunpack.c.0.s8 %v2497
      %v2499 = vlaneseq
      %v2500 = vshrl.u32 %v2499, 7
      %v2501 = vsub.s32 %v2498, %v2500
      %v2502 = vrot.slane %v2210, %v2501
      %v2503 = vcombine.high %v2211, %v2211
      %v2505 = vunpack.c.l.s4 1983009808
      %v2506 = vunpack.c.0.s8 %v2505
      %v2507 = vlaneseq
      %v2508 = vshrl.u32 %v2507, 7
      %v2509 = vsub.s32 %v2506, %v2508
      %v2510 = vrot.slane %v2211, %v2509
      %v2512 = vunpack.c.l.s4 1983009808
      %v2513 = vunpack.c.0.s8 %v2512
      %v2514 = vlaneseq
      %v2515 = vshrl.u32 %v2514, 7
      %v2516 = vsub.s32 %v2513, %v2515
      %v2517 = vrot.slane %v2503, %v2516
      %v2518 = vcombine.high %v2510, %v2510
      %v2519 = vcombine.high %v2517, %v2517
      %v2520 = vcombine.high %v2212, %v2212
      %v2522 = vunpack.c.l.s4 1983009808
      %v2523 = vunpack.c.0.s8 %v2522
      %v2524 = vlaneseq
      %v2525 = vshrl.u32 %v2524, 7
      %v2526 = vsub.s32 %v2523, %v2525
      %v2527 = vrot.slane %v2212, %v2526
      %v2529 = vunpack.c.l.s4 1983009808
      %v2530 = vunpack.c.0.s8 %v2529
      %v2531 = vlaneseq
      %v2532 = vshrl.u32 %v2531, 7
      %v2533 = vsub.s32 %v2530, %v2532
      %v2534 = vrot.slane %v2520, %v2533
      %v2535 = vcombine.high %v2527, %v2527
      %v2536 = vcombine.high %v2534, %v2534
      %v2538 = vunpack.c.l.s4 1983009808
      %v2539 = vunpack.c.0.s8 %v2538
      %v2540 = vlaneseq
      %v2541 = vshrl.u32 %v2540, 7
      %v2542 = vsub.s32 %v2539, %v2541
      %v2543 = vrot.slane %v2213, %v2542
      %v2544 = vcombine.high %v2214, %v2214
      %v2546 = vunpack.c.l.s4 1983009808
      %v2547 = vunpack.c.0.s8 %v2546
      %v2548 = vlaneseq
      %v2549 = vshrl.u32 %v2548, 7
      %v2550 = vsub.s32 %v2547, %v2549
      %v2551 = vrot.slane %v2214, %v2550
      %v2553 = vunpack.c.l.s4 1983009808
      %v2554 = vunpack.c.0.s8 %v2553
      %v2555 = vlaneseq
      %v2556 = vshrl.u32 %v2555, 7
      %v2557 = vsub.s32 %v2554, %v2556
      %v2558 = vrot.slane %v2544, %v2557
      %v2559 = vcombine.high %v2551, %v2551
      %v2560 = vcombine.high %v2558, %v2558
      %v2561 = vcombine.high %v2215, %v2215
      %v2563 = vunpack.c.l.s4 1983009808
      %v2564 = vunpack.c.0.s8 %v2563
      %v2565 = vlaneseq
      %v2566 = vshrl.u32 %v2565, 7
      %v2567 = vsub.s32 %v2564, %v2566
      %v2568 = vrot.slane %v2215, %v2567
      %v2570 = vunpack.c.l.s4 1983009808
      %v2571 = vunpack.c.0.s8 %v2570
      %v2572 = vlaneseq
      %v2573 = vshrl.u32 %v2572, 7
      %v2574 = vsub.s32 %v2571, %v2573
      %v2575 = vrot.slane %v2561, %v2574
      %v2576 = vcombine.high %v2568, %v2568
      %v2577 = vcombine.high %v2575, %v2575
      %v2579 = vunpack.c.l.s4 1983009808
      %v2580 = vunpack.c.0.s8 %v2579
      %v2581 = vlaneseq
      %v2582 = vshrl.u32 %v2581, 7
      %v2583 = vsub.s32 %v2580, %v2582
      %v2584 = vrot.slane %v2216, %v2583
      %v2585 = vcombine.high %v2217, %v2217
      %v2587 = vunpack.c.l.s4 1983009808
      %v2588 = vunpack.c.0.s8 %v2587
      %v2589 = vlaneseq
      %v2590 = vshrl.u32 %v2589, 7
      %v2591 = vsub.s32 %v2588, %v2590
      %v2592 = vrot.slane %v2217, %v2591
      %v2594 = vunpack.c.l.s4 1983009808
      %v2595 = vunpack.c.0.s8 %v2594
      %v2596 = vlaneseq
      %v2597 = vshrl.u32 %v2596, 7
      %v2598 = vsub.s32 %v2595, %v2597
      %v2599 = vrot.slane %v2585, %v2598
      %v2600 = vcombine.high %v2592, %v2592
      %v2601 = vcombine.high %v2599, %v2599
      %v2602 = vcombine.high %v2218, %v2218
      %v2604 = vunpack.c.l.s4 1983009808
      %v2605 = vunpack.c.0.s8 %v2604
      %v2606 = vlaneseq
      %v2607 = vshrl.u32 %v2606, 7
      %v2608 = vsub.s32 %v2605, %v2607
      %v2609 = vrot.slane %v2218, %v2608
      %v2611 = vunpack.c.l.s4 1983009808
      %v2612 = vunpack.c.0.s8 %v2611
      %v2613 = vlaneseq
      %v2614 = vshrl.u32 %v2613, 7
      %v2615 = vsub.s32 %v2612, %v2614
      %v2616 = vrot.slane %v2602, %v2615
      %v2617 = vcombine.high %v2609, %v2609
      %v2618 = vcombine.high %v2616, %v2616
      %v2620 = vunpack.c.l.s4 1983009808
      %v2621 = vunpack.c.0.s8 %v2620
      %v2622 = vlaneseq
      %v2623 = vshrl.u32 %v2622, 7
      %v2624 = vsub.s32 %v2621, %v2623
      %v2625 = vrot.slane %v2219, %v2624
      %v2626 = vcombine.high %v2220, %v2220
      %v2628 = vunpack.c.l.s4 1983009808
      %v2629 = vunpack.c.0.s8 %v2628
      %v2630 = vlaneseq
      %v2631 = vshrl.u32 %v2630, 7
      %v2632 = vsub.s32 %v2629, %v2631
      %v2633 = vrot.slane %v2220, %v2632
      %v2635 = vunpack.c.l.s4 1983009808
      %v2636 = vunpack.c.0.s8 %v2635
      %v2637 = vlaneseq
      %v2638 = vshrl.u32 %v2637, 7
      %v2639 = vsub.s32 %v2636, %v2638
      %v2640 = vrot.slane %v2626, %v2639
      %v2641 = vcombine.high %v2633, %v2633
      %v2642 = vcombine.high %v2640, %v2640
      %v2643 = vcombine.high %v2221, %v2221
      %v2645 = vunpack.c.l.s4 1983009808
      %v2646 = vunpack.c.0.s8 %v2645
      %v2647 = vlaneseq
      %v2648 = vshrl.u32 %v2647, 7
      %v2649 = vsub.s32 %v2646, %v2648
      %v2650 = vrot.slane %v2221, %v2649
      %v2652 = vunpack.c.l.s4 1983009808
      %v2653 = vunpack.c.0.s8 %v2652
      %v2654 = vlaneseq
      %v2655 = vshrl.u32 %v2654, 7
      %v2656 = vsub.s32 %v2653, %v2655
      %v2657 = vrot.slane %v2643, %v2656
      %v2658 = vcombine.high %v2650, %v2650
      %v2659 = vcombine.high %v2657, %v2657
      %v2661 = vunpack.c.l.s4 1983009808
      %v2662 = vunpack.c.0.s8 %v2661
      %v2663 = vlaneseq
      %v2664 = vshrl.u32 %v2663, 7
      %v2665 = vsub.s32 %v2662, %v2664
      %v2666 = vrot.slane %v2222, %v2665
      %v2667 = vcombine.high %v2223, %v2223
      %v2669 = vunpack.c.l.s4 1983009808
      %v2670 = vunpack.c.0.s8 %v2669
      %v2671 = vlaneseq
      %v2672 = vshrl.u32 %v2671, 7
      %v2673 = vsub.s32 %v2670, %v2672
      %v2674 = vrot.slane %v2223, %v2673
      %v2676 = vunpack.c.l.s4 1983009808
      %v2677 = vunpack.c.0.s8 %v2676
      %v2678 = vlaneseq
      %v2679 = vshrl.u32 %v2678, 7
      %v2680 = vsub.s32 %v2677, %v2679
      %v2681 = vrot.slane %v2667, %v2680
      %v2682 = vcombine.high %v2674, %v2674
      %v2683 = vcombine.high %v2681, %v2681
      %v2684 = vcombine.high %v2224, %v2224
      %v2686 = vunpack.c.l.s4 1983009808
      %v2687 = vunpack.c.0.s8 %v2686
      %v2688 = vlaneseq
      %v2689 = vshrl.u32 %v2688, 7
      %v2690 = vsub.s32 %v2687, %v2689
      %v2691 = vrot.slane %v2224, %v2690
      %v2693 = vunpack.c.l.s4 1983009808
      %v2694 = vunpack.c.0.s8 %v2693
      %v2695 = vlaneseq
      %v2696 = vshrl.u32 %v2695, 7
      %v2697 = vsub.s32 %v2694, %v2696
      %v2698 = vrot.slane %v2684, %v2697
      %v2699 = vcombine.high %v2691, %v2691
      %v2700 = vcombine.high %v2698, %v2698
      %v2702 = vunpack.c.l.s4 1983009808
      %v2703 = vunpack.c.0.s8 %v2702
      %v2704 = vlaneseq
      %v2705 = vshrl.u32 %v2704, 7
      %v2706 = vsub.s32 %v2703, %v2705
      %v2707 = vrot.slane %v2225, %v2706
      %v2708 = vcombine.high %v2226, %v2226
      %v2710 = vunpack.c.l.s4 1983009808
      %v2711 = vunpack.c.0.s8 %v2710
      %v2712 = vlaneseq
      %v2713 = vshrl.u32 %v2712, 7
      %v2714 = vsub.s32 %v2711, %v2713
      %v2715 = vrot.slane %v2226, %v2714
      %v2717 = vunpack.c.l.s4 1983009808
      %v2718 = vunpack.c.0.s8 %v2717
      %v2719 = vlaneseq
      %v2720 = vshrl.u32 %v2719, 7
      %v2721 = vsub.s32 %v2718, %v2720
      %v2722 = vrot.slane %v2708, %v2721
      %v2723 = vcombine.high %v2715, %v2715
      %v2724 = vcombine.high %v2722, %v2722
      %v2725 = vcombine.high %v2227, %v2227
      %v2727 = vunpack.c.l.s4 1983009808
      %v2728 = vunpack.c.0.s8 %v2727
      %v2729 = vlaneseq
      %v2730 = vshrl.u32 %v2729, 7
      %v2731 = vsub.s32 %v2728, %v2730
      %v2732 = vrot.slane %v2227, %v2731
      %v2734 = vunpack.c.l.s4 1983009808
      %v2735 = vunpack.c.0.s8 %v2734
      %v2736 = vlaneseq
      %v2737 = vshrl.u32 %v2736, 7
      %v2738 = vsub.s32 %v2735, %v2737
      %v2739 = vrot.slane %v2725, %v2738
      %v2740 = vcombine.high %v2732, %v2732
      %v2741 = vcombine.high %v2739, %v2739
      %v2743 = vunpack.c.l.s4 1983009808
      %v2744 = vunpack.c.0.s8 %v2743
      %v2745 = vlaneseq
      %v2746 = vshrl.u32 %v2745, 7
      %v2747 = vsub.s32 %v2744, %v2746
      %v2748 = vrot.slane %v2228, %v2747
      %v2749 = vcombine.high %v2229, %v2229
      %v2751 = vunpack.c.l.s4 1983009808
      %v2752 = vunpack.c.0.s8 %v2751
      %v2753 = vlaneseq
      %v2754 = vshrl.u32 %v2753, 7
      %v2755 = vsub.s32 %v2752, %v2754
      %v2756 = vrot.slane %v2229, %v2755
      %v2758 = vunpack.c.l.s4 1983009808
      %v2759 = vunpack.c.0.s8 %v2758
      %v2760 = vlaneseq
      %v2761 = vshrl.u32 %v2760, 7
      %v2762 = vsub.s32 %v2759, %v2761
      %v2763 = vrot.slane %v2749, %v2762
      %v2764 = vcombine.high %v2756, %v2756
      %v2765 = vcombine.high %v2763, %v2763
      %v2766 = vcombine.high %v2230, %v2230
      %v2768 = vunpack.c.l.s4 1983009808
      %v2769 = vunpack.c.0.s8 %v2768
      %v2770 = vlaneseq
      %v2771 = vshrl.u32 %v2770, 7
      %v2772 = vsub.s32 %v2769, %v2771
      %v2773 = vrot.slane %v2230, %v2772
      %v2775 = vunpack.c.l.s4 1983009808
      %v2776 = vunpack.c.0.s8 %v2775
      %v2777 = vlaneseq
      %v2778 = vshrl.u32 %v2777, 7
      %v2779 = vsub.s32 %v2776, %v2778
      %v2780 = vrot.slane %v2766, %v2779
      %v2781 = vcombine.high %v2773, %v2773
      %v2782 = vcombine.high %v2780, %v2780
      %v2784 = vunpack.c.l.s4 1983009808
      %v2785 = vunpack.c.0.s8 %v2784
      %v2786 = vlaneseq
      %v2787 = vshrl.u32 %v2786, 7
      %v2788 = vsub.s32 %v2785, %v2787
      %v2789 = vrot.slane %v2231, %v2788
      %v2790 = vcombine.high %v2232, %v2232
      %v2792 = vunpack.c.l.s4 1983009808
      %v2793 = vunpack.c.0.s8 %v2792
      %v2794 = vlaneseq
      %v2795 = vshrl.u32 %v2794, 7
      %v2796 = vsub.s32 %v2793, %v2795
      %v2797 = vrot.slane %v2232, %v2796
      %v2799 = vunpack.c.l.s4 1983009808
      %v2800 = vunpack.c.0.s8 %v2799
      %v2801 = vlaneseq
      %v2802 = vshrl.u32 %v2801, 7
      %v2803 = vsub.s32 %v2800, %v2802
      %v2804 = vrot.slane %v2790, %v2803
      %v2805 = vcombine.high %v2797, %v2797
      %v2806 = vcombine.high %v2804, %v2804
      %v2807 = vcombine.high %v2233, %v2233
      %v2809 = vunpack.c.l.s4 1983009808
      %v2810 = vunpack.c.0.s8 %v2809
      %v2811 = vlaneseq
      %v2812 = vshrl.u32 %v2811, 7
      %v2813 = vsub.s32 %v2810, %v2812
      %v2814 = vrot.slane %v2233, %v2813
      %v2816 = vunpack.c.l.s4 1983009808
      %v2817 = vunpack.c.0.s8 %v2816
      %v2818 = vlaneseq
      %v2819 = vshrl.u32 %v2818, 7
      %v2820 = vsub.s32 %v2817, %v2819
      %v2821 = vrot.slane %v2807, %v2820
      %v2822 = vcombine.high %v2814, %v2814
      %v2823 = vcombine.high %v2821, %v2821
      %v2825 = vunpack.c.l.s4 1983009808
      %v2826 = vunpack.c.0.s8 %v2825
      %v2827 = vlaneseq
      %v2828 = vshrl.u32 %v2827, 7
      %v2829 = vsub.s32 %v2826, %v2828
      %v2830 = vrot.slane %v2234, %v2829
      %v2831 = vcombine.high %v2235, %v2235
      %v2833 = vunpack.c.l.s4 1983009808
      %v2834 = vunpack.c.0.s8 %v2833
      %v2835 = vlaneseq
      %v2836 = vshrl.u32 %v2835, 7
      %v2837 = vsub.s32 %v2834, %v2836
      %v2838 = vrot.slane %v2235, %v2837
      %v2840 = vunpack.c.l.s4 1983009808
      %v2841 = vunpack.c.0.s8 %v2840
      %v2842 = vlaneseq
      %v2843 = vshrl.u32 %v2842, 7
      %v2844 = vsub.s32 %v2841, %v2843
      %v2845 = vrot.slane %v2831, %v2844
      %v2846 = vcombine.high %v2838, %v2838
      %v2847 = vcombine.high %v2845, %v2845
      %v2848 = vcombine.high %v2236, %v2236
      %v2850 = vunpack.c.l.s4 1983009808
      %v2851 = vunpack.c.0.s8 %v2850
      %v2852 = vlaneseq
      %v2853 = vshrl.u32 %v2852, 7
      %v2854 = vsub.s32 %v2851, %v2853
      %v2855 = vrot.slane %v2236, %v2854
      %v2857 = vunpack.c.l.s4 1983009808
      %v2858 = vunpack.c.0.s8 %v2857
      %v2859 = vlaneseq
      %v2860 = vshrl.u32 %v2859, 7
      %v2861 = vsub.s32 %v2858, %v2860
      %v2862 = vrot.slane %v2848, %v2861
      %v2863 = vcombine.high %v2855, %v2855
      %v2864 = vcombine.high %v2862, %v2862
      %v2866 = vunpack.c.l.s4 1983009808
      %v2867 = vunpack.c.0.s8 %v2866
      %v2868 = vlaneseq
      %v2869 = vshrl.u32 %v2868, 7
      %v2870 = vsub.s32 %v2867, %v2869
      %v2871 = vrot.slane %v2237, %v2870
      %v2872 = vcombine.high %v2238, %v2238
      %v2874 = vunpack.c.l.s4 1983009808
      %v2875 = vunpack.c.0.s8 %v2874
      %v2876 = vlaneseq
      %v2877 = vshrl.u32 %v2876, 7
      %v2878 = vsub.s32 %v2875, %v2877
      %v2879 = vrot.slane %v2238, %v2878
      %v2881 = vunpack.c.l.s4 1983009808
      %v2882 = vunpack.c.0.s8 %v2881
      %v2883 = vlaneseq
      %v2884 = vshrl.u32 %v2883, 7
      %v2885 = vsub.s32 %v2882, %v2884
      %v2886 = vrot.slane %v2872, %v2885
      %v2887 = vcombine.high %v2879, %v2879
      %v2888 = vcombine.high %v2886, %v2886
      %v2889 = vcombine.high %v2239, %v2239
      %v2891 = vunpack.c.l.s4 1983009808
      %v2892 = vunpack.c.0.s8 %v2891
      %v2893 = vlaneseq
      %v2894 = vshrl.u32 %v2893, 7
      %v2895 = vsub.s32 %v2892, %v2894
      %v2896 = vrot.slane %v2239, %v2895
      %v2898 = vunpack.c.l.s4 1983009808
      %v2899 = vunpack.c.0.s8 %v2898
      %v2900 = vlaneseq
      %v2901 = vshrl.u32 %v2900, 7
      %v2902 = vsub.s32 %v2899, %v2901
      %v2903 = vrot.slane %v2889, %v2902
      %v2904 = vcombine.high %v2896, %v2896
      %v2905 = vcombine.high %v2903, %v2903
      %v2907 = vunpack.c.l.s4 1983009808
      %v2908 = vunpack.c.0.s8 %v2907
      %v2909 = vlaneseq
      %v2910 = vshrl.u32 %v2909, 7
      %v2911 = vsub.s32 %v2908, %v2910
      %v2912 = vrot.slane %v2240, %v2911
      %v2913 = vcombine.high %v2241, %v2241
      %v2915 = vunpack.c.l.s4 1983009808
      %v2916 = vunpack.c.0.s8 %v2915
      %v2917 = vlaneseq
      %v2918 = vshrl.u32 %v2917, 7
      %v2919 = vsub.s32 %v2916, %v2918
      %v2920 = vrot.slane %v2241, %v2919
      %v2922 = vunpack.c.l.s4 1983009808
      %v2923 = vunpack.c.0.s8 %v2922
      %v2924 = vlaneseq
      %v2925 = vshrl.u32 %v2924, 7
      %v2926 = vsub.s32 %v2923, %v2925
      %v2927 = vrot.slane %v2913, %v2926
      %v2928 = vcombine.high %v2920, %v2920
      %v2929 = vcombine.high %v2927, %v2927
      %v2930 = vcombine.high %v2242, %v2242
      %v2932 = vunpack.c.l.s4 1983009808
      %v2933 = vunpack.c.0.s8 %v2932
      %v2934 = vlaneseq
      %v2935 = vshrl.u32 %v2934, 7
      %v2936 = vsub.s32 %v2933, %v2935
      %v2937 = vrot.slane %v2242, %v2936
      %v2939 = vunpack.c.l.s4 1983009808
      %v2940 = vunpack.c.0.s8 %v2939
      %v2941 = vlaneseq
      %v2942 = vshrl.u32 %v2941, 7
      %v2943 = vsub.s32 %v2940, %v2942
      %v2944 = vrot.slane %v2930, %v2943
      %v2945 = vcombine.high %v2937, %v2937
      %v2946 = vcombine.high %v2944, %v2944
      %v2948 = vunpack.c.l.s4 1983009808
      %v2949 = vunpack.c.0.s8 %v2948
      %v2950 = vlaneseq
      %v2951 = vshrl.u32 %v2950, 7
      %v2952 = vsub.s32 %v2949, %v2951
      %v2953 = vrot.slane %v2243, %v2952
      %v2954 = vcombine.high %v2244, %v2244
      %v2956 = vunpack.c.l.s4 1983009808
      %v2957 = vunpack.c.0.s8 %v2956
      %v2958 = vlaneseq
      %v2959 = vshrl.u32 %v2958, 7
      %v2960 = vsub.s32 %v2957, %v2959
      %v2961 = vrot.slane %v2244, %v2960
      %v2963 = vunpack.c.l.s4 1983009808
      %v2964 = vunpack.c.0.s8 %v2963
      %v2965 = vlaneseq
      %v2966 = vshrl.u32 %v2965, 7
      %v2967 = vsub.s32 %v2964, %v2966
      %v2968 = vrot.slane %v2954, %v2967
      %v2969 = vcombine.high %v2961, %v2961
      %v2970 = vcombine.high %v2968, %v2968
      %v2971 = vcombine.high %v2245, %v2245
      %v2973 = vunpack.c.l.s4 1983009808
      %v2974 = vunpack.c.0.s8 %v2973
      %v2975 = vlaneseq
      %v2976 = vshrl.u32 %v2975, 7
      %v2977 = vsub.s32 %v2974, %v2976
      %v2978 = vrot.slane %v2245, %v2977
      %v2980 = vunpack.c.l.s4 1983009808
      %v2981 = vunpack.c.0.s8 %v2980
      %v2982 = vlaneseq
      %v2983 = vshrl.u32 %v2982, 7
      %v2984 = vsub.s32 %v2981, %v2983
      %v2985 = vrot.slane %v2971, %v2984
      %v2986 = vcombine.high %v2978, %v2978
      %v2987 = vcombine.high %v2985, %v2985
      %v2989 = vunpack.c.l.s4 1983009808
      %v2990 = vunpack.c.0.s8 %v2989
      %v2991 = vlaneseq
      %v2992 = vshrl.u32 %v2991, 7
      %v2993 = vsub.s32 %v2990, %v2992
      %v2994 = vrot.slane %v2246, %v2993
      %v2995 = vlaneseq
      %v2996 = vshrl.u32 %v2995, 7
      %v2997 = vsub.s32 0, %v2996
      %v2998 = vrot.slane %v2305, %v2997
      %v2999 = vlaneseq
      %v3000 = vshrl.u32 %v2999, 7
      %v3001 = vsub.s32 0, %v3000
      %v3002 = vrot.slane %v2313, %v3001
      %v3003 = vlaneseq
      %v3004 = vshrl.u32 %v3003, 7
      %v3005 = vsub.s32 0, %v3004
      %v3006 = vrot.slane %v2312, %v3005
      %v3007 = vlaneseq
      %v3008 = vshrl.u32 %v3007, 7
      %v3009 = vsub.s32 0, %v3008
      %v3010 = vrot.slane %v2314, %v3009
      %v3011 = vlaneseq
      %v3012 = vshrl.u32 %v3011, 7
      %v3013 = vsub.s32 0, %v3012
      %v3014 = vrot.slane %v2322, %v3013
      %v3015 = vlaneseq
      %v3016 = vshrl.u32 %v3015, 7
      %v3017 = vsub.s32 0, %v3016
      %v3018 = vrot.slane %v2330, %v3017
      %v3019 = vlaneseq
      %v3020 = vshrl.u32 %v3019, 7
      %v3021 = vsub.s32 0, %v3020
      %v3022 = vrot.slane %v2329, %v3021
      %v3023 = vlaneseq
      %v3024 = vshrl.u32 %v3023, 7
      %v3025 = vsub.s32 0, %v3024
      %v3026 = vrot.slane %v2331, %v3025
      %v3027 = vlaneseq
      %v3028 = vshrl.u32 %v3027, 7
      %v3029 = vsub.s32 0, %v3028
      %v3030 = vrot.slane %v2387, %v3029
      %v3031 = vlaneseq
      %v3032 = vshrl.u32 %v3031, 7
      %v3033 = vsub.s32 0, %v3032
      %v3034 = vrot.slane %v2395, %v3033
      %v3035 = vlaneseq
      %v3036 = vshrl.u32 %v3035, 7
      %v3037 = vsub.s32 0, %v3036
      %v3038 = vrot.slane %v2394, %v3037
      %v3039 = vlaneseq
      %v3040 = vshrl.u32 %v3039, 7
      %v3041 = vsub.s32 0, %v3040
      %v3042 = vrot.slane %v2396, %v3041
      %v3043 = vlaneseq
      %v3044 = vshrl.u32 %v3043, 7
      %v3045 = vsub.s32 0, %v3044
      %v3046 = vrot.slane %v2404, %v3045
      %v3047 = vlaneseq
      %v3048 = vshrl.u32 %v3047, 7
      %v3049 = vsub.s32 0, %v3048
      %v3050 = vrot.slane %v2412, %v3049
      %v3051 = vlaneseq
      %v3052 = vshrl.u32 %v3051, 7
      %v3053 = vsub.s32 0, %v3052
      %v3054 = vrot.slane %v2411, %v3053
      %v3055 = vlaneseq
      %v3056 = vshrl.u32 %v3055, 7
      %v3057 = vsub.s32 0, %v3056
      %v3058 = vrot.slane %v2413, %v3057
      %v3059 = vlaneseq
      %v3060 = vshrl.u32 %v3059, 7
      %v3061 = vsub.s32 0, %v3060
      %v3062 = vrot.slane %v2469, %v3061
      %v3063 = vlaneseq
      %v3064 = vshrl.u32 %v3063, 7
      %v3065 = vsub.s32 0, %v3064
      %v3066 = vrot.slane %v2477, %v3065
      %v3067 = vlaneseq
      %v3068 = vshrl.u32 %v3067, 7
      %v3069 = vsub.s32 0, %v3068
      %v3070 = vrot.slane %v2476, %v3069
      %v3071 = vlaneseq
      %v3072 = vshrl.u32 %v3071, 7
      %v3073 = vsub.s32 0, %v3072
      %v3074 = vrot.slane %v2478, %v3073
      %v3075 = vlaneseq
      %v3076 = vshrl.u32 %v3075, 7
      %v3077 = vsub.s32 0, %v3076
      %v3078 = vrot.slane %v2486, %v3077
      %v3079 = vlaneseq
      %v3080 = vshrl.u32 %v3079, 7
      %v3081 = vsub.s32 0, %v3080
      %v3082 = vrot.slane %v2494, %v3081
      %v3083 = vlaneseq
      %v3084 = vshrl.u32 %v3083, 7
      %v3085 = vsub.s32 0, %v3084
      %v3086 = vrot.slane %v2493, %v3085
      %v3087 = vlaneseq
      %v3088 = vshrl.u32 %v3087, 7
      %v3089 = vsub.s32 0, %v3088
      %v3090 = vrot.slane %v2495, %v3089
      %v3091 = vlaneseq
      %v3092 = vshrl.u32 %v3091, 7
      %v3093 = vsub.s32 0, %v3092
      %v3094 = vrot.slane %v2551, %v3093
      %v3095 = vlaneseq
      %v3096 = vshrl.u32 %v3095, 7
      %v3097 = vsub.s32 0, %v3096
      %v3098 = vrot.slane %v2559, %v3097
      %v3099 = vlaneseq
      %v3100 = vshrl.u32 %v3099, 7
      %v3101 = vsub.s32 0, %v3100
      %v3102 = vrot.slane %v2558, %v3101
      %v3103 = vlaneseq
      %v3104 = vshrl.u32 %v3103, 7
      %v3105 = vsub.s32 0, %v3104
      %v3106 = vrot.slane %v2560, %v3105
      %v3107 = vlaneseq
      %v3108 = vshrl.u32 %v3107, 7
      %v3109 = vsub.s32 0, %v3108
      %v3110 = vrot.slane %v2568, %v3109
      %v3111 = vlaneseq
      %v3112 = vshrl.u32 %v3111, 7
      %v3113 = vsub.s32 0, %v3112
      %v3114 = vrot.slane %v2576, %v3113
      %v3115 = vlaneseq
      %v3116 = vshrl.u32 %v3115, 7
      %v3117 = vsub.s32 0, %v3116
      %v3118 = vrot.slane %v2575, %v3117
      %v3119 = vlaneseq
      %v3120 = vshrl.u32 %v3119, 7
      %v3121 = vsub.s32 0, %v3120
      %v3122 = vrot.slane %v2577, %v3121
      %v3123 = vlaneseq
      %v3124 = vshrl.u32 %v3123, 7
      %v3125 = vsub.s32 0, %v3124
      %v3126 = vrot.slane %v2633, %v3125
      %v3127 = vlaneseq
      %v3128 = vshrl.u32 %v3127, 7
      %v3129 = vsub.s32 0, %v3128
      %v3130 = vrot.slane %v2641, %v3129
      %v3131 = vlaneseq
      %v3132 = vshrl.u32 %v3131, 7
      %v3133 = vsub.s32 0, %v3132
      %v3134 = vrot.slane %v2640, %v3133
      %v3135 = vlaneseq
      %v3136 = vshrl.u32 %v3135, 7
      %v3137 = vsub.s32 0, %v3136
      %v3138 = vrot.slane %v2642, %v3137
      %v3139 = vlaneseq
      %v3140 = vshrl.u32 %v3139, 7
      %v3141 = vsub.s32 0, %v3140
      %v3142 = vrot.slane %v2650, %v3141
      %v3143 = vlaneseq
      %v3144 = vshrl.u32 %v3143, 7
      %v3145 = vsub.s32 0, %v3144
      %v3146 = vrot.slane %v2658, %v3145
      %v3147 = vlaneseq
      %v3148 = vshrl.u32 %v3147, 7
      %v3149 = vsub.s32 0, %v3148
      %v3150 = vrot.slane %v2657, %v3149
      %v3151 = vlaneseq
      %v3152 = vshrl.u32 %v3151, 7
      %v3153 = vsub.s32 0, %v3152
      %v3154 = vrot.slane %v2659, %v3153
      %v3155 = vlaneseq
      %v3156 = vshrl.u32 %v3155, 7
      %v3157 = vsub.s32 0, %v3156
      %v3158 = vrot.slane %v2715, %v3157
      %v3159 = vlaneseq
      %v3160 = vshrl.u32 %v3159, 7
      %v3161 = vsub.s32 0, %v3160
      %v3162 = vrot.slane %v2723, %v3161
      %v3163 = vlaneseq
      %v3164 = vshrl.u32 %v3163, 7
      %v3165 = vsub.s32 0, %v3164
      %v3166 = vrot.slane %v2722, %v3165
      %v3167 = vlaneseq
      %v3168 = vshrl.u32 %v3167, 7
      %v3169 = vsub.s32 0, %v3168
      %v3170 = vrot.slane %v2724, %v3169
      %v3171 = vlaneseq
      %v3172 = vshrl.u32 %v3171, 7
      %v3173 = vsub.s32 0, %v3172
      %v3174 = vrot.slane %v2732, %v3173
      %v3175 = vlaneseq
      %v3176 = vshrl.u32 %v3175, 7
      %v3177 = vsub.s32 0, %v3176
      %v3178 = vrot.slane %v2740, %v3177
      %v3179 = vlaneseq
      %v3180 = vshrl.u32 %v3179, 7
      %v3181 = vsub.s32 0, %v3180
      %v3182 = vrot.slane %v2739, %v3181
      %v3183 = vlaneseq
      %v3184 = vshrl.u32 %v3183, 7
      %v3185 = vsub.s32 0, %v3184
      %v3186 = vrot.slane %v2741, %v3185
      %v3187 = vlaneseq
      %v3188 = vshrl.u32 %v3187, 7
      %v3189 = vsub.s32 0, %v3188
      %v3190 = vrot.slane %v2797, %v3189
      %v3191 = vlaneseq
      %v3192 = vshrl.u32 %v3191, 7
      %v3193 = vsub.s32 0, %v3192
      %v3194 = vrot.slane %v2805, %v3193
      %v3195 = vlaneseq
      %v3196 = vshrl.u32 %v3195, 7
      %v3197 = vsub.s32 0, %v3196
      %v3198 = vrot.slane %v2804, %v3197
      %v3199 = vlaneseq
      %v3200 = vshrl.u32 %v3199, 7
      %v3201 = vsub.s32 0, %v3200
      %v3202 = vrot.slane %v2806, %v3201
      %v3203 = vlaneseq
      %v3204 = vshrl.u32 %v3203, 7
      %v3205 = vsub.s32 0, %v3204
      %v3206 = vrot.slane %v2814, %v3205
      %v3207 = vlaneseq
      %v3208 = vshrl.u32 %v3207, 7
      %v3209 = vsub.s32 0, %v3208
      %v3210 = vrot.slane %v2822, %v3209
      %v3211 = vlaneseq
      %v3212 = vshrl.u32 %v3211, 7
      %v3213 = vsub.s32 0, %v3212
      %v3214 = vrot.slane %v2821, %v3213
      %v3215 = vlaneseq
      %v3216 = vshrl.u32 %v3215, 7
      %v3217 = vsub.s32 0, %v3216
      %v3218 = vrot.slane %v2823, %v3217
      %v3219 = vlaneseq
      %v3220 = vshrl.u32 %v3219, 7
      %v3221 = vsub.s32 0, %v3220
      %v3222 = vrot.slane %v2879, %v3221
      %v3223 = vlaneseq
      %v3224 = vshrl.u32 %v3223, 7
      %v3225 = vsub.s32 0, %v3224
      %v3226 = vrot.slane %v2887, %v3225
      %v3227 = vlaneseq
      %v3228 = vshrl.u32 %v3227, 7
      %v3229 = vsub.s32 0, %v3228
      %v3230 = vrot.slane %v2886, %v3229
      %v3231 = vlaneseq
      %v3232 = vshrl.u32 %v3231, 7
      %v3233 = vsub.s32 0, %v3232
      %v3234 = vrot.slane %v2888, %v3233
      %v3235 = vlaneseq
      %v3236 = vshrl.u32 %v3235, 7
      %v3237 = vsub.s32 0, %v3236
      %v3238 = vrot.slane %v2896, %v3237
      %v3239 = vlaneseq
      %v3240 = vshrl.u32 %v3239, 7
      %v3241 = vsub.s32 0, %v3240
      %v3242 = vrot.slane %v2904, %v3241
      %v3243 = vlaneseq
      %v3244 = vshrl.u32 %v3243, 7
      %v3245 = vsub.s32 0, %v3244
      %v3246 = vrot.slane %v2903, %v3245
      %v3247 = vlaneseq
      %v3248 = vshrl.u32 %v3247, 7
      %v3249 = vsub.s32 0, %v3248
      %v3250 = vrot.slane %v2905, %v3249
      %vm3251 = vcmask 1041409
      %v3252 = vsel %vm3251, %v3002, %v2998
      %vm3253 = vcmask 1042434
      %v3254 = vsel %vm3253, %v3006, %v3252
      %vm3255 = vcmask 1043459
      %v3256 = vsel %vm3255, %v3010, %v3254
      %vm3257 = vcmask 1044484
      %v3258 = vsel %vm3257, %v3014, %v3256
      %vm3259 = vcmask 1045509
      %v3260 = vsel %vm3259, %v3018, %v3258
      %vm3261 = vcmask 1046534
      %v3262 = vsel %vm3261, %v3022, %v3260
      %vm3263 = vcmask 1047559
      %v3264 = vsel %vm3263, %v3026, %v3262
      %v3265 = vsel %vm3251, %v3034, %v3030
      %v3266 = vsel %vm3253, %v3038, %v3265
      %v3267 = vsel %vm3255, %v3042, %v3266
      %v3268 = vsel %vm3257, %v3046, %v3267
      %v3269 = vsel %vm3259, %v3050, %v3268
      %v3270 = vsel %vm3261, %v3054, %v3269
      %v3271 = vsel %vm3263, %v3058, %v3270
      %v3272 = vsel %vm3251, %v3066, %v3062
      %v3273 = vsel %vm3253, %v3070, %v3272
      %v3274 = vsel %vm3255, %v3074, %v3273
      %v3275 = vsel %vm3257, %v3078, %v3274
      %v3276 = vsel %vm3259, %v3082, %v3275
      %v3277 = vsel %vm3261, %v3086, %v3276
      %v3278 = vsel %vm3263, %v3090, %v3277
      %v3279 = vsel %vm3251, %v3098, %v3094
      %v3280 = vsel %vm3253, %v3102, %v3279
      %v3281 = vsel %vm3255, %v3106, %v3280
      %v3282 = vsel %vm3257, %v3110, %v3281
      %v3283 = vsel %vm3259, %v3114, %v3282
      %v3284 = vsel %vm3261, %v3118, %v3283
      %v3285 = vsel %vm3263, %v3122, %v3284
      %v3286 = vsel %vm3251, %v3130, %v3126
      %v3287 = vsel %vm3253, %v3134, %v3286
      %v3288 = vsel %vm3255, %v3138, %v3287
      %v3289 = vsel %vm3257, %v3142, %v3288
      %v3290 = vsel %vm3259, %v3146, %v3289
      %v3291 = vsel %vm3261, %v3150, %v3290
      %v3292 = vsel %vm3263, %v3154, %v3291
      %v3293 = vsel %vm3251, %v3162, %v3158
      %v3294 = vsel %vm3253, %v3166, %v3293
      %v3295 = vsel %vm3255, %v3170, %v3294
      %v3296 = vsel %vm3257, %v3174, %v3295
      %v3297 = vsel %vm3259, %v3178, %v3296
      %v3298 = vsel %vm3261, %v3182, %v3297
      %v3299 = vsel %vm3263, %v3186, %v3298
      %v3300 = vsel %vm3251, %v3194, %v3190
      %v3301 = vsel %vm3253, %v3198, %v3300
      %v3302 = vsel %vm3255, %v3202, %v3301
      %v3303 = vsel %vm3257, %v3206, %v3302
      %v3304 = vsel %vm3259, %v3210, %v3303
      %v3305 = vsel %vm3261, %v3214, %v3304
      %v3306 = vsel %vm3263, %v3218, %v3305
      %v3307 = vsel %vm3251, %v3226, %v3222
      %v3308 = vsel %vm3253, %v3230, %v3307
      %v3309 = vsel %vm3255, %v3234, %v3308
      %v3310 = vsel %vm3257, %v3238, %v3309
      %v3311 = vsel %vm3259, %v3242, %v3310
      %v3312 = vsel %vm3261, %v3246, %v3311
      %v3313 = vsel %vm3263, %v3250, %v3312
      %v3322 = vlaneseq
      %v3323 = vshrl.u32 %v3322, 7
      %v3324 = vsub.s32 1, %v3323
      %v3325 = vrot.slane %v2305, %v3324
      %v3326 = vlaneseq
      %v3327 = vshrl.u32 %v3326, 7
      %v3328 = vsub.s32 1, %v3327
      %v3329 = vrot.slane %v2313, %v3328
      %v3330 = vlaneseq
      %v3331 = vshrl.u32 %v3330, 7
      %v3332 = vsub.s32 1, %v3331
      %v3333 = vrot.slane %v2312, %v3332
      %v3334 = vlaneseq
      %v3335 = vshrl.u32 %v3334, 7
      %v3336 = vsub.s32 1, %v3335
      %v3337 = vrot.slane %v2314, %v3336
      %v3338 = vlaneseq
      %v3339 = vshrl.u32 %v3338, 7
      %v3340 = vsub.s32 1, %v3339
      %v3341 = vrot.slane %v2322, %v3340
      %v3342 = vlaneseq
      %v3343 = vshrl.u32 %v3342, 7
      %v3344 = vsub.s32 1, %v3343
      %v3345 = vrot.slane %v2330, %v3344
      %v3346 = vlaneseq
      %v3347 = vshrl.u32 %v3346, 7
      %v3348 = vsub.s32 1, %v3347
      %v3349 = vrot.slane %v2329, %v3348
      %v3350 = vlaneseq
      %v3351 = vshrl.u32 %v3350, 7
      %v3352 = vsub.s32 1, %v3351
      %v3353 = vrot.slane %v2331, %v3352
      %v3354 = vlaneseq
      %v3355 = vshrl.u32 %v3354, 7
      %v3356 = vsub.s32 1, %v3355
      %v3357 = vrot.slane %v2387, %v3356
      %v3358 = vlaneseq
      %v3359 = vshrl.u32 %v3358, 7
      %v3360 = vsub.s32 1, %v3359
      %v3361 = vrot.slane %v2395, %v3360
      %v3362 = vlaneseq
      %v3363 = vshrl.u32 %v3362, 7
      %v3364 = vsub.s32 1, %v3363
      %v3365 = vrot.slane %v2394, %v3364
      %v3366 = vlaneseq
      %v3367 = vshrl.u32 %v3366, 7
      %v3368 = vsub.s32 1, %v3367
      %v3369 = vrot.slane %v2396, %v3368
      %v3370 = vlaneseq
      %v3371 = vshrl.u32 %v3370, 7
      %v3372 = vsub.s32 1, %v3371
      %v3373 = vrot.slane %v2404, %v3372
      %v3374 = vlaneseq
      %v3375 = vshrl.u32 %v3374, 7
      %v3376 = vsub.s32 1, %v3375
      %v3377 = vrot.slane %v2412, %v3376
      %v3378 = vlaneseq
      %v3379 = vshrl.u32 %v3378, 7
      %v3380 = vsub.s32 1, %v3379
      %v3381 = vrot.slane %v2411, %v3380
      %v3382 = vlaneseq
      %v3383 = vshrl.u32 %v3382, 7
      %v3384 = vsub.s32 1, %v3383
      %v3385 = vrot.slane %v2413, %v3384
      %v3386 = vlaneseq
      %v3387 = vshrl.u32 %v3386, 7
      %v3388 = vsub.s32 1, %v3387
      %v3389 = vrot.slane %v2469, %v3388
      %v3390 = vlaneseq
      %v3391 = vshrl.u32 %v3390, 7
      %v3392 = vsub.s32 1, %v3391
      %v3393 = vrot.slane %v2477, %v3392
      %v3394 = vlaneseq
      %v3395 = vshrl.u32 %v3394, 7
      %v3396 = vsub.s32 1, %v3395
      %v3397 = vrot.slane %v2476, %v3396
      %v3398 = vlaneseq
      %v3399 = vshrl.u32 %v3398, 7
      %v3400 = vsub.s32 1, %v3399
      %v3401 = vrot.slane %v2478, %v3400
      %v3402 = vlaneseq
      %v3403 = vshrl.u32 %v3402, 7
      %v3404 = vsub.s32 1, %v3403
      %v3405 = vrot.slane %v2486, %v3404
      %v3406 = vlaneseq
      %v3407 = vshrl.u32 %v3406, 7
      %v3408 = vsub.s32 1, %v3407
      %v3409 = vrot.slane %v2494, %v3408
      %v3410 = vlaneseq
      %v3411 = vshrl.u32 %v3410, 7
      %v3412 = vsub.s32 1, %v3411
      %v3413 = vrot.slane %v2493, %v3412
      %v3414 = vlaneseq
      %v3415 = vshrl.u32 %v3414, 7
      %v3416 = vsub.s32 1, %v3415
      %v3417 = vrot.slane %v2495, %v3416
      %v3418 = vlaneseq
      %v3419 = vshrl.u32 %v3418, 7
      %v3420 = vsub.s32 1, %v3419
      %v3421 = vrot.slane %v2551, %v3420
      %v3422 = vlaneseq
      %v3423 = vshrl.u32 %v3422, 7
      %v3424 = vsub.s32 1, %v3423
      %v3425 = vrot.slane %v2559, %v3424
      %v3426 = vlaneseq
      %v3427 = vshrl.u32 %v3426, 7
      %v3428 = vsub.s32 1, %v3427
      %v3429 = vrot.slane %v2558, %v3428
      %v3430 = vlaneseq
      %v3431 = vshrl.u32 %v3430, 7
      %v3432 = vsub.s32 1, %v3431
      %v3433 = vrot.slane %v2560, %v3432
      %v3434 = vlaneseq
      %v3435 = vshrl.u32 %v3434, 7
      %v3436 = vsub.s32 1, %v3435
      %v3437 = vrot.slane %v2568, %v3436
      %v3438 = vlaneseq
      %v3439 = vshrl.u32 %v3438, 7
      %v3440 = vsub.s32 1, %v3439
      %v3441 = vrot.slane %v2576, %v3440
      %v3442 = vlaneseq
      %v3443 = vshrl.u32 %v3442, 7
      %v3444 = vsub.s32 1, %v3443
      %v3445 = vrot.slane %v2575, %v3444
      %v3446 = vlaneseq
      %v3447 = vshrl.u32 %v3446, 7
      %v3448 = vsub.s32 1, %v3447
      %v3449 = vrot.slane %v2577, %v3448
      %v3450 = vlaneseq
      %v3451 = vshrl.u32 %v3450, 7
      %v3452 = vsub.s32 1, %v3451
      %v3453 = vrot.slane %v2633, %v3452
      %v3454 = vlaneseq
      %v3455 = vshrl.u32 %v3454, 7
      %v3456 = vsub.s32 1, %v3455
      %v3457 = vrot.slane %v2641, %v3456
      %v3458 = vlaneseq
      %v3459 = vshrl.u32 %v3458, 7
      %v3460 = vsub.s32 1, %v3459
      %v3461 = vrot.slane %v2640, %v3460
      %v3462 = vlaneseq
      %v3463 = vshrl.u32 %v3462, 7
      %v3464 = vsub.s32 1, %v3463
      %v3465 = vrot.slane %v2642, %v3464
      %v3466 = vlaneseq
      %v3467 = vshrl.u32 %v3466, 7
      %v3468 = vsub.s32 1, %v3467
      %v3469 = vrot.slane %v2650, %v3468
      %v3470 = vlaneseq
      %v3471 = vshrl.u32 %v3470, 7
      %v3472 = vsub.s32 1, %v3471
      %v3473 = vrot.slane %v2658, %v3472
      %v3474 = vlaneseq
      %v3475 = vshrl.u32 %v3474, 7
      %v3476 = vsub.s32 1, %v3475
      %v3477 = vrot.slane %v2657, %v3476
      %v3478 = vlaneseq
      %v3479 = vshrl.u32 %v3478, 7
      %v3480 = vsub.s32 1, %v3479
      %v3481 = vrot.slane %v2659, %v3480
      %v3482 = vlaneseq
      %v3483 = vshrl.u32 %v3482, 7
      %v3484 = vsub.s32 1, %v3483
      %v3485 = vrot.slane %v2715, %v3484
      %v3486 = vlaneseq
      %v3487 = vshrl.u32 %v3486, 7
      %v3488 = vsub.s32 1, %v3487
      %v3489 = vrot.slane %v2723, %v3488
      %v3490 = vlaneseq
      %v3491 = vshrl.u32 %v3490, 7
      %v3492 = vsub.s32 1, %v3491
      %v3493 = vrot.slane %v2722, %v3492
      %v3494 = vlaneseq
      %v3495 = vshrl.u32 %v3494, 7
      %v3496 = vsub.s32 1, %v3495
      %v3497 = vrot.slane %v2724, %v3496
      %v3498 = vlaneseq
      %v3499 = vshrl.u32 %v3498, 7
      %v3500 = vsub.s32 1, %v3499
      %v3501 = vrot.slane %v2732, %v3500
      %v3502 = vlaneseq
      %v3503 = vshrl.u32 %v3502, 7
      %v3504 = vsub.s32 1, %v3503
      %v3505 = vrot.slane %v2740, %v3504
      %v3506 = vlaneseq
      %v3507 = vshrl.u32 %v3506, 7
      %v3508 = vsub.s32 1, %v3507
      %v3509 = vrot.slane %v2739, %v3508
      %v3510 = vlaneseq
      %v3511 = vshrl.u32 %v3510, 7
      %v3512 = vsub.s32 1, %v3511
      %v3513 = vrot.slane %v2741, %v3512
      %v3514 = vlaneseq
      %v3515 = vshrl.u32 %v3514, 7
      %v3516 = vsub.s32 1, %v3515
      %v3517 = vrot.slane %v2797, %v3516
      %v3518 = vlaneseq
      %v3519 = vshrl.u32 %v3518, 7
      %v3520 = vsub.s32 1, %v3519
      %v3521 = vrot.slane %v2805, %v3520
      %v3522 = vlaneseq
      %v3523 = vshrl.u32 %v3522, 7
      %v3524 = vsub.s32 1, %v3523
      %v3525 = vrot.slane %v2804, %v3524
      %v3526 = vlaneseq
      %v3527 = vshrl.u32 %v3526, 7
      %v3528 = vsub.s32 1, %v3527
      %v3529 = vrot.slane %v2806, %v3528
      %v3530 = vlaneseq
      %v3531 = vshrl.u32 %v3530, 7
      %v3532 = vsub.s32 1, %v3531
      %v3533 = vrot.slane %v2814, %v3532
      %v3534 = vlaneseq
      %v3535 = vshrl.u32 %v3534, 7
      %v3536 = vsub.s32 1, %v3535
      %v3537 = vrot.slane %v2822, %v3536
      %v3538 = vlaneseq
      %v3539 = vshrl.u32 %v3538, 7
      %v3540 = vsub.s32 1, %v3539
      %v3541 = vrot.slane %v2821, %v3540
      %v3542 = vlaneseq
      %v3543 = vshrl.u32 %v3542, 7
      %v3544 = vsub.s32 1, %v3543
      %v3545 = vrot.slane %v2823, %v3544
      %v3546 = vlaneseq
      %v3547 = vshrl.u32 %v3546, 7
      %v3548 = vsub.s32 1, %v3547
      %v3549 = vrot.slane %v2879, %v3548
      %v3550 = vlaneseq
      %v3551 = vshrl.u32 %v3550, 7
      %v3552 = vsub.s32 1, %v3551
      %v3553 = vrot.slane %v2887, %v3552
      %v3554 = vlaneseq
      %v3555 = vshrl.u32 %v3554, 7
      %v3556 = vsub.s32 1, %v3555
      %v3557 = vrot.slane %v2886, %v3556
      %v3558 = vlaneseq
      %v3559 = vshrl.u32 %v3558, 7
      %v3560 = vsub.s32 1, %v3559
      %v3561 = vrot.slane %v2888, %v3560
      %v3562 = vlaneseq
      %v3563 = vshrl.u32 %v3562, 7
      %v3564 = vsub.s32 1, %v3563
      %v3565 = vrot.slane %v2896, %v3564
      %v3566 = vlaneseq
      %v3567 = vshrl.u32 %v3566, 7
      %v3568 = vsub.s32 1, %v3567
      %v3569 = vrot.slane %v2904, %v3568
      %v3570 = vlaneseq
      %v3571 = vshrl.u32 %v3570, 7
      %v3572 = vsub.s32 1, %v3571
      %v3573 = vrot.slane %v2903, %v3572
      %v3574 = vlaneseq
      %v3575 = vshrl.u32 %v3574, 7
      %v3576 = vsub.s32 1, %v3575
      %v3577 = vrot.slane %v2905, %v3576
      %v3578 = vsel %vm3251, %v3329, %v3325
      %v3579 = vsel %vm3253, %v3333, %v3578
      %v3580 = vsel %vm3255, %v3337, %v3579
      %v3581 = vsel %vm3257, %v3341, %v3580
      %v3582 = vsel %vm3259, %v3345, %v3581
      %v3583 = vsel %vm3261, %v3349, %v3582
      %v3584 = vsel %vm3263, %v3353, %v3583
      %v3585 = vsel %vm3251, %v3361, %v3357
      %v3586 = vsel %vm3253, %v3365, %v3585
      %v3587 = vsel %vm3255, %v3369, %v3586
      %v3588 = vsel %vm3257, %v3373, %v3587
      %v3589 = vsel %vm3259, %v3377, %v3588
      %v3590 = vsel %vm3261, %v3381, %v3589
      %v3591 = vsel %vm3263, %v3385, %v3590
      %v3592 = vsel %vm3251, %v3393, %v3389
      %v3593 = vsel %vm3253, %v3397, %v3592
      %v3594 = vsel %vm3255, %v3401, %v3593
      %v3595 = vsel %vm3257, %v3405, %v3594
      %v3596 = vsel %vm3259, %v3409, %v3595
      %v3597 = vsel %vm3261, %v3413, %v3596
      %v3598 = vsel %vm3263, %v3417, %v3597
      %v3599 = vsel %vm3251, %v3425, %v3421
      %v3600 = vsel %vm3253, %v3429, %v3599
      %v3601 = vsel %vm3255, %v3433, %v3600
      %v3602 = vsel %vm3257, %v3437, %v3601
      %v3603 = vsel %vm3259, %v3441, %v3602
      %v3604 = vsel %vm3261, %v3445, %v3603
      %v3605 = vsel %vm3263, %v3449, %v3604
      %v3606 = vsel %vm3251, %v3457, %v3453
      %v3607 = vsel %vm3253, %v3461, %v3606
      %v3608 = vsel %vm3255, %v3465, %v3607
      %v3609 = vsel %vm3257, %v3469, %v3608
      %v3610 = vsel %vm3259, %v3473, %v3609
      %v3611 = vsel %vm3261, %v3477, %v3610
      %v3612 = vsel %vm3263, %v3481, %v3611
      %v3613 = vsel %vm3251, %v3489, %v3485
      %v3614 = vsel %vm3253, %v3493, %v3613
      %v3615 = vsel %vm3255, %v3497, %v3614
      %v3616 = vsel %vm3257, %v3501, %v3615
      %v3617 = vsel %vm3259, %v3505, %v3616
      %v3618 = vsel %vm3261, %v3509, %v3617
      %v3619 = vsel %vm3263, %v3513, %v3618
      %v3620 = vsel %vm3251, %v3521, %v3517
      %v3621 = vsel %vm3253, %v3525, %v3620
      %v3622 = vsel %vm3255, %v3529, %v3621
      %v3623 = vsel %vm3257, %v3533, %v3622
      %v3624 = vsel %vm3259, %v3537, %v3623
      %v3625 = vsel %vm3261, %v3541, %v3624
      %v3626 = vsel %vm3263, %v3545, %v3625
      %v3627 = vsel %vm3251, %v3553, %v3549
      %v3628 = vsel %vm3253, %v3557, %v3627
      %v3629 = vsel %vm3255, %v3561, %v3628
      %v3630 = vsel %vm3257, %v3565, %v3629
      %v3631 = vsel %vm3259, %v3569, %v3630
      %v3632 = vsel %vm3261, %v3573, %v3631
      %v3633 = vsel %vm3263, %v3577, %v3632
      %3634 = vrot.lane.b32.xlu0 %v3584, 16
      %v3635 = vpop.permute.xlu0 %3634
      %3636 = vrot.lane.b32.xlu0 %v3591, 16
      %v3637 = vpop.permute.xlu0 %3636
      %3638 = vrot.lane.b32.xlu0 %v3598, 16
      %v3639 = vpop.permute.xlu0 %3638
      %3640 = vrot.lane.b32.xlu0 %v3605, 16
      %v3641 = vpop.permute.xlu0 %3640
      %3642 = vrot.lane.b32.xlu0 %v3612, 16
      %v3643 = vpop.permute.xlu0 %3642
      %3644 = vrot.lane.b32.xlu0 %v3619, 16
      %v3645 = vpop.permute.xlu0 %3644
      %3646 = vrot.lane.b32.xlu0 %v3626, 16
      %v3647 = vpop.permute.xlu0 %3646
      %3648 = vrot.lane.b32.xlu0 %v3633, 16
      %v3649 = vpop.permute.xlu0 %3648
      %v3658 = vlaneseq
      %v3659 = vshrl.u32 %v3658, 7
      %v3660 = vsub.s32 0, %v3659
      %v3661 = vrot.slane %v2338, %v3660
      %v3662 = vlaneseq
      %v3663 = vshrl.u32 %v3662, 7
      %v3664 = vsub.s32 0, %v3663
      %v3665 = vrot.slane %v2420, %v3664
      %v3666 = vlaneseq
      %v3667 = vshrl.u32 %v3666, 7
      %v3668 = vsub.s32 0, %v3667
      %v3669 = vrot.slane %v2502, %v3668
      %v3670 = vlaneseq
      %v3671 = vshrl.u32 %v3670, 7
      %v3672 = vsub.s32 0, %v3671
      %v3673 = vrot.slane %v2584, %v3672
      %v3674 = vlaneseq
      %v3675 = vshrl.u32 %v3674, 7
      %v3676 = vsub.s32 0, %v3675
      %v3677 = vrot.slane %v2666, %v3676
      %v3678 = vlaneseq
      %v3679 = vshrl.u32 %v3678, 7
      %v3680 = vsub.s32 0, %v3679
      %v3681 = vrot.slane %v2748, %v3680
      %v3682 = vlaneseq
      %v3683 = vshrl.u32 %v3682, 7
      %v3684 = vsub.s32 0, %v3683
      %v3685 = vrot.slane %v2830, %v3684
      %v3686 = vlaneseq
      %v3687 = vshrl.u32 %v3686, 7
      %v3688 = vsub.s32 0, %v3687
      %v3689 = vrot.slane %v2912, %v3688
      %v3690 = vsel %vm3251, %v3006, %v3002
      %v3691 = vsel %vm3253, %v3010, %v3690
      %v3692 = vsel %vm3255, %v3014, %v3691
      %v3693 = vsel %vm3257, %v3018, %v3692
      %v3694 = vsel %vm3259, %v3022, %v3693
      %v3695 = vsel %vm3261, %v3026, %v3694
      %v3696 = vsel %vm3263, %v3661, %v3695
      %v3697 = vsel %vm3251, %v3038, %v3034
      %v3698 = vsel %vm3253, %v3042, %v3697
      %v3699 = vsel %vm3255, %v3046, %v3698
      %v3700 = vsel %vm3257, %v3050, %v3699
      %v3701 = vsel %vm3259, %v3054, %v3700
      %v3702 = vsel %vm3261, %v3058, %v3701
      %v3703 = vsel %vm3263, %v3665, %v3702
      %v3704 = vsel %vm3251, %v3070, %v3066
      %v3705 = vsel %vm3253, %v3074, %v3704
      %v3706 = vsel %vm3255, %v3078, %v3705
      %v3707 = vsel %vm3257, %v3082, %v3706
      %v3708 = vsel %vm3259, %v3086, %v3707
      %v3709 = vsel %vm3261, %v3090, %v3708
      %v3710 = vsel %vm3263, %v3669, %v3709
      %v3711 = vsel %vm3251, %v3102, %v3098
      %v3712 = vsel %vm3253, %v3106, %v3711
      %v3713 = vsel %vm3255, %v3110, %v3712
      %v3714 = vsel %vm3257, %v3114, %v3713
      %v3715 = vsel %vm3259, %v3118, %v3714
      %v3716 = vsel %vm3261, %v3122, %v3715
      %v3717 = vsel %vm3263, %v3673, %v3716
      %v3718 = vsel %vm3251, %v3134, %v3130
      %v3719 = vsel %vm3253, %v3138, %v3718
      %v3720 = vsel %vm3255, %v3142, %v3719
      %v3721 = vsel %vm3257, %v3146, %v3720
      %v3722 = vsel %vm3259, %v3150, %v3721
      %v3723 = vsel %vm3261, %v3154, %v3722
      %v3724 = vsel %vm3263, %v3677, %v3723
      %v3725 = vsel %vm3251, %v3166, %v3162
      %v3726 = vsel %vm3253, %v3170, %v3725
      %v3727 = vsel %vm3255, %v3174, %v3726
      %v3728 = vsel %vm3257, %v3178, %v3727
      %v3729 = vsel %vm3259, %v3182, %v3728
      %v3730 = vsel %vm3261, %v3186, %v3729
      %v3731 = vsel %vm3263, %v3681, %v3730
      %v3732 = vsel %vm3251, %v3198, %v3194
      %v3733 = vsel %vm3253, %v3202, %v3732
      %v3734 = vsel %vm3255, %v3206, %v3733
      %v3735 = vsel %vm3257, %v3210, %v3734
      %v3736 = vsel %vm3259, %v3214, %v3735
      %v3737 = vsel %vm3261, %v3218, %v3736
      %v3738 = vsel %vm3263, %v3685, %v3737
      %v3739 = vsel %vm3251, %v3230, %v3226
      %v3740 = vsel %vm3253, %v3234, %v3739
      %v3741 = vsel %vm3255, %v3238, %v3740
      %v3742 = vsel %vm3257, %v3242, %v3741
      %v3743 = vsel %vm3259, %v3246, %v3742
      %v3744 = vsel %vm3261, %v3250, %v3743
      %v3745 = vsel %vm3263, %v3689, %v3744
      %3746 = vrot.lane.b32.xlu0 %v3696, 32
      %v3747 = vpop.permute.xlu0 %3746
      %3748 = vrot.lane.b32.xlu0 %v3703, 32
      %v3749 = vpop.permute.xlu0 %3748
      %3750 = vrot.lane.b32.xlu0 %v3710, 32
      %v3751 = vpop.permute.xlu0 %3750
      %3752 = vrot.lane.b32.xlu0 %v3717, 32
      %v3753 = vpop.permute.xlu0 %3752
      %3754 = vrot.lane.b32.xlu0 %v3724, 32
      %v3755 = vpop.permute.xlu0 %3754
      %3756 = vrot.lane.b32.xlu0 %v3731, 32
      %v3757 = vpop.permute.xlu0 %3756
      %3758 = vrot.lane.b32.xlu0 %v3738, 32
      %v3759 = vpop.permute.xlu0 %3758
      %3760 = vrot.lane.b32.xlu0 %v3745, 32
      %v3761 = vpop.permute.xlu0 %3760
      %v3770 = vlaneseq
      %v3771 = vshrl.u32 %v3770, 7
      %v3772 = vsub.s32 0, %v3771
      %v3773 = vrot.slane %v2346, %v3772
      %v3774 = vlaneseq
      %v3775 = vshrl.u32 %v3774, 7
      %v3776 = vsub.s32 0, %v3775
      %v3777 = vrot.slane %v2354, %v3776
      %v3778 = vlaneseq
      %v3779 = vshrl.u32 %v3778, 7
      %v3780 = vsub.s32 0, %v3779
      %v3781 = vrot.slane %v2353, %v3780
      %v3782 = vlaneseq
      %v3783 = vshrl.u32 %v3782, 7
      %v3784 = vsub.s32 0, %v3783
      %v3785 = vrot.slane %v2355, %v3784
      %v3786 = vlaneseq
      %v3787 = vshrl.u32 %v3786, 7
      %v3788 = vsub.s32 0, %v3787
      %v3789 = vrot.slane %v2363, %v3788
      %v3790 = vlaneseq
      %v3791 = vshrl.u32 %v3790, 7
      %v3792 = vsub.s32 0, %v3791
      %v3793 = vrot.slane %v2371, %v3792
      %v3794 = vlaneseq
      %v3795 = vshrl.u32 %v3794, 7
      %v3796 = vsub.s32 0, %v3795
      %v3797 = vrot.slane %v2370, %v3796
      %v3798 = vlaneseq
      %v3799 = vshrl.u32 %v3798, 7
      %v3800 = vsub.s32 0, %v3799
      %v3801 = vrot.slane %v2372, %v3800
      %v3802 = vlaneseq
      %v3803 = vshrl.u32 %v3802, 7
      %v3804 = vsub.s32 0, %v3803
      %v3805 = vrot.slane %v2428, %v3804
      %v3806 = vlaneseq
      %v3807 = vshrl.u32 %v3806, 7
      %v3808 = vsub.s32 0, %v3807
      %v3809 = vrot.slane %v2436, %v3808
      %v3810 = vlaneseq
      %v3811 = vshrl.u32 %v3810, 7
      %v3812 = vsub.s32 0, %v3811
      %v3813 = vrot.slane %v2435, %v3812
      %v3814 = vlaneseq
      %v3815 = vshrl.u32 %v3814, 7
      %v3816 = vsub.s32 0, %v3815
      %v3817 = vrot.slane %v2437, %v3816
      %v3818 = vlaneseq
      %v3819 = vshrl.u32 %v3818, 7
      %v3820 = vsub.s32 0, %v3819
      %v3821 = vrot.slane %v2445, %v3820
      %v3822 = vlaneseq
      %v3823 = vshrl.u32 %v3822, 7
      %v3824 = vsub.s32 0, %v3823
      %v3825 = vrot.slane %v2453, %v3824
      %v3826 = vlaneseq
      %v3827 = vshrl.u32 %v3826, 7
      %v3828 = vsub.s32 0, %v3827
      %v3829 = vrot.slane %v2452, %v3828
      %v3830 = vlaneseq
      %v3831 = vshrl.u32 %v3830, 7
      %v3832 = vsub.s32 0, %v3831
      %v3833 = vrot.slane %v2454, %v3832
      %v3834 = vlaneseq
      %v3835 = vshrl.u32 %v3834, 7
      %v3836 = vsub.s32 0, %v3835
      %v3837 = vrot.slane %v2510, %v3836
      %v3838 = vlaneseq
      %v3839 = vshrl.u32 %v3838, 7
      %v3840 = vsub.s32 0, %v3839
      %v3841 = vrot.slane %v2518, %v3840
      %v3842 = vlaneseq
      %v3843 = vshrl.u32 %v3842, 7
      %v3844 = vsub.s32 0, %v3843
      %v3845 = vrot.slane %v2517, %v3844
      %v3846 = vlaneseq
      %v3847 = vshrl.u32 %v3846, 7
      %v3848 = vsub.s32 0, %v3847
      %v3849 = vrot.slane %v2519, %v3848
      %v3850 = vlaneseq
      %v3851 = vshrl.u32 %v3850, 7
      %v3852 = vsub.s32 0, %v3851
      %v3853 = vrot.slane %v2527, %v3852
      %v3854 = vlaneseq
      %v3855 = vshrl.u32 %v3854, 7
      %v3856 = vsub.s32 0, %v3855
      %v3857 = vrot.slane %v2535, %v3856
      %v3858 = vlaneseq
      %v3859 = vshrl.u32 %v3858, 7
      %v3860 = vsub.s32 0, %v3859
      %v3861 = vrot.slane %v2534, %v3860
      %v3862 = vlaneseq
      %v3863 = vshrl.u32 %v3862, 7
      %v3864 = vsub.s32 0, %v3863
      %v3865 = vrot.slane %v2536, %v3864
      %v3866 = vlaneseq
      %v3867 = vshrl.u32 %v3866, 7
      %v3868 = vsub.s32 0, %v3867
      %v3869 = vrot.slane %v2592, %v3868
      %v3870 = vlaneseq
      %v3871 = vshrl.u32 %v3870, 7
      %v3872 = vsub.s32 0, %v3871
      %v3873 = vrot.slane %v2600, %v3872
      %v3874 = vlaneseq
      %v3875 = vshrl.u32 %v3874, 7
      %v3876 = vsub.s32 0, %v3875
      %v3877 = vrot.slane %v2599, %v3876
      %v3878 = vlaneseq
      %v3879 = vshrl.u32 %v3878, 7
      %v3880 = vsub.s32 0, %v3879
      %v3881 = vrot.slane %v2601, %v3880
      %v3882 = vlaneseq
      %v3883 = vshrl.u32 %v3882, 7
      %v3884 = vsub.s32 0, %v3883
      %v3885 = vrot.slane %v2609, %v3884
      %v3886 = vlaneseq
      %v3887 = vshrl.u32 %v3886, 7
      %v3888 = vsub.s32 0, %v3887
      %v3889 = vrot.slane %v2617, %v3888
      %v3890 = vlaneseq
      %v3891 = vshrl.u32 %v3890, 7
      %v3892 = vsub.s32 0, %v3891
      %v3893 = vrot.slane %v2616, %v3892
      %v3894 = vlaneseq
      %v3895 = vshrl.u32 %v3894, 7
      %v3896 = vsub.s32 0, %v3895
      %v3897 = vrot.slane %v2618, %v3896
      %v3898 = vlaneseq
      %v3899 = vshrl.u32 %v3898, 7
      %v3900 = vsub.s32 0, %v3899
      %v3901 = vrot.slane %v2674, %v3900
      %v3902 = vlaneseq
      %v3903 = vshrl.u32 %v3902, 7
      %v3904 = vsub.s32 0, %v3903
      %v3905 = vrot.slane %v2682, %v3904
      %v3906 = vlaneseq
      %v3907 = vshrl.u32 %v3906, 7
      %v3908 = vsub.s32 0, %v3907
      %v3909 = vrot.slane %v2681, %v3908
      %v3910 = vlaneseq
      %v3911 = vshrl.u32 %v3910, 7
      %v3912 = vsub.s32 0, %v3911
      %v3913 = vrot.slane %v2683, %v3912
      %v3914 = vlaneseq
      %v3915 = vshrl.u32 %v3914, 7
      %v3916 = vsub.s32 0, %v3915
      %v3917 = vrot.slane %v2691, %v3916
      %v3918 = vlaneseq
      %v3919 = vshrl.u32 %v3918, 7
      %v3920 = vsub.s32 0, %v3919
      %v3921 = vrot.slane %v2699, %v3920
      %v3922 = vlaneseq
      %v3923 = vshrl.u32 %v3922, 7
      %v3924 = vsub.s32 0, %v3923
      %v3925 = vrot.slane %v2698, %v3924
      %v3926 = vlaneseq
      %v3927 = vshrl.u32 %v3926, 7
      %v3928 = vsub.s32 0, %v3927
      %v3929 = vrot.slane %v2700, %v3928
      %v3930 = vlaneseq
      %v3931 = vshrl.u32 %v3930, 7
      %v3932 = vsub.s32 0, %v3931
      %v3933 = vrot.slane %v2756, %v3932
      %v3934 = vlaneseq
      %v3935 = vshrl.u32 %v3934, 7
      %v3936 = vsub.s32 0, %v3935
      %v3937 = vrot.slane %v2764, %v3936
      %v3938 = vlaneseq
      %v3939 = vshrl.u32 %v3938, 7
      %v3940 = vsub.s32 0, %v3939
      %v3941 = vrot.slane %v2763, %v3940
      %v3942 = vlaneseq
      %v3943 = vshrl.u32 %v3942, 7
      %v3944 = vsub.s32 0, %v3943
      %v3945 = vrot.slane %v2765, %v3944
      %v3946 = vlaneseq
      %v3947 = vshrl.u32 %v3946, 7
      %v3948 = vsub.s32 0, %v3947
      %v3949 = vrot.slane %v2773, %v3948
      %v3950 = vlaneseq
      %v3951 = vshrl.u32 %v3950, 7
      %v3952 = vsub.s32 0, %v3951
      %v3953 = vrot.slane %v2781, %v3952
      %v3954 = vlaneseq
      %v3955 = vshrl.u32 %v3954, 7
      %v3956 = vsub.s32 0, %v3955
      %v3957 = vrot.slane %v2780, %v3956
      %v3958 = vlaneseq
      %v3959 = vshrl.u32 %v3958, 7
      %v3960 = vsub.s32 0, %v3959
      %v3961 = vrot.slane %v2782, %v3960
      %v3962 = vlaneseq
      %v3963 = vshrl.u32 %v3962, 7
      %v3964 = vsub.s32 0, %v3963
      %v3965 = vrot.slane %v2838, %v3964
      %v3966 = vlaneseq
      %v3967 = vshrl.u32 %v3966, 7
      %v3968 = vsub.s32 0, %v3967
      %v3969 = vrot.slane %v2846, %v3968
      %v3970 = vlaneseq
      %v3971 = vshrl.u32 %v3970, 7
      %v3972 = vsub.s32 0, %v3971
      %v3973 = vrot.slane %v2845, %v3972
      %v3974 = vlaneseq
      %v3975 = vshrl.u32 %v3974, 7
      %v3976 = vsub.s32 0, %v3975
      %v3977 = vrot.slane %v2847, %v3976
      %v3978 = vlaneseq
      %v3979 = vshrl.u32 %v3978, 7
      %v3980 = vsub.s32 0, %v3979
      %v3981 = vrot.slane %v2855, %v3980
      %v3982 = vlaneseq
      %v3983 = vshrl.u32 %v3982, 7
      %v3984 = vsub.s32 0, %v3983
      %v3985 = vrot.slane %v2863, %v3984
      %v3986 = vlaneseq
      %v3987 = vshrl.u32 %v3986, 7
      %v3988 = vsub.s32 0, %v3987
      %v3989 = vrot.slane %v2862, %v3988
      %v3990 = vlaneseq
      %v3991 = vshrl.u32 %v3990, 7
      %v3992 = vsub.s32 0, %v3991
      %v3993 = vrot.slane %v2864, %v3992
      %v3994 = vlaneseq
      %v3995 = vshrl.u32 %v3994, 7
      %v3996 = vsub.s32 0, %v3995
      %v3997 = vrot.slane %v2920, %v3996
      %v3998 = vlaneseq
      %v3999 = vshrl.u32 %v3998, 7
      %v4000 = vsub.s32 0, %v3999
      %v4001 = vrot.slane %v2928, %v4000
      %v4002 = vlaneseq
      %v4003 = vshrl.u32 %v4002, 7
      %v4004 = vsub.s32 0, %v4003
      %v4005 = vrot.slane %v2927, %v4004
      %v4006 = vlaneseq
      %v4007 = vshrl.u32 %v4006, 7
      %v4008 = vsub.s32 0, %v4007
      %v4009 = vrot.slane %v2929, %v4008
      %v4010 = vlaneseq
      %v4011 = vshrl.u32 %v4010, 7
      %v4012 = vsub.s32 0, %v4011
      %v4013 = vrot.slane %v2937, %v4012
      %v4014 = vlaneseq
      %v4015 = vshrl.u32 %v4014, 7
      %v4016 = vsub.s32 0, %v4015
      %v4017 = vrot.slane %v2945, %v4016
      %v4018 = vlaneseq
      %v4019 = vshrl.u32 %v4018, 7
      %v4020 = vsub.s32 0, %v4019
      %v4021 = vrot.slane %v2944, %v4020
      %v4022 = vlaneseq
      %v4023 = vshrl.u32 %v4022, 7
      %v4024 = vsub.s32 0, %v4023
      %v4025 = vrot.slane %v2946, %v4024
      %v4026 = vsel %vm3251, %v3777, %v3773
      %v4027 = vsel %vm3253, %v3781, %v4026
      %v4028 = vsel %vm3255, %v3785, %v4027
      %v4029 = vsel %vm3257, %v3789, %v4028
      %v4030 = vsel %vm3259, %v3793, %v4029
      %v4031 = vsel %vm3261, %v3797, %v4030
      %v4032 = vsel %vm3263, %v3801, %v4031
      %v4033 = vsel %vm3251, %v3809, %v3805
      %v4034 = vsel %vm3253, %v3813, %v4033
      %v4035 = vsel %vm3255, %v3817, %v4034
      %v4036 = vsel %vm3257, %v3821, %v4035
      %v4037 = vsel %vm3259, %v3825, %v4036
      %v4038 = vsel %vm3261, %v3829, %v4037
      %v4039 = vsel %vm3263, %v3833, %v4038
      %v4040 = vsel %vm3251, %v3841, %v3837
      %v4041 = vsel %vm3253, %v3845, %v4040
      %v4042 = vsel %vm3255, %v3849, %v4041
      %v4043 = vsel %vm3257, %v3853, %v4042
      %v4044 = vsel %vm3259, %v3857, %v4043
      %v4045 = vsel %vm3261, %v3861, %v4044
      %v4046 = vsel %vm3263, %v3865, %v4045
      %v4047 = vsel %vm3251, %v3873, %v3869
      %v4048 = vsel %vm3253, %v3877, %v4047
      %v4049 = vsel %vm3255, %v3881, %v4048
      %v4050 = vsel %vm3257, %v3885, %v4049
      %v4051 = vsel %vm3259, %v3889, %v4050
      %v4052 = vsel %vm3261, %v3893, %v4051
      %v4053 = vsel %vm3263, %v3897, %v4052
      %v4054 = vsel %vm3251, %v3905, %v3901
      %v4055 = vsel %vm3253, %v3909, %v4054
      %v4056 = vsel %vm3255, %v3913, %v4055
      %v4057 = vsel %vm3257, %v3917, %v4056
      %v4058 = vsel %vm3259, %v3921, %v4057
      %v4059 = vsel %vm3261, %v3925, %v4058
      %v4060 = vsel %vm3263, %v3929, %v4059
      %v4061 = vsel %vm3251, %v3937, %v3933
      %v4062 = vsel %vm3253, %v3941, %v4061
      %v4063 = vsel %vm3255, %v3945, %v4062
      %v4064 = vsel %vm3257, %v3949, %v4063
      %v4065 = vsel %vm3259, %v3953, %v4064
      %v4066 = vsel %vm3261, %v3957, %v4065
      %v4067 = vsel %vm3263, %v3961, %v4066
      %v4068 = vsel %vm3251, %v3969, %v3965
      %v4069 = vsel %vm3253, %v3973, %v4068
      %v4070 = vsel %vm3255, %v3977, %v4069
      %v4071 = vsel %vm3257, %v3981, %v4070
      %v4072 = vsel %vm3259, %v3985, %v4071
      %v4073 = vsel %vm3261, %v3989, %v4072
      %v4074 = vsel %vm3263, %v3993, %v4073
      %v4075 = vsel %vm3251, %v4001, %v3997
      %v4076 = vsel %vm3253, %v4005, %v4075
      %v4077 = vsel %vm3255, %v4009, %v4076
      %v4078 = vsel %vm3257, %v4013, %v4077
      %v4079 = vsel %vm3259, %v4017, %v4078
      %v4080 = vsel %vm3261, %v4021, %v4079
      %v4081 = vsel %vm3263, %v4025, %v4080
      %4082 = vrot.lane.b32.xlu0 %v4032, 48
      %v4083 = vpop.permute.xlu0 %4082
      %4084 = vrot.lane.b32.xlu0 %v4039, 48
      %v4085 = vpop.permute.xlu0 %4084
      %4086 = vrot.lane.b32.xlu0 %v4046, 48
      %v4087 = vpop.permute.xlu0 %4086
      %4088 = vrot.lane.b32.xlu0 %v4053, 48
      %v4089 = vpop.permute.xlu0 %4088
      %4090 = vrot.lane.b32.xlu0 %v4060, 48
      %v4091 = vpop.permute.xlu0 %4090
      %4092 = vrot.lane.b32.xlu0 %v4067, 48
      %v4093 = vpop.permute.xlu0 %4092
      %4094 = vrot.lane.b32.xlu0 %v4074, 48
      %v4095 = vpop.permute.xlu0 %4094
      %4096 = vrot.lane.b32.xlu0 %v4081, 48
      %v4097 = vpop.permute.xlu0 %4096
      %v4106 = vlaneseq
      %v4107 = vshrl.u32 %v4106, 7
      %v4108 = vsub.s32 1, %v4107
      %v4109 = vrot.slane %v2346, %v4108
      %v4110 = vlaneseq
      %v4111 = vshrl.u32 %v4110, 7
      %v4112 = vsub.s32 1, %v4111
      %v4113 = vrot.slane %v2354, %v4112
      %v4114 = vlaneseq
      %v4115 = vshrl.u32 %v4114, 7
      %v4116 = vsub.s32 1, %v4115
      %v4117 = vrot.slane %v2353, %v4116
      %v4118 = vlaneseq
      %v4119 = vshrl.u32 %v4118, 7
      %v4120 = vsub.s32 1, %v4119
      %v4121 = vrot.slane %v2355, %v4120
      %v4122 = vlaneseq
      %v4123 = vshrl.u32 %v4122, 7
      %v4124 = vsub.s32 1, %v4123
      %v4125 = vrot.slane %v2363, %v4124
      %v4126 = vlaneseq
      %v4127 = vshrl.u32 %v4126, 7
      %v4128 = vsub.s32 1, %v4127
      %v4129 = vrot.slane %v2371, %v4128
      %v4130 = vlaneseq
      %v4131 = vshrl.u32 %v4130, 7
      %v4132 = vsub.s32 1, %v4131
      %v4133 = vrot.slane %v2370, %v4132
      %v4134 = vlaneseq
      %v4135 = vshrl.u32 %v4134, 7
      %v4136 = vsub.s32 1, %v4135
      %v4137 = vrot.slane %v2372, %v4136
      %v4138 = vlaneseq
      %v4139 = vshrl.u32 %v4138, 7
      %v4140 = vsub.s32 1, %v4139
      %v4141 = vrot.slane %v2428, %v4140
      %v4142 = vlaneseq
      %v4143 = vshrl.u32 %v4142, 7
      %v4144 = vsub.s32 1, %v4143
      %v4145 = vrot.slane %v2436, %v4144
      %v4146 = vlaneseq
      %v4147 = vshrl.u32 %v4146, 7
      %v4148 = vsub.s32 1, %v4147
      %v4149 = vrot.slane %v2435, %v4148
      %v4150 = vlaneseq
      %v4151 = vshrl.u32 %v4150, 7
      %v4152 = vsub.s32 1, %v4151
      %v4153 = vrot.slane %v2437, %v4152
      %v4154 = vlaneseq
      %v4155 = vshrl.u32 %v4154, 7
      %v4156 = vsub.s32 1, %v4155
      %v4157 = vrot.slane %v2445, %v4156
      %v4158 = vlaneseq
      %v4159 = vshrl.u32 %v4158, 7
      %v4160 = vsub.s32 1, %v4159
      %v4161 = vrot.slane %v2453, %v4160
      %v4162 = vlaneseq
      %v4163 = vshrl.u32 %v4162, 7
      %v4164 = vsub.s32 1, %v4163
      %v4165 = vrot.slane %v2452, %v4164
      %v4166 = vlaneseq
      %v4167 = vshrl.u32 %v4166, 7
      %v4168 = vsub.s32 1, %v4167
      %v4169 = vrot.slane %v2454, %v4168
      %v4170 = vlaneseq
      %v4171 = vshrl.u32 %v4170, 7
      %v4172 = vsub.s32 1, %v4171
      %v4173 = vrot.slane %v2510, %v4172
      %v4174 = vlaneseq
      %v4175 = vshrl.u32 %v4174, 7
      %v4176 = vsub.s32 1, %v4175
      %v4177 = vrot.slane %v2518, %v4176
      %v4178 = vlaneseq
      %v4179 = vshrl.u32 %v4178, 7
      %v4180 = vsub.s32 1, %v4179
      %v4181 = vrot.slane %v2517, %v4180
      %v4182 = vlaneseq
      %v4183 = vshrl.u32 %v4182, 7
      %v4184 = vsub.s32 1, %v4183
      %v4185 = vrot.slane %v2519, %v4184
      %v4186 = vlaneseq
      %v4187 = vshrl.u32 %v4186, 7
      %v4188 = vsub.s32 1, %v4187
      %v4189 = vrot.slane %v2527, %v4188
      %v4190 = vlaneseq
      %v4191 = vshrl.u32 %v4190, 7
      %v4192 = vsub.s32 1, %v4191
      %v4193 = vrot.slane %v2535, %v4192
      %v4194 = vlaneseq
      %v4195 = vshrl.u32 %v4194, 7
      %v4196 = vsub.s32 1, %v4195
      %v4197 = vrot.slane %v2534, %v4196
      %v4198 = vlaneseq
      %v4199 = vshrl.u32 %v4198, 7
      %v4200 = vsub.s32 1, %v4199
      %v4201 = vrot.slane %v2536, %v4200
      %v4202 = vlaneseq
      %v4203 = vshrl.u32 %v4202, 7
      %v4204 = vsub.s32 1, %v4203
      %v4205 = vrot.slane %v2592, %v4204
      %v4206 = vlaneseq
      %v4207 = vshrl.u32 %v4206, 7
      %v4208 = vsub.s32 1, %v4207
      %v4209 = vrot.slane %v2600, %v4208
      %v4210 = vlaneseq
      %v4211 = vshrl.u32 %v4210, 7
      %v4212 = vsub.s32 1, %v4211
      %v4213 = vrot.slane %v2599, %v4212
      %v4214 = vlaneseq
      %v4215 = vshrl.u32 %v4214, 7
      %v4216 = vsub.s32 1, %v4215
      %v4217 = vrot.slane %v2601, %v4216
      %v4218 = vlaneseq
      %v4219 = vshrl.u32 %v4218, 7
      %v4220 = vsub.s32 1, %v4219
      %v4221 = vrot.slane %v2609, %v4220
      %v4222 = vlaneseq
      %v4223 = vshrl.u32 %v4222, 7
      %v4224 = vsub.s32 1, %v4223
      %v4225 = vrot.slane %v2617, %v4224
      %v4226 = vlaneseq
      %v4227 = vshrl.u32 %v4226, 7
      %v4228 = vsub.s32 1, %v4227
      %v4229 = vrot.slane %v2616, %v4228
      %v4230 = vlaneseq
      %v4231 = vshrl.u32 %v4230, 7
      %v4232 = vsub.s32 1, %v4231
      %v4233 = vrot.slane %v2618, %v4232
      %v4234 = vlaneseq
      %v4235 = vshrl.u32 %v4234, 7
      %v4236 = vsub.s32 1, %v4235
      %v4237 = vrot.slane %v2674, %v4236
      %v4238 = vlaneseq
      %v4239 = vshrl.u32 %v4238, 7
      %v4240 = vsub.s32 1, %v4239
      %v4241 = vrot.slane %v2682, %v4240
      %v4242 = vlaneseq
      %v4243 = vshrl.u32 %v4242, 7
      %v4244 = vsub.s32 1, %v4243
      %v4245 = vrot.slane %v2681, %v4244
      %v4246 = vlaneseq
      %v4247 = vshrl.u32 %v4246, 7
      %v4248 = vsub.s32 1, %v4247
      %v4249 = vrot.slane %v2683, %v4248
      %v4250 = vlaneseq
      %v4251 = vshrl.u32 %v4250, 7
      %v4252 = vsub.s32 1, %v4251
      %v4253 = vrot.slane %v2691, %v4252
      %v4254 = vlaneseq
      %v4255 = vshrl.u32 %v4254, 7
      %v4256 = vsub.s32 1, %v4255
      %v4257 = vrot.slane %v2699, %v4256
      %v4258 = vlaneseq
      %v4259 = vshrl.u32 %v4258, 7
      %v4260 = vsub.s32 1, %v4259
      %v4261 = vrot.slane %v2698, %v4260
      %v4262 = vlaneseq
      %v4263 = vshrl.u32 %v4262, 7
      %v4264 = vsub.s32 1, %v4263
      %v4265 = vrot.slane %v2700, %v4264
      %v4266 = vlaneseq
      %v4267 = vshrl.u32 %v4266, 7
      %v4268 = vsub.s32 1, %v4267
      %v4269 = vrot.slane %v2756, %v4268
      %v4270 = vlaneseq
      %v4271 = vshrl.u32 %v4270, 7
      %v4272 = vsub.s32 1, %v4271
      %v4273 = vrot.slane %v2764, %v4272
      %v4274 = vlaneseq
      %v4275 = vshrl.u32 %v4274, 7
      %v4276 = vsub.s32 1, %v4275
      %v4277 = vrot.slane %v2763, %v4276
      %v4278 = vlaneseq
      %v4279 = vshrl.u32 %v4278, 7
      %v4280 = vsub.s32 1, %v4279
      %v4281 = vrot.slane %v2765, %v4280
      %v4282 = vlaneseq
      %v4283 = vshrl.u32 %v4282, 7
      %v4284 = vsub.s32 1, %v4283
      %v4285 = vrot.slane %v2773, %v4284
      %v4286 = vlaneseq
      %v4287 = vshrl.u32 %v4286, 7
      %v4288 = vsub.s32 1, %v4287
      %v4289 = vrot.slane %v2781, %v4288
      %v4290 = vlaneseq
      %v4291 = vshrl.u32 %v4290, 7
      %v4292 = vsub.s32 1, %v4291
      %v4293 = vrot.slane %v2780, %v4292
      %v4294 = vlaneseq
      %v4295 = vshrl.u32 %v4294, 7
      %v4296 = vsub.s32 1, %v4295
      %v4297 = vrot.slane %v2782, %v4296
      %v4298 = vlaneseq
      %v4299 = vshrl.u32 %v4298, 7
      %v4300 = vsub.s32 1, %v4299
      %v4301 = vrot.slane %v2838, %v4300
      %v4302 = vlaneseq
      %v4303 = vshrl.u32 %v4302, 7
      %v4304 = vsub.s32 1, %v4303
      %v4305 = vrot.slane %v2846, %v4304
      %v4306 = vlaneseq
      %v4307 = vshrl.u32 %v4306, 7
      %v4308 = vsub.s32 1, %v4307
      %v4309 = vrot.slane %v2845, %v4308
      %v4310 = vlaneseq
      %v4311 = vshrl.u32 %v4310, 7
      %v4312 = vsub.s32 1, %v4311
      %v4313 = vrot.slane %v2847, %v4312
      %v4314 = vlaneseq
      %v4315 = vshrl.u32 %v4314, 7
      %v4316 = vsub.s32 1, %v4315
      %v4317 = vrot.slane %v2855, %v4316
      %v4318 = vlaneseq
      %v4319 = vshrl.u32 %v4318, 7
      %v4320 = vsub.s32 1, %v4319
      %v4321 = vrot.slane %v2863, %v4320
      %v4322 = vlaneseq
      %v4323 = vshrl.u32 %v4322, 7
      %v4324 = vsub.s32 1, %v4323
      %v4325 = vrot.slane %v2862, %v4324
      %v4326 = vlaneseq
      %v4327 = vshrl.u32 %v4326, 7
      %v4328 = vsub.s32 1, %v4327
      %v4329 = vrot.slane %v2864, %v4328
      %v4330 = vlaneseq
      %v4331 = vshrl.u32 %v4330, 7
      %v4332 = vsub.s32 1, %v4331
      %v4333 = vrot.slane %v2920, %v4332
      %v4334 = vlaneseq
      %v4335 = vshrl.u32 %v4334, 7
      %v4336 = vsub.s32 1, %v4335
      %v4337 = vrot.slane %v2928, %v4336
      %v4338 = vlaneseq
      %v4339 = vshrl.u32 %v4338, 7
      %v4340 = vsub.s32 1, %v4339
      %v4341 = vrot.slane %v2927, %v4340
      %v4342 = vlaneseq
      %v4343 = vshrl.u32 %v4342, 7
      %v4344 = vsub.s32 1, %v4343
      %v4345 = vrot.slane %v2929, %v4344
      %v4346 = vlaneseq
      %v4347 = vshrl.u32 %v4346, 7
      %v4348 = vsub.s32 1, %v4347
      %v4349 = vrot.slane %v2937, %v4348
      %v4350 = vlaneseq
      %v4351 = vshrl.u32 %v4350, 7
      %v4352 = vsub.s32 1, %v4351
      %v4353 = vrot.slane %v2945, %v4352
      %v4354 = vlaneseq
      %v4355 = vshrl.u32 %v4354, 7
      %v4356 = vsub.s32 1, %v4355
      %v4357 = vrot.slane %v2944, %v4356
      %v4358 = vlaneseq
      %v4359 = vshrl.u32 %v4358, 7
      %v4360 = vsub.s32 1, %v4359
      %v4361 = vrot.slane %v2946, %v4360
      %v4362 = vsel %vm3251, %v4113, %v4109
      %v4363 = vsel %vm3253, %v4117, %v4362
      %v4364 = vsel %vm3255, %v4121, %v4363
      %v4365 = vsel %vm3257, %v4125, %v4364
      %v4366 = vsel %vm3259, %v4129, %v4365
      %v4367 = vsel %vm3261, %v4133, %v4366
      %v4368 = vsel %vm3263, %v4137, %v4367
      %v4369 = vsel %vm3251, %v4145, %v4141
      %v4370 = vsel %vm3253, %v4149, %v4369
      %v4371 = vsel %vm3255, %v4153, %v4370
      %v4372 = vsel %vm3257, %v4157, %v4371
      %v4373 = vsel %vm3259, %v4161, %v4372
      %v4374 = vsel %vm3261, %v4165, %v4373
      %v4375 = vsel %vm3263, %v4169, %v4374
      %v4376 = vsel %vm3251, %v4177, %v4173
      %v4377 = vsel %vm3253, %v4181, %v4376
      %v4378 = vsel %vm3255, %v4185, %v4377
      %v4379 = vsel %vm3257, %v4189, %v4378
      %v4380 = vsel %vm3259, %v4193, %v4379
      %v4381 = vsel %vm3261, %v4197, %v4380
      %v4382 = vsel %vm3263, %v4201, %v4381
      %v4383 = vsel %vm3251, %v4209, %v4205
      %v4384 = vsel %vm3253, %v4213, %v4383
      %v4385 = vsel %vm3255, %v4217, %v4384
      %v4386 = vsel %vm3257, %v4221, %v4385
      %v4387 = vsel %vm3259, %v4225, %v4386
      %v4388 = vsel %vm3261, %v4229, %v4387
      %v4389 = vsel %vm3263, %v4233, %v4388
      %v4390 = vsel %vm3251, %v4241, %v4237
      %v4391 = vsel %vm3253, %v4245, %v4390
      %v4392 = vsel %vm3255, %v4249, %v4391
      %v4393 = vsel %vm3257, %v4253, %v4392
      %v4394 = vsel %vm3259, %v4257, %v4393
      %v4395 = vsel %vm3261, %v4261, %v4394
      %v4396 = vsel %vm3263, %v4265, %v4395
      %v4397 = vsel %vm3251, %v4273, %v4269
      %v4398 = vsel %vm3253, %v4277, %v4397
      %v4399 = vsel %vm3255, %v4281, %v4398
      %v4400 = vsel %vm3257, %v4285, %v4399
      %v4401 = vsel %vm3259, %v4289, %v4400
      %v4402 = vsel %vm3261, %v4293, %v4401
      %v4403 = vsel %vm3263, %v4297, %v4402
      %v4404 = vsel %vm3251, %v4305, %v4301
      %v4405 = vsel %vm3253, %v4309, %v4404
      %v4406 = vsel %vm3255, %v4313, %v4405
      %v4407 = vsel %vm3257, %v4317, %v4406
      %v4408 = vsel %vm3259, %v4321, %v4407
      %v4409 = vsel %vm3261, %v4325, %v4408
      %v4410 = vsel %vm3263, %v4329, %v4409
      %v4411 = vsel %vm3251, %v4337, %v4333
      %v4412 = vsel %vm3253, %v4341, %v4411
      %v4413 = vsel %vm3255, %v4345, %v4412
      %v4414 = vsel %vm3257, %v4349, %v4413
      %v4415 = vsel %vm3259, %v4353, %v4414
      %v4416 = vsel %vm3261, %v4357, %v4415
      %v4417 = vsel %vm3263, %v4361, %v4416
      %4418 = vrot.lane.b32.xlu0 %v4368, 64
      %v4419 = vpop.permute.xlu0 %4418
      %4420 = vrot.lane.b32.xlu0 %v4375, 64
      %v4421 = vpop.permute.xlu0 %4420
      %4422 = vrot.lane.b32.xlu0 %v4382, 64
      %v4423 = vpop.permute.xlu0 %4422
      %4424 = vrot.lane.b32.xlu0 %v4389, 64
      %v4425 = vpop.permute.xlu0 %4424
      %4426 = vrot.lane.b32.xlu0 %v4396, 64
      %v4427 = vpop.permute.xlu0 %4426
      %4428 = vrot.lane.b32.xlu0 %v4403, 64
      %v4429 = vpop.permute.xlu0 %4428
      %4430 = vrot.lane.b32.xlu0 %v4410, 64
      %v4431 = vpop.permute.xlu0 %4430
      %4432 = vrot.lane.b32.xlu0 %v4417, 64
      %v4433 = vpop.permute.xlu0 %4432
      %v4442 = vlaneseq
      %v4443 = vshrl.u32 %v4442, 7
      %v4444 = vsub.s32 0, %v4443
      %v4445 = vrot.slane %v2379, %v4444
      %v4446 = vlaneseq
      %v4447 = vshrl.u32 %v4446, 7
      %v4448 = vsub.s32 0, %v4447
      %v4449 = vrot.slane %v2461, %v4448
      %v4450 = vlaneseq
      %v4451 = vshrl.u32 %v4450, 7
      %v4452 = vsub.s32 0, %v4451
      %v4453 = vrot.slane %v2543, %v4452
      %v4454 = vlaneseq
      %v4455 = vshrl.u32 %v4454, 7
      %v4456 = vsub.s32 0, %v4455
      %v4457 = vrot.slane %v2625, %v4456
      %v4458 = vlaneseq
      %v4459 = vshrl.u32 %v4458, 7
      %v4460 = vsub.s32 0, %v4459
      %v4461 = vrot.slane %v2707, %v4460
      %v4462 = vlaneseq
      %v4463 = vshrl.u32 %v4462, 7
      %v4464 = vsub.s32 0, %v4463
      %v4465 = vrot.slane %v2789, %v4464
      %v4466 = vlaneseq
      %v4467 = vshrl.u32 %v4466, 7
      %v4468 = vsub.s32 0, %v4467
      %v4469 = vrot.slane %v2871, %v4468
      %v4470 = vlaneseq
      %v4471 = vshrl.u32 %v4470, 7
      %v4472 = vsub.s32 0, %v4471
      %v4473 = vrot.slane %v2953, %v4472
      %v4474 = vsel %vm3251, %v3781, %v3777
      %v4475 = vsel %vm3253, %v3785, %v4474
      %v4476 = vsel %vm3255, %v3789, %v4475
      %v4477 = vsel %vm3257, %v3793, %v4476
      %v4478 = vsel %vm3259, %v3797, %v4477
      %v4479 = vsel %vm3261, %v3801, %v4478
      %v4480 = vsel %vm3263, %v4445, %v4479
      %v4481 = vsel %vm3251, %v3813, %v3809
      %v4482 = vsel %vm3253, %v3817, %v4481
      %v4483 = vsel %vm3255, %v3821, %v4482
      %v4484 = vsel %vm3257, %v3825, %v4483
      %v4485 = vsel %vm3259, %v3829, %v4484
      %v4486 = vsel %vm3261, %v3833, %v4485
      %v4487 = vsel %vm3263, %v4449, %v4486
      %v4488 = vsel %vm3251, %v3845, %v3841
      %v4489 = vsel %vm3253, %v3849, %v4488
      %v4490 = vsel %vm3255, %v3853, %v4489
      %v4491 = vsel %vm3257, %v3857, %v4490
      %v4492 = vsel %vm3259, %v3861, %v4491
      %v4493 = vsel %vm3261, %v3865, %v4492
      %v4494 = vsel %vm3263, %v4453, %v4493
      %v4495 = vsel %vm3251, %v3877, %v3873
      %v4496 = vsel %vm3253, %v3881, %v4495
      %v4497 = vsel %vm3255, %v3885, %v4496
      %v4498 = vsel %vm3257, %v3889, %v4497
      %v4499 = vsel %vm3259, %v3893, %v4498
      %v4500 = vsel %vm3261, %v3897, %v4499
      %v4501 = vsel %vm3263, %v4457, %v4500
      %v4502 = vsel %vm3251, %v3909, %v3905
      %v4503 = vsel %vm3253, %v3913, %v4502
      %v4504 = vsel %vm3255, %v3917, %v4503
      %v4505 = vsel %vm3257, %v3921, %v4504
      %v4506 = vsel %vm3259, %v3925, %v4505
      %v4507 = vsel %vm3261, %v3929, %v4506
      %v4508 = vsel %vm3263, %v4461, %v4507
      %v4509 = vsel %vm3251, %v3941, %v3937
      %v4510 = vsel %vm3253, %v3945, %v4509
      %v4511 = vsel %vm3255, %v3949, %v4510
      %v4512 = vsel %vm3257, %v3953, %v4511
      %v4513 = vsel %vm3259, %v3957, %v4512
      %v4514 = vsel %vm3261, %v3961, %v4513
      %v4515 = vsel %vm3263, %v4465, %v4514
      %v4516 = vsel %vm3251, %v3973, %v3969
      %v4517 = vsel %vm3253, %v3977, %v4516
      %v4518 = vsel %vm3255, %v3981, %v4517
      %v4519 = vsel %vm3257, %v3985, %v4518
      %v4520 = vsel %vm3259, %v3989, %v4519
      %v4521 = vsel %vm3261, %v3993, %v4520
      %v4522 = vsel %vm3263, %v4469, %v4521
      %v4523 = vsel %vm3251, %v4005, %v4001
      %v4524 = vsel %vm3253, %v4009, %v4523
      %v4525 = vsel %vm3255, %v4013, %v4524
      %v4526 = vsel %vm3257, %v4017, %v4525
      %v4527 = vsel %vm3259, %v4021, %v4526
      %v4528 = vsel %vm3261, %v4025, %v4527
      %v4529 = vsel %vm3263, %v4473, %v4528
      %4530 = vrot.lane.b32.xlu0 %v4480, 80
      %v4531 = vpop.permute.xlu0 %4530
      %4532 = vrot.lane.b32.xlu0 %v4487, 80
      %v4533 = vpop.permute.xlu0 %4532
      %4534 = vrot.lane.b32.xlu0 %v4494, 80
      %v4535 = vpop.permute.xlu0 %4534
      %4536 = vrot.lane.b32.xlu0 %v4501, 80
      %v4537 = vpop.permute.xlu0 %4536
      %4538 = vrot.lane.b32.xlu0 %v4508, 80
      %v4539 = vpop.permute.xlu0 %4538
      %4540 = vrot.lane.b32.xlu0 %v4515, 80
      %v4541 = vpop.permute.xlu0 %4540
      %4542 = vrot.lane.b32.xlu0 %v4522, 80
      %v4543 = vpop.permute.xlu0 %4542
      %4544 = vrot.lane.b32.xlu0 %v4529, 80
      %v4545 = vpop.permute.xlu0 %4544
      %v4554 = vlaneseq
      %v4555 = vshrl.u32 %v4554, 7
      %v4556 = vsub.s32 0, %v4555
      %v4557 = vrot.slane %v2961, %v4556
      %v4558 = vlaneseq
      %v4559 = vshrl.u32 %v4558, 7
      %v4560 = vsub.s32 0, %v4559
      %v4561 = vrot.slane %v2969, %v4560
      %v4562 = vlaneseq
      %v4563 = vshrl.u32 %v4562, 7
      %v4564 = vsub.s32 0, %v4563
      %v4565 = vrot.slane %v2968, %v4564
      %v4566 = vlaneseq
      %v4567 = vshrl.u32 %v4566, 7
      %v4568 = vsub.s32 0, %v4567
      %v4569 = vrot.slane %v2970, %v4568
      %v4570 = vlaneseq
      %v4571 = vshrl.u32 %v4570, 7
      %v4572 = vsub.s32 0, %v4571
      %v4573 = vrot.slane %v2978, %v4572
      %v4574 = vlaneseq
      %v4575 = vshrl.u32 %v4574, 7
      %v4576 = vsub.s32 0, %v4575
      %v4577 = vrot.slane %v2986, %v4576
      %v4578 = vlaneseq
      %v4579 = vshrl.u32 %v4578, 7
      %v4580 = vsub.s32 0, %v4579
      %v4581 = vrot.slane %v2985, %v4580
      %v4582 = vlaneseq
      %v4583 = vshrl.u32 %v4582, 7
      %v4584 = vsub.s32 0, %v4583
      %v4585 = vrot.slane %v2987, %v4584
      %v4586 = vsel %vm3251, %v4561, %v4557
      %v4587 = vsel %vm3253, %v4565, %v4586
      %v4588 = vsel %vm3255, %v4569, %v4587
      %v4589 = vsel %vm3257, %v4573, %v4588
      %v4590 = vsel %vm3259, %v4577, %v4589
      %v4591 = vsel %vm3261, %v4581, %v4590
      %v4592 = vsel %vm3263, %v4585, %v4591
      %4593 = vrot.lane.b32.xlu0 %v3271, 96
      %v4594 = vpop.permute.xlu0 %4593
      %4595 = vrot.lane.b32.xlu0 %v3278, 96
      %v4596 = vpop.permute.xlu0 %4595
      %4597 = vrot.lane.b32.xlu0 %v3285, 96
      %v4598 = vpop.permute.xlu0 %4597
      %4599 = vrot.lane.b32.xlu0 %v3292, 96
      %v4600 = vpop.permute.xlu0 %4599
      %4601 = vrot.lane.b32.xlu0 %v3299, 96
      %v4602 = vpop.permute.xlu0 %4601
      %4603 = vrot.lane.b32.xlu0 %v3306, 96
      %v4604 = vpop.permute.xlu0 %4603
      %4605 = vrot.lane.b32.xlu0 %v3313, 96
      %v4606 = vpop.permute.xlu0 %4605
      %4607 = vrot.lane.b32.xlu0 %v4592, 96
      %v4608 = vpop.permute.xlu0 %4607
      %v4617 = vlaneseq
      %v4618 = vshrl.u32 %v4617, 7
      %v4619 = vsub.s32 1, %v4618
      %v4620 = vrot.slane %v2961, %v4619
      %v4621 = vlaneseq
      %v4622 = vshrl.u32 %v4621, 7
      %v4623 = vsub.s32 1, %v4622
      %v4624 = vrot.slane %v2969, %v4623
      %v4625 = vlaneseq
      %v4626 = vshrl.u32 %v4625, 7
      %v4627 = vsub.s32 1, %v4626
      %v4628 = vrot.slane %v2968, %v4627
      %v4629 = vlaneseq
      %v4630 = vshrl.u32 %v4629, 7
      %v4631 = vsub.s32 1, %v4630
      %v4632 = vrot.slane %v2970, %v4631
      %v4633 = vlaneseq
      %v4634 = vshrl.u32 %v4633, 7
      %v4635 = vsub.s32 1, %v4634
      %v4636 = vrot.slane %v2978, %v4635
      %v4637 = vlaneseq
      %v4638 = vshrl.u32 %v4637, 7
      %v4639 = vsub.s32 1, %v4638
      %v4640 = vrot.slane %v2986, %v4639
      %v4641 = vlaneseq
      %v4642 = vshrl.u32 %v4641, 7
      %v4643 = vsub.s32 1, %v4642
      %v4644 = vrot.slane %v2985, %v4643
      %v4645 = vlaneseq
      %v4646 = vshrl.u32 %v4645, 7
      %v4647 = vsub.s32 1, %v4646
      %v4648 = vrot.slane %v2987, %v4647
      %v4649 = vsel %vm3251, %v4624, %v4620
      %v4650 = vsel %vm3253, %v4628, %v4649
      %v4651 = vsel %vm3255, %v4632, %v4650
      %v4652 = vsel %vm3257, %v4636, %v4651
      %v4653 = vsel %vm3259, %v4640, %v4652
      %v4654 = vsel %vm3261, %v4644, %v4653
      %v4655 = vsel %vm3263, %v4648, %v4654
      %4656 = vrot.lane.b32.xlu0 %v3591, 112
      %v4657 = vpop.permute.xlu0 %4656
      %4658 = vrot.lane.b32.xlu0 %v3598, 112
      %v4659 = vpop.permute.xlu0 %4658
      %4660 = vrot.lane.b32.xlu0 %v3605, 112
      %v4661 = vpop.permute.xlu0 %4660
      %4662 = vrot.lane.b32.xlu0 %v3612, 112
      %v4663 = vpop.permute.xlu0 %4662
      %4664 = vrot.lane.b32.xlu0 %v3619, 112
      %v4665 = vpop.permute.xlu0 %4664
      %4666 = vrot.lane.b32.xlu0 %v3626, 112
      %v4667 = vpop.permute.xlu0 %4666
      %4668 = vrot.lane.b32.xlu0 %v3633, 112
      %v4669 = vpop.permute.xlu0 %4668
      %4670 = vrot.lane.b32.xlu0 %v4655, 112
      %v4671 = vpop.permute.xlu0 %4670
      %v4680 = vlaneseq
      %v4681 = vshrl.u32 %v4680, 7
      %v4682 = vsub.s32 0, %v4681
      %v4683 = vrot.slane %v2994, %v4682
      %v4684 = vsel %vm3251, %v4565, %v4561
      %v4685 = vsel %vm3253, %v4569, %v4684
      %v4686 = vsel %vm3255, %v4573, %v4685
      %v4687 = vsel %vm3257, %v4577, %v4686
      %v4688 = vsel %vm3259, %v4581, %v4687
      %v4689 = vsel %vm3261, %v4585, %v4688
      %v4690 = vsel %vm3263, %v4683, %v4689
      %v4691 = vsel %vm387, %v3264, %v3635
      %v4692 = vsel %vm387, %v3271, %v3637
      %v4693 = vsel %vm387, %v3278, %v3639
      %v4694 = vsel %vm387, %v3285, %v3641
      %v4695 = vsel %vm387, %v3292, %v3643
      %v4696 = vsel %vm387, %v3299, %v3645
      %v4697 = vsel %vm387, %v3306, %v3647
      %v4698 = vsel %vm387, %v3313, %v3649
      %v4699 = vsel %vm443, %v4691, %v3747
      %v4700 = vsel %vm443, %v4692, %v3749
      %v4701 = vsel %vm443, %v4693, %v3751
      %v4702 = vsel %vm443, %v4694, %v3753
      %v4703 = vsel %vm443, %v4695, %v3755
      %v4704 = vsel %vm443, %v4696, %v3757
      %v4705 = vsel %vm443, %v4697, %v3759
      %v4706 = vsel %vm443, %v4698, %v3761
      %vm4707 = vcmask 392192
      %v4708 = vsel %vm4707, %v4699, %v4083
      %v4709 = vsel %vm4707, %v4700, %v4085
      %v4710 = vsel %vm4707, %v4701, %v4087
      %v4711 = vsel %vm4707, %v4702, %v4089
      %v4712 = vsel %vm4707, %v4703, %v4091
      %v4713 = vsel %vm4707, %v4704, %v4093
      %v4714 = vsel %vm4707, %v4705, %v4095
      %v4715 = vsel %vm4707, %v4706, %v4097
      %vm4716 = vcmask 523264
      %v4717 = vsel %vm4716, %v4708, %v4419
      %v4718 = vsel %vm4716, %v4709, %v4421
      %v4719 = vsel %vm4716, %v4710, %v4423
      %v4720 = vsel %vm4716, %v4711, %v4425
      %v4721 = vsel %vm4716, %v4712, %v4427
      %v4722 = vsel %vm4716, %v4713, %v4429
      %v4723 = vsel %vm4716, %v4714, %v4431
      %v4724 = vsel %vm4716, %v4715, %v4433
      %vm4725 = vcmask 654336
      %v4726 = vsel %vm4725, %v4717, %v4531
      %v4727 = vsel %vm4725, %v4718, %v4533
      %v4728 = vsel %vm4725, %v4719, %v4535
      %v4729 = vsel %vm4725, %v4720, %v4537
      %v4730 = vsel %vm4725, %v4721, %v4539
      %v4731 = vsel %vm4725, %v4722, %v4541
      %v4732 = vsel %vm4725, %v4723, %v4543
      %v4733 = vsel %vm4725, %v4724, %v4545
      %vm4734 = vcmask 785408
      %v4735 = vsel %vm4734, %v4726, %v4594
      %v4736 = vsel %vm4734, %v4727, %v4596
      %v4737 = vsel %vm4734, %v4728, %v4598
      %v4738 = vsel %vm4734, %v4729, %v4600
      %v4739 = vsel %vm4734, %v4730, %v4602
      %v4740 = vsel %vm4734, %v4731, %v4604
      %v4741 = vsel %vm4734, %v4732, %v4606
      %v4742 = vsel %vm4734, %v4733, %v4608
      %vm4743 = vcmask 916480
      %v4744 = vsel %vm4743, %v4735, %v4657
      %v4745 = vsel %vm4743, %v4736, %v4659
      %v4746 = vsel %vm4743, %v4737, %v4661
      %v4747 = vsel %vm4743, %v4738, %v4663
      %v4748 = vsel %vm4743, %v4739, %v4665
      %v4749 = vsel %vm4743, %v4740, %v4667
      %v4750 = vsel %vm4743, %v4741, %v4669
      %v4751 = vsel %vm4743, %v4742, %v4671
      %v4752 = vld [vmem:[%s3] sm:$0xff]
      %v4753 = vld [vmem:[%s3 + $0x8] sm:$0xff]
      %v4754 = vld [vmem:[%s3 + $0x10] sm:$0xff]
      %v4755 = vld [vmem:[%s3 + $0x18] sm:$0xff]
      %v4756 = vld [vmem:[%s3 + $0x20] sm:$0xff]
      %v4757 = vld [vmem:[%s3 + $0x28] sm:$0xff]
      %v4758 = vld [vmem:[%s3 + $0x30] sm:$0xff]
      %v4759 = vld [vmem:[%s3 + $0x38] sm:$0xff]
      %v4760 = vld [vmem:[%s3 + $0x40] sm:$0xff]
      %v4761 = vld [vmem:[%s3 + $0x48] sm:$0xff]
      %v4762 = vld [vmem:[%s3 + $0x50] sm:$0xff]
      %v4763 = vld [vmem:[%s3 + $0x58] sm:$0xff]
      %v4764 = vld [vmem:[%s3 + $0x60] sm:$0xff]
      %v4765 = vld [vmem:[%s3 + $0x68] sm:$0xff]
      %v4766 = vld [vmem:[%s3 + $0x70] sm:$0xff]
      %v4767 = vld [vmem:[%s3 + $0x78] sm:$0xff]
      %v4768 = vld [vmem:[%s3 + $0x80] sm:$0xff]
      %v4769 = vld [vmem:[%s3 + $0x88] sm:$0xff]
      %v4770 = vld [vmem:[%s4] sm:$0x1]
      %v4772 = vlaneseq
      %v4773 = vshrl.u32 %v4772, 7
      %v4774 = vsub.s32 0, %v4773
      %v4775 = vrot.slane %v4770, %v4774
      %v4777 = vsel %vm387, %v3703, 0
      %v4779 = vsel %vm387, %v3710, 0
      %v4781 = vsel %vm387, %v3717, 0
      %v4783 = vsel %vm387, %v3724, 0
      %v4785 = vsel %vm387, %v3731, 0
      %v4787 = vsel %vm387, %v3738, 0
      %v4789 = vsel %vm387, %v3745, 0
      %v4791 = vsel %vm387, %v4690, 0
      %4793 = vmatprep.subr.mxu0 0.0
      %4794 = vmatpush1.msra.mxu0 %v4752
      %4795 = vmatprep.subr.mxu0 0.0
      %4796 = vmatpush1.msra.mxu0 %v4753
      %4797 = vmatprep.subr.mxu0 0.0
      %4798 = vmatpush1.msra.mxu0 %v4754
      %4799 = vmatprep.subr.mxu0 0.0
      %4800 = vmatpush1.msra.mxu0 %v4755
      %4801 = vmatprep.subr.mxu0 0.0
      %4802 = vmatpush1.msra.mxu0 %v4756
      %4803 = vmatprep.subr.mxu0 0.0
      %4804 = vmatpush1.msra.mxu0 %v4757
      %4805 = vmatprep.subr.mxu0 0.0
      %4806 = vmatpush1.msra.mxu0 %v4758
      %4807 = vmatprep.subr.mxu0 0.0
      %4808 = vmatpush1.msra.mxu0 %v4759
      %4809 = vmatprep.subr.mxu0 0.0
      %4810 = vmatpush1.msra.mxu0 %v4760
      %4811 = vmatprep.subr.mxu0 0.0
      %4812 = vmatpush1.msra.mxu0 %v4761
      %4813 = vmatprep.subr.mxu0 0.0
      %4814 = vmatpush1.msra.mxu0 %v4762
      %4815 = vmatprep.subr.mxu0 0.0
      %4816 = vmatpush1.msra.mxu0 %v4763
      %4817 = vmatprep.subr.mxu0 0.0
      %4818 = vmatpush1.msra.mxu0 %v4764
      %4819 = vmatprep.subr.mxu0 0.0
      %4820 = vmatpush1.msra.mxu0 %v4765
      %4821 = vmatprep.subr.mxu0 0.0
      %4822 = vmatpush1.msra.mxu0 %v4766
      %4823 = vmatprep.subr.mxu0 0.0
      %4824 = vmatpush1.msra.mxu0 %v4767
      %4825 = vmatprep.subr.mxu0 0.0
      %4826 = vmatpush1.msra.mxu0 %v4768
      %4827 = vmatprep.subr.mxu0 0.0
      %4828 = vmatpush1.msra.mxu0 %v4769
      %4829 = vmatprep.subr.mxu0 0.0
      %4830 = vmatpush1.msra.mxu0 0.0
      %4831 = vmatprep.subr.mxu0 0.0
      %4832 = vmatpush1.msra.mxu0 0.0
      %4833 = vmatprep.subr.mxu0 0.0
      %4834 = vmatpush1.msra.mxu0 0.0
      %4835 = vmatprep.subr.mxu0 0.0
      %4836 = vmatpush1.msra.mxu0 0.0
      %4837 = vmatprep.subr.mxu0 0.0
      %4838 = vmatpush1.msra.mxu0 0.0
      %4839 = vmatprep.subr.mxu0 0.0
      %4840 = vmatpush1.msra.mxu0 0.0
      %4841 = vmatprep.subr.mxu0 0.0
      %4842 = vmatpush1.msra.mxu0 0.0
      %4843 = vmatprep.subr.mxu0 0.0
      %4844 = vmatpush1.msra.mxu0 0.0
      %4845 = vmatprep.subr.mxu0 0.0
      %4846 = vmatpush1.msra.mxu0 0.0
      %4847 = vmatprep.subr.mxu0 0.0
      %4848 = vmatpush1.msra.mxu0 0.0
      %4849 = vmatprep.subr.mxu0 0.0
      %4850 = vmatpush1.msra.mxu0 0.0
      %4851 = vmatprep.subr.mxu0 0.0
      %4852 = vmatpush1.msra.mxu0 0.0
      %4853 = vmatprep.subr.mxu0 0.0
      %4854 = vmatpush1.msra.mxu0 0.0
      %4855 = vmatprep.subr.mxu0 0.0
      %4856 = vmatpush1.msra.mxu0 0.0
      %4857 = vmatprep.mubr.f32.mxu0 %v4777
      %4858 = vmatmul.mubr.f32.gmra.mrb[0].mxu0 %v4744
      %v4859 = vpop.f32.mrb[0].mxu0
      %v4860 = vadd.f32 %v4775, %v4859
      %v4861 = vpop.f32.mrb[0].mxu0
      %4862 = vmatprep.mubr.f32.mxu0 %v4779
      %4863 = vmatmul.mubr.f32.gmra.mrb[0].mxu0 %v4745
      %v4864 = vpop.f32.mrb[0].mxu0
      %v4865 = vadd.f32 %v4775, %v4864
      %v4866 = vpop.f32.mrb[0].mxu0
      %4867 = vmatprep.mubr.f32.mxu0 %v4781
      %4868 = vmatmul.mubr.f32.gmra.mrb[0].mxu0 %v4746
      %v4869 = vpop.f32.mrb[0].mxu0
      %v4870 = vadd.f32 %v4775, %v4869
      %v4871 = vpop.f32.mrb[0].mxu0
      %4872 = vmatprep.mubr.f32.mxu0 %v4783
      %4873 = vmatmul.mubr.f32.gmra.mrb[0].mxu0 %v4747
      %v4874 = vpop.f32.mrb[0].mxu0
      %v4875 = vadd.f32 %v4775, %v4874
      %v4876 = vpop.f32.mrb[0].mxu0
      %4877 = vmatprep.mubr.f32.mxu0 %v4785
      %4878 = vmatmul.mubr.f32.gmra.mrb[0].mxu0 %v4748
      %v4879 = vpop.f32.mrb[0].mxu0
      %v4880 = vadd.f32 %v4775, %v4879
      %v4881 = vpop.f32.mrb[0].mxu0
      %4882 = vmatprep.mubr.f32.mxu0 %v4787
      %4883 = vmatmul.mubr.f32.gmra.mrb[0].mxu0 %v4749
      %v4884 = vpop.f32.mrb[0].mxu0
      %v4885 = vadd.f32 %v4775, %v4884
      %v4886 = vpop.f32.mrb[0].mxu0
      %4887 = vmatprep.mubr.f32.mxu0 %v4789
      %4888 = vmatmul.mubr.f32.gmra.mrb[0].mxu0 %v4750
      %v4889 = vpop.f32.mrb[0].mxu0
      %v4890 = vadd.f32 %v4775, %v4889
      %v4891 = vpop.f32.mrb[0].mxu0
      %4892 = vmatprep.mubr.f32.mxu0 %v4791
      %4893 = vmatmul.mubr.f32.gmra.mrb[0].mxu0 %v4751
      %v4894 = vpop.f32.mrb[0].mxu0
      %v4895 = vadd.f32 %v4775, %v4894
      %v4896 = vpop.f32.mrb[0].mxu0
      %4897 = vdwg.mxu0
      %v4898 = vmax.f32 %v4860, 0.0
      %v4899 = vmax.f32 %v4865, 0.0
      %v4900 = vmax.f32 %v4870, 0.0
      %v4901 = vmax.f32 %v4875, 0.0
      %v4902 = vmax.f32 %v4880, 0.0
      %v4903 = vmax.f32 %v4885, 0.0
      %v4904 = vmax.f32 %v4890, 0.0
      %v4905 = vmax.f32 %v4895, 0.0
      %s4906 = scalar_lea.vmem [#allocation3], 16
      %4907 = vst.msk [vmem:[%s4906 + $0x1] sm:$0xff] %vm443, %v4898
      %4908 = vst.msk [vmem:[%s4906 + $0x11] sm:$0xff] %vm443, %v4899
      %4909 = vst.msk [vmem:[%s4906 + $0x21] sm:$0xff] %vm443, %v4900
      %4910 = vst.msk [vmem:[%s4906 + $0x31] sm:$0xff] %vm443, %v4901
      %4911 = vst.msk [vmem:[%s4906 + $0x41] sm:$0xff] %vm443, %v4902
      %4912 = vst.msk [vmem:[%s4906 + $0x51] sm:$0xff] %vm443, %v4903
      %4913 = vst.msk [vmem:[%s4906 + $0x61] sm:$0xff] %vm443, %v4904
      %4914 = vst.msk [vmem:[%s4906 + $0x71] sm:$0xff] %vm443, %v4905
      %v4915 = vld [vmem:[#allocation3] sm:$0xff]
      %v4916 = vld [vmem:[#allocation3 + $0x8] sm:$0x3]
      %v4917 = vld [vmem:[#allocation3 + $0x10] sm:$0xff]
      %v4918 = vld [vmem:[#allocation3 + $0x18] sm:$0x3]
      %v4919 = vld [vmem:[#allocation3 + $0x20] sm:$0xff]
      %v4920 = vld [vmem:[#allocation3 + $0x28] sm:$0x3]
      %v4921 = vld [vmem:[#allocation3 + $0x30] sm:$0xff]
      %v4922 = vld [vmem:[#allocation3 + $0x38] sm:$0x3]
      %v4923 = vld [vmem:[#allocation3 + $0x40] sm:$0xff]
      %v4924 = vld [vmem:[#allocation3 + $0x48] sm:$0x3]
      %v4925 = vld [vmem:[#allocation3 + $0x50] sm:$0xff]
      %v4926 = vld [vmem:[#allocation3 + $0x58] sm:$0x3]
      %v4927 = vld [vmem:[#allocation3 + $0x60] sm:$0xff]
      %v4928 = vld [vmem:[#allocation3 + $0x68] sm:$0x3]
      %v4929 = vld [vmem:[#allocation3 + $0x70] sm:$0xff]
      %v4930 = vld [vmem:[#allocation3 + $0x78] sm:$0x3]
      %v4931 = vld [vmem:[#allocation3 + $0x80] sm:$0xff]
      %v4932 = vld [vmem:[#allocation3 + $0x88] sm:$0x3]
      %v4951 = vcombine.high %v4915, %v4915
      %v4953 = vunpack.c.l.s4 1983009808
      %v4954 = vunpack.c.0.s8 %v4953
      %v4955 = vlaneseq
      %v4956 = vshrl.u32 %v4955, 7
      %v4957 = vsub.s32 %v4954, %v4956
      %v4958 = vrot.slane %v4915, %v4957
      %v4960 = vunpack.c.l.s4 1983009808
      %v4961 = vunpack.c.0.s8 %v4960
      %v4962 = vlaneseq
      %v4963 = vshrl.u32 %v4962, 7
      %v4964 = vsub.s32 %v4961, %v4963
      %v4965 = vrot.slane %v4951, %v4964
      %v4966 = vcombine.high %v4958, %v4958
      %v4967 = vcombine.high %v4965, %v4965
      %v4969 = vunpack.c.l.s4 1983009808
      %v4970 = vunpack.c.0.s8 %v4969
      %v4971 = vlaneseq
      %v4972 = vshrl.u32 %v4971, 7
      %v4973 = vsub.s32 %v4970, %v4972
      %v4974 = vrot.slane %v4916, %v4973
      %v4975 = vcombine.high %v4917, %v4917
      %v4977 = vunpack.c.l.s4 1983009808
      %v4978 = vunpack.c.0.s8 %v4977
      %v4979 = vlaneseq
      %v4980 = vshrl.u32 %v4979, 7
      %v4981 = vsub.s32 %v4978, %v4980
      %v4982 = vrot.slane %v4917, %v4981
      %v4984 = vunpack.c.l.s4 1983009808
      %v4985 = vunpack.c.0.s8 %v4984
      %v4986 = vlaneseq
      %v4987 = vshrl.u32 %v4986, 7
      %v4988 = vsub.s32 %v4985, %v4987
      %v4989 = vrot.slane %v4975, %v4988
      %v4990 = vcombine.high %v4982, %v4982
      %v4991 = vcombine.high %v4989, %v4989
      %v4993 = vunpack.c.l.s4 1983009808
      %v4994 = vunpack.c.0.s8 %v4993
      %v4995 = vlaneseq
      %v4996 = vshrl.u32 %v4995, 7
      %v4997 = vsub.s32 %v4994, %v4996
      %v4998 = vrot.slane %v4918, %v4997
      %v4999 = vcombine.high %v4919, %v4919
      %v5001 = vunpack.c.l.s4 1983009808
      %v5002 = vunpack.c.0.s8 %v5001
      %v5003 = vlaneseq
      %v5004 = vshrl.u32 %v5003, 7
      %v5005 = vsub.s32 %v5002, %v5004
      %v5006 = vrot.slane %v4919, %v5005
      %v5008 = vunpack.c.l.s4 1983009808
      %v5009 = vunpack.c.0.s8 %v5008
      %v5010 = vlaneseq
      %v5011 = vshrl.u32 %v5010, 7
      %v5012 = vsub.s32 %v5009, %v5011
      %v5013 = vrot.slane %v4999, %v5012
      %v5014 = vcombine.high %v5006, %v5006
      %v5015 = vcombine.high %v5013, %v5013
      %v5017 = vunpack.c.l.s4 1983009808
      %v5018 = vunpack.c.0.s8 %v5017
      %v5019 = vlaneseq
      %v5020 = vshrl.u32 %v5019, 7
      %v5021 = vsub.s32 %v5018, %v5020
      %v5022 = vrot.slane %v4920, %v5021
      %v5023 = vcombine.high %v4921, %v4921
      %v5025 = vunpack.c.l.s4 1983009808
      %v5026 = vunpack.c.0.s8 %v5025
      %v5027 = vlaneseq
      %v5028 = vshrl.u32 %v5027, 7
      %v5029 = vsub.s32 %v5026, %v5028
      %v5030 = vrot.slane %v4921, %v5029
      %v5032 = vunpack.c.l.s4 1983009808
      %v5033 = vunpack.c.0.s8 %v5032
      %v5034 = vlaneseq
      %v5035 = vshrl.u32 %v5034, 7
      %v5036 = vsub.s32 %v5033, %v5035
      %v5037 = vrot.slane %v5023, %v5036
      %v5038 = vcombine.high %v5030, %v5030
      %v5039 = vcombine.high %v5037, %v5037
      %v5041 = vunpack.c.l.s4 1983009808
      %v5042 = vunpack.c.0.s8 %v5041
      %v5043 = vlaneseq
      %v5044 = vshrl.u32 %v5043, 7
      %v5045 = vsub.s32 %v5042, %v5044
      %v5046 = vrot.slane %v4922, %v5045
      %v5047 = vcombine.high %v4923, %v4923
      %v5049 = vunpack.c.l.s4 1983009808
      %v5050 = vunpack.c.0.s8 %v5049
      %v5051 = vlaneseq
      %v5052 = vshrl.u32 %v5051, 7
      %v5053 = vsub.s32 %v5050, %v5052
      %v5054 = vrot.slane %v4923, %v5053
      %v5056 = vunpack.c.l.s4 1983009808
      %v5057 = vunpack.c.0.s8 %v5056
      %v5058 = vlaneseq
      %v5059 = vshrl.u32 %v5058, 7
      %v5060 = vsub.s32 %v5057, %v5059
      %v5061 = vrot.slane %v5047, %v5060
      %v5062 = vcombine.high %v5054, %v5054
      %v5063 = vcombine.high %v5061, %v5061
      %v5065 = vunpack.c.l.s4 1983009808
      %v5066 = vunpack.c.0.s8 %v5065
      %v5067 = vlaneseq
      %v5068 = vshrl.u32 %v5067, 7
      %v5069 = vsub.s32 %v5066, %v5068
      %v5070 = vrot.slane %v4924, %v5069
      %v5071 = vcombine.high %v4925, %v4925
      %v5073 = vunpack.c.l.s4 1983009808
      %v5074 = vunpack.c.0.s8 %v5073
      %v5075 = vlaneseq
      %v5076 = vshrl.u32 %v5075, 7
      %v5077 = vsub.s32 %v5074, %v5076
      %v5078 = vrot.slane %v4925, %v5077
      %v5080 = vunpack.c.l.s4 1983009808
      %v5081 = vunpack.c.0.s8 %v5080
      %v5082 = vlaneseq
      %v5083 = vshrl.u32 %v5082, 7
      %v5084 = vsub.s32 %v5081, %v5083
      %v5085 = vrot.slane %v5071, %v5084
      %v5086 = vcombine.high %v5078, %v5078
      %v5087 = vcombine.high %v5085, %v5085
      %v5089 = vunpack.c.l.s4 1983009808
      %v5090 = vunpack.c.0.s8 %v5089
      %v5091 = vlaneseq
      %v5092 = vshrl.u32 %v5091, 7
      %v5093 = vsub.s32 %v5090, %v5092
      %v5094 = vrot.slane %v4926, %v5093
      %v5095 = vcombine.high %v4927, %v4927
      %v5097 = vunpack.c.l.s4 1983009808
      %v5098 = vunpack.c.0.s8 %v5097
      %v5099 = vlaneseq
      %v5100 = vshrl.u32 %v5099, 7
      %v5101 = vsub.s32 %v5098, %v5100
      %v5102 = vrot.slane %v4927, %v5101
      %v5104 = vunpack.c.l.s4 1983009808
      %v5105 = vunpack.c.0.s8 %v5104
      %v5106 = vlaneseq
      %v5107 = vshrl.u32 %v5106, 7
      %v5108 = vsub.s32 %v5105, %v5107
      %v5109 = vrot.slane %v5095, %v5108
      %v5110 = vcombine.high %v5102, %v5102
      %v5111 = vcombine.high %v5109, %v5109
      %v5113 = vunpack.c.l.s4 1983009808
      %v5114 = vunpack.c.0.s8 %v5113
      %v5115 = vlaneseq
      %v5116 = vshrl.u32 %v5115, 7
      %v5117 = vsub.s32 %v5114, %v5116
      %v5118 = vrot.slane %v4928, %v5117
      %v5119 = vcombine.high %v4929, %v4929
      %v5121 = vunpack.c.l.s4 1983009808
      %v5122 = vunpack.c.0.s8 %v5121
      %v5123 = vlaneseq
      %v5124 = vshrl.u32 %v5123, 7
      %v5125 = vsub.s32 %v5122, %v5124
      %v5126 = vrot.slane %v4929, %v5125
      %v5128 = vunpack.c.l.s4 1983009808
      %v5129 = vunpack.c.0.s8 %v5128
      %v5130 = vlaneseq
      %v5131 = vshrl.u32 %v5130, 7
      %v5132 = vsub.s32 %v5129, %v5131
      %v5133 = vrot.slane %v5119, %v5132
      %v5134 = vcombine.high %v5126, %v5126
      %v5135 = vcombine.high %v5133, %v5133
      %v5137 = vunpack.c.l.s4 1983009808
      %v5138 = vunpack.c.0.s8 %v5137
      %v5139 = vlaneseq
      %v5140 = vshrl.u32 %v5139, 7
      %v5141 = vsub.s32 %v5138, %v5140
      %v5142 = vrot.slane %v4930, %v5141
      %v5143 = vcombine.high %v4931, %v4931
      %v5145 = vunpack.c.l.s4 1983009808
      %v5146 = vunpack.c.0.s8 %v5145
      %v5147 = vlaneseq
      %v5148 = vshrl.u32 %v5147, 7
      %v5149 = vsub.s32 %v5146, %v5148
      %v5150 = vrot.slane %v4931, %v5149
      %v5152 = vunpack.c.l.s4 1983009808
      %v5153 = vunpack.c.0.s8 %v5152
      %v5154 = vlaneseq
      %v5155 = vshrl.u32 %v5154, 7
      %v5156 = vsub.s32 %v5153, %v5155
      %v5157 = vrot.slane %v5143, %v5156
      %v5158 = vcombine.high %v5150, %v5150
      %v5159 = vcombine.high %v5157, %v5157
      %v5161 = vunpack.c.l.s4 1983009808
      %v5162 = vunpack.c.0.s8 %v5161
      %v5163 = vlaneseq
      %v5164 = vshrl.u32 %v5163, 7
      %v5165 = vsub.s32 %v5162, %v5164
      %v5166 = vrot.slane %v4932, %v5165
      %v5167 = vlaneseq
      %v5168 = vshrl.u32 %v5167, 7
      %v5169 = vsub.s32 0, %v5168
      %v5170 = vrot.slane %v4958, %v5169
      %v5171 = vlaneseq
      %v5172 = vshrl.u32 %v5171, 7
      %v5173 = vsub.s32 0, %v5172
      %v5174 = vrot.slane %v4966, %v5173
      %v5175 = vlaneseq
      %v5176 = vshrl.u32 %v5175, 7
      %v5177 = vsub.s32 0, %v5176
      %v5178 = vrot.slane %v4965, %v5177
      %v5179 = vlaneseq
      %v5180 = vshrl.u32 %v5179, 7
      %v5181 = vsub.s32 0, %v5180
      %v5182 = vrot.slane %v4967, %v5181
      %v5183 = vlaneseq
      %v5184 = vshrl.u32 %v5183, 7
      %v5185 = vsub.s32 0, %v5184
      %v5186 = vrot.slane %v5006, %v5185
      %v5187 = vlaneseq
      %v5188 = vshrl.u32 %v5187, 7
      %v5189 = vsub.s32 0, %v5188
      %v5190 = vrot.slane %v5014, %v5189
      %v5191 = vlaneseq
      %v5192 = vshrl.u32 %v5191, 7
      %v5193 = vsub.s32 0, %v5192
      %v5194 = vrot.slane %v5013, %v5193
      %v5195 = vlaneseq
      %v5196 = vshrl.u32 %v5195, 7
      %v5197 = vsub.s32 0, %v5196
      %v5198 = vrot.slane %v5015, %v5197
      %v5199 = vlaneseq
      %v5200 = vshrl.u32 %v5199, 7
      %v5201 = vsub.s32 0, %v5200
      %v5202 = vrot.slane %v5054, %v5201
      %v5203 = vlaneseq
      %v5204 = vshrl.u32 %v5203, 7
      %v5205 = vsub.s32 0, %v5204
      %v5206 = vrot.slane %v5062, %v5205
      %v5207 = vlaneseq
      %v5208 = vshrl.u32 %v5207, 7
      %v5209 = vsub.s32 0, %v5208
      %v5210 = vrot.slane %v5061, %v5209
      %v5211 = vlaneseq
      %v5212 = vshrl.u32 %v5211, 7
      %v5213 = vsub.s32 0, %v5212
      %v5214 = vrot.slane %v5063, %v5213
      %v5215 = vlaneseq
      %v5216 = vshrl.u32 %v5215, 7
      %v5217 = vsub.s32 0, %v5216
      %v5218 = vrot.slane %v5102, %v5217
      %v5219 = vlaneseq
      %v5220 = vshrl.u32 %v5219, 7
      %v5221 = vsub.s32 0, %v5220
      %v5222 = vrot.slane %v5110, %v5221
      %v5223 = vlaneseq
      %v5224 = vshrl.u32 %v5223, 7
      %v5225 = vsub.s32 0, %v5224
      %v5226 = vrot.slane %v5109, %v5225
      %v5227 = vlaneseq
      %v5228 = vshrl.u32 %v5227, 7
      %v5229 = vsub.s32 0, %v5228
      %v5230 = vrot.slane %v5111, %v5229
      %v5231 = vsel %vm3251, %v5174, %v5170
      %v5232 = vsel %vm3253, %v5178, %v5231
      %v5233 = vsel %vm3255, %v5182, %v5232
      %v5234 = vsel %vm3257, %v5186, %v5233
      %v5235 = vsel %vm3259, %v5190, %v5234
      %v5236 = vsel %vm3261, %v5194, %v5235
      %v5237 = vsel %vm3263, %v5198, %v5236
      %v5238 = vsel %vm3251, %v5206, %v5202
      %v5239 = vsel %vm3253, %v5210, %v5238
      %v5240 = vsel %vm3255, %v5214, %v5239
      %v5241 = vsel %vm3257, %v5218, %v5240
      %v5242 = vsel %vm3259, %v5222, %v5241
      %v5243 = vsel %vm3261, %v5226, %v5242
      %v5244 = vsel %vm3263, %v5230, %v5243
      %v5247 = vlaneseq
      %v5248 = vshrl.u32 %v5247, 7
      %v5249 = vsub.s32 1, %v5248
      %v5250 = vrot.slane %v4958, %v5249
      %v5251 = vlaneseq
      %v5252 = vshrl.u32 %v5251, 7
      %v5253 = vsub.s32 1, %v5252
      %v5254 = vrot.slane %v4966, %v5253
      %v5255 = vlaneseq
      %v5256 = vshrl.u32 %v5255, 7
      %v5257 = vsub.s32 1, %v5256
      %v5258 = vrot.slane %v4965, %v5257
      %v5259 = vlaneseq
      %v5260 = vshrl.u32 %v5259, 7
      %v5261 = vsub.s32 1, %v5260
      %v5262 = vrot.slane %v4967, %v5261
      %v5263 = vlaneseq
      %v5264 = vshrl.u32 %v5263, 7
      %v5265 = vsub.s32 1, %v5264
      %v5266 = vrot.slane %v5006, %v5265
      %v5267 = vlaneseq
      %v5268 = vshrl.u32 %v5267, 7
      %v5269 = vsub.s32 1, %v5268
      %v5270 = vrot.slane %v5014, %v5269
      %v5271 = vlaneseq
      %v5272 = vshrl.u32 %v5271, 7
      %v5273 = vsub.s32 1, %v5272
      %v5274 = vrot.slane %v5013, %v5273
      %v5275 = vlaneseq
      %v5276 = vshrl.u32 %v5275, 7
      %v5277 = vsub.s32 1, %v5276
      %v5278 = vrot.slane %v5015, %v5277
      %v5279 = vlaneseq
      %v5280 = vshrl.u32 %v5279, 7
      %v5281 = vsub.s32 1, %v5280
      %v5282 = vrot.slane %v5054, %v5281
      %v5283 = vlaneseq
      %v5284 = vshrl.u32 %v5283, 7
      %v5285 = vsub.s32 1, %v5284
      %v5286 = vrot.slane %v5062, %v5285
      %v5287 = vlaneseq
      %v5288 = vshrl.u32 %v5287, 7
      %v5289 = vsub.s32 1, %v5288
      %v5290 = vrot.slane %v5061, %v5289
      %v5291 = vlaneseq
      %v5292 = vshrl.u32 %v5291, 7
      %v5293 = vsub.s32 1, %v5292
      %v5294 = vrot.slane %v5063, %v5293
      %v5295 = vlaneseq
      %v5296 = vshrl.u32 %v5295, 7
      %v5297 = vsub.s32 1, %v5296
      %v5298 = vrot.slane %v5102, %v5297
      %v5299 = vlaneseq
      %v5300 = vshrl.u32 %v5299, 7
      %v5301 = vsub.s32 1, %v5300
      %v5302 = vrot.slane %v5110, %v5301
      %v5303 = vlaneseq
      %v5304 = vshrl.u32 %v5303, 7
      %v5305 = vsub.s32 1, %v5304
      %v5306 = vrot.slane %v5109, %v5305
      %v5307 = vlaneseq
      %v5308 = vshrl.u32 %v5307, 7
      %v5309 = vsub.s32 1, %v5308
      %v5310 = vrot.slane %v5111, %v5309
      %v5311 = vsel %vm3251, %v5254, %v5250
      %v5312 = vsel %vm3253, %v5258, %v5311
      %v5313 = vsel %vm3255, %v5262, %v5312
      %v5314 = vsel %vm3257, %v5266, %v5313
      %v5315 = vsel %vm3259, %v5270, %v5314
      %v5316 = vsel %vm3261, %v5274, %v5315
      %v5317 = vsel %vm3263, %v5278, %v5316
      %v5318 = vsel %vm3251, %v5286, %v5282
      %v5319 = vsel %vm3253, %v5290, %v5318
      %v5320 = vsel %vm3255, %v5294, %v5319
      %v5321 = vsel %vm3257, %v5298, %v5320
      %v5322 = vsel %vm3259, %v5302, %v5321
      %v5323 = vsel %vm3261, %v5306, %v5322
      %v5324 = vsel %vm3263, %v5310, %v5323
      %5325 = vrot.lane.b32.xlu0 %v5317, 32
      %v5326 = vpop.permute.xlu0 %5325
      %5327 = vrot.lane.b32.xlu0 %v5324, 32
      %v5328 = vpop.permute.xlu0 %5327
      %v5331 = vlaneseq
      %v5332 = vshrl.u32 %v5331, 7
      %v5333 = vsub.s32 0, %v5332
      %v5334 = vrot.slane %v4974, %v5333
      %v5335 = vlaneseq
      %v5336 = vshrl.u32 %v5335, 7
      %v5337 = vsub.s32 0, %v5336
      %v5338 = vrot.slane %v5022, %v5337
      %v5339 = vlaneseq
      %v5340 = vshrl.u32 %v5339, 7
      %v5341 = vsub.s32 0, %v5340
      %v5342 = vrot.slane %v5070, %v5341
      %v5343 = vlaneseq
      %v5344 = vshrl.u32 %v5343, 7
      %v5345 = vsub.s32 0, %v5344
      %v5346 = vrot.slane %v5118, %v5345
      %v5347 = vsel %vm3251, %v5178, %v5174
      %v5348 = vsel %vm3253, %v5182, %v5347
      %v5349 = vsel %vm3255, %v5334, %v5348
      %v5350 = vsel %vm3257, %v5190, %v5349
      %v5351 = vsel %vm3259, %v5194, %v5350
      %v5352 = vsel %vm3261, %v5198, %v5351
      %v5353 = vsel %vm3263, %v5338, %v5352
      %v5354 = vsel %vm3251, %v5210, %v5206
      %v5355 = vsel %vm3253, %v5214, %v5354
      %v5356 = vsel %vm3255, %v5342, %v5355
      %v5357 = vsel %vm3257, %v5222, %v5356
      %v5358 = vsel %vm3259, %v5226, %v5357
      %v5359 = vsel %vm3261, %v5230, %v5358
      %v5360 = vsel %vm3263, %v5346, %v5359
      %5361 = vrot.lane.b32.xlu0 %v5353, 64
      %v5362 = vpop.permute.xlu0 %5361
      %5363 = vrot.lane.b32.xlu0 %v5360, 64
      %v5364 = vpop.permute.xlu0 %5363
      %v5367 = vlaneseq
      %v5368 = vshrl.u32 %v5367, 7
      %v5369 = vsub.s32 0, %v5368
      %v5370 = vrot.slane %v4982, %v5369
      %v5371 = vlaneseq
      %v5372 = vshrl.u32 %v5371, 7
      %v5373 = vsub.s32 0, %v5372
      %v5374 = vrot.slane %v4990, %v5373
      %v5375 = vlaneseq
      %v5376 = vshrl.u32 %v5375, 7
      %v5377 = vsub.s32 0, %v5376
      %v5378 = vrot.slane %v4989, %v5377
      %v5379 = vlaneseq
      %v5380 = vshrl.u32 %v5379, 7
      %v5381 = vsub.s32 0, %v5380
      %v5382 = vrot.slane %v4991, %v5381
      %v5383 = vlaneseq
      %v5384 = vshrl.u32 %v5383, 7
      %v5385 = vsub.s32 0, %v5384
      %v5386 = vrot.slane %v5030, %v5385
      %v5387 = vlaneseq
      %v5388 = vshrl.u32 %v5387, 7
      %v5389 = vsub.s32 0, %v5388
      %v5390 = vrot.slane %v5038, %v5389
      %v5391 = vlaneseq
      %v5392 = vshrl.u32 %v5391, 7
      %v5393 = vsub.s32 0, %v5392
      %v5394 = vrot.slane %v5037, %v5393
      %v5395 = vlaneseq
      %v5396 = vshrl.u32 %v5395, 7
      %v5397 = vsub.s32 0, %v5396
      %v5398 = vrot.slane %v5039, %v5397
      %v5399 = vlaneseq
      %v5400 = vshrl.u32 %v5399, 7
      %v5401 = vsub.s32 0, %v5400
      %v5402 = vrot.slane %v5078, %v5401
      %v5403 = vlaneseq
      %v5404 = vshrl.u32 %v5403, 7
      %v5405 = vsub.s32 0, %v5404
      %v5406 = vrot.slane %v5086, %v5405
      %v5407 = vlaneseq
      %v5408 = vshrl.u32 %v5407, 7
      %v5409 = vsub.s32 0, %v5408
      %v5410 = vrot.slane %v5085, %v5409
      %v5411 = vlaneseq
      %v5412 = vshrl.u32 %v5411, 7
      %v5413 = vsub.s32 0, %v5412
      %v5414 = vrot.slane %v5087, %v5413
      %v5415 = vlaneseq
      %v5416 = vshrl.u32 %v5415, 7
      %v5417 = vsub.s32 0, %v5416
      %v5418 = vrot.slane %v5126, %v5417
      %v5419 = vlaneseq
      %v5420 = vshrl.u32 %v5419, 7
      %v5421 = vsub.s32 0, %v5420
      %v5422 = vrot.slane %v5134, %v5421
      %v5423 = vlaneseq
      %v5424 = vshrl.u32 %v5423, 7
      %v5425 = vsub.s32 0, %v5424
      %v5426 = vrot.slane %v5133, %v5425
      %v5427 = vlaneseq
      %v5428 = vshrl.u32 %v5427, 7
      %v5429 = vsub.s32 0, %v5428
      %v5430 = vrot.slane %v5135, %v5429
      %v5431 = vsel %vm3251, %v5374, %v5370
      %v5432 = vsel %vm3253, %v5378, %v5431
      %v5433 = vsel %vm3255, %v5382, %v5432
      %v5434 = vsel %vm3257, %v5386, %v5433
      %v5435 = vsel %vm3259, %v5390, %v5434
      %v5436 = vsel %vm3261, %v5394, %v5435
      %v5437 = vsel %vm3263, %v5398, %v5436
      %v5438 = vsel %vm3251, %v5406, %v5402
      %v5439 = vsel %vm3253, %v5410, %v5438
      %v5440 = vsel %vm3255, %v5414, %v5439
      %v5441 = vsel %vm3257, %v5418, %v5440
      %v5442 = vsel %vm3259, %v5422, %v5441
      %v5443 = vsel %vm3261, %v5426, %v5442
      %v5444 = vsel %vm3263, %v5430, %v5443
      %5445 = vrot.lane.b32.xlu0 %v5437, 96
      %v5446 = vpop.permute.xlu0 %5445
      %5447 = vrot.lane.b32.xlu0 %v5444, 96
      %v5448 = vpop.permute.xlu0 %5447
      %v5451 = vlaneseq
      %v5452 = vshrl.u32 %v5451, 7
      %v5453 = vsub.s32 1, %v5452
      %v5454 = vrot.slane %v4982, %v5453
      %v5455 = vlaneseq
      %v5456 = vshrl.u32 %v5455, 7
      %v5457 = vsub.s32 1, %v5456
      %v5458 = vrot.slane %v4990, %v5457
      %v5459 = vlaneseq
      %v5460 = vshrl.u32 %v5459, 7
      %v5461 = vsub.s32 1, %v5460
      %v5462 = vrot.slane %v4989, %v5461
      %v5463 = vlaneseq
      %v5464 = vshrl.u32 %v5463, 7
      %v5465 = vsub.s32 1, %v5464
      %v5466 = vrot.slane %v4991, %v5465
      %v5467 = vlaneseq
      %v5468 = vshrl.u32 %v5467, 7
      %v5469 = vsub.s32 1, %v5468
      %v5470 = vrot.slane %v5030, %v5469
      %v5471 = vlaneseq
      %v5472 = vshrl.u32 %v5471, 7
      %v5473 = vsub.s32 1, %v5472
      %v5474 = vrot.slane %v5038, %v5473
      %v5475 = vlaneseq
      %v5476 = vshrl.u32 %v5475, 7
      %v5477 = vsub.s32 1, %v5476
      %v5478 = vrot.slane %v5037, %v5477
      %v5479 = vlaneseq
      %v5480 = vshrl.u32 %v5479, 7
      %v5481 = vsub.s32 1, %v5480
      %v5482 = vrot.slane %v5039, %v5481
      %v5483 = vlaneseq
      %v5484 = vshrl.u32 %v5483, 7
      %v5485 = vsub.s32 1, %v5484
      %v5486 = vrot.slane %v5078, %v5485
      %v5487 = vlaneseq
      %v5488 = vshrl.u32 %v5487, 7
      %v5489 = vsub.s32 1, %v5488
      %v5490 = vrot.slane %v5086, %v5489
      %v5491 = vlaneseq
      %v5492 = vshrl.u32 %v5491, 7
      %v5493 = vsub.s32 1, %v5492
      %v5494 = vrot.slane %v5085, %v5493
      %v5495 = vlaneseq
      %v5496 = vshrl.u32 %v5495, 7
      %v5497 = vsub.s32 1, %v5496
      %v5498 = vrot.slane %v5087, %v5497
      %v5499 = vlaneseq
      %v5500 = vshrl.u32 %v5499, 7
      %v5501 = vsub.s32 1, %v5500
      %v5502 = vrot.slane %v5126, %v5501
      %v5503 = vlaneseq
      %v5504 = vshrl.u32 %v5503, 7
      %v5505 = vsub.s32 1, %v5504
      %v5506 = vrot.slane %v5134, %v5505
      %v5507 = vlaneseq
      %v5508 = vshrl.u32 %v5507, 7
      %v5509 = vsub.s32 1, %v5508
      %v5510 = vrot.slane %v5133, %v5509
      %v5511 = vlaneseq
      %v5512 = vshrl.u32 %v5511, 7
      %v5513 = vsub.s32 1, %v5512
      %v5514 = vrot.slane %v5135, %v5513
      %v5515 = vsel %vm3251, %v5458, %v5454
      %v5516 = vsel %vm3253, %v5462, %v5515
      %v5517 = vsel %vm3255, %v5466, %v5516
      %v5518 = vsel %vm3257, %v5470, %v5517
      %v5519 = vsel %vm3259, %v5474, %v5518
      %v5520 = vsel %vm3261, %v5478, %v5519
      %v5521 = vsel %vm3263, %v5482, %v5520
      %v5522 = vsel %vm3251, %v5490, %v5486
      %v5523 = vsel %vm3253, %v5494, %v5522
      %v5524 = vsel %vm3255, %v5498, %v5523
      %v5525 = vsel %vm3257, %v5502, %v5524
      %v5526 = vsel %vm3259, %v5506, %v5525
      %v5527 = vsel %vm3261, %v5510, %v5526
      %v5528 = vsel %vm3263, %v5514, %v5527
      %v5531 = vlaneseq
      %v5532 = vshrl.u32 %v5531, 7
      %v5533 = vsub.s32 0, %v5532
      %v5534 = vrot.slane %v4998, %v5533
      %v5535 = vlaneseq
      %v5536 = vshrl.u32 %v5535, 7
      %v5537 = vsub.s32 0, %v5536
      %v5538 = vrot.slane %v5046, %v5537
      %v5539 = vlaneseq
      %v5540 = vshrl.u32 %v5539, 7
      %v5541 = vsub.s32 0, %v5540
      %v5542 = vrot.slane %v5094, %v5541
      %v5543 = vlaneseq
      %v5544 = vshrl.u32 %v5543, 7
      %v5545 = vsub.s32 0, %v5544
      %v5546 = vrot.slane %v5142, %v5545
      %v5547 = vsel %vm3251, %v5378, %v5374
      %v5548 = vsel %vm3253, %v5382, %v5547
      %v5549 = vsel %vm3255, %v5534, %v5548
      %v5550 = vsel %vm3257, %v5390, %v5549
      %v5551 = vsel %vm3259, %v5394, %v5550
      %v5552 = vsel %vm3261, %v5398, %v5551
      %v5553 = vsel %vm3263, %v5538, %v5552
      %v5554 = vsel %vm3251, %v5410, %v5406
      %v5555 = vsel %vm3253, %v5414, %v5554
      %v5556 = vsel %vm3255, %v5542, %v5555
      %v5557 = vsel %vm3257, %v5422, %v5556
      %v5558 = vsel %vm3259, %v5426, %v5557
      %v5559 = vsel %vm3261, %v5430, %v5558
      %v5560 = vsel %vm3263, %v5546, %v5559
      %5561 = vrot.lane.b32.xlu0 %v5553, 32
      %v5562 = vpop.permute.xlu0 %5561
      %5563 = vrot.lane.b32.xlu0 %v5560, 32
      %v5564 = vpop.permute.xlu0 %5563
      %v5567 = vlaneseq
      %v5568 = vshrl.u32 %v5567, 7
      %v5569 = vsub.s32 0, %v5568
      %v5570 = vrot.slane %v5150, %v5569
      %v5571 = vlaneseq
      %v5572 = vshrl.u32 %v5571, 7
      %v5573 = vsub.s32 0, %v5572
      %v5574 = vrot.slane %v5158, %v5573
      %v5575 = vlaneseq
      %v5576 = vshrl.u32 %v5575, 7
      %v5577 = vsub.s32 0, %v5576
      %v5578 = vrot.slane %v5157, %v5577
      %v5579 = vlaneseq
      %v5580 = vshrl.u32 %v5579, 7
      %v5581 = vsub.s32 0, %v5580
      %v5582 = vrot.slane %v5159, %v5581
      %v5583 = vsel %vm3251, %v5190, %v5186
      %v5584 = vsel %vm3253, %v5194, %v5583
      %v5585 = vsel %vm3255, %v5198, %v5584
      %v5586 = vsel %vm3257, %v5202, %v5585
      %v5587 = vsel %vm3259, %v5206, %v5586
      %v5588 = vsel %vm3261, %v5210, %v5587
      %v5589 = vsel %vm3263, %v5214, %v5588
      %v5590 = vsel %vm3251, %v5222, %v5218
      %v5591 = vsel %vm3253, %v5226, %v5590
      %v5592 = vsel %vm3255, %v5230, %v5591
      %v5593 = vsel %vm3257, %v5570, %v5592
      %v5594 = vsel %vm3259, %v5574, %v5593
      %v5595 = vsel %vm3261, %v5578, %v5594
      %v5596 = vsel %vm3263, %v5582, %v5595
      %5597 = vrot.lane.b32.xlu0 %v5589, 64
      %v5598 = vpop.permute.xlu0 %5597
      %5599 = vrot.lane.b32.xlu0 %v5596, 64
      %v5600 = vpop.permute.xlu0 %5599
      %v5603 = vlaneseq
      %v5604 = vshrl.u32 %v5603, 7
      %v5605 = vsub.s32 1, %v5604
      %v5606 = vrot.slane %v5150, %v5605
      %v5607 = vlaneseq
      %v5608 = vshrl.u32 %v5607, 7
      %v5609 = vsub.s32 1, %v5608
      %v5610 = vrot.slane %v5158, %v5609
      %v5611 = vlaneseq
      %v5612 = vshrl.u32 %v5611, 7
      %v5613 = vsub.s32 1, %v5612
      %v5614 = vrot.slane %v5157, %v5613
      %v5615 = vlaneseq
      %v5616 = vshrl.u32 %v5615, 7
      %v5617 = vsub.s32 1, %v5616
      %v5618 = vrot.slane %v5159, %v5617
      %v5619 = vsel %vm3251, %v5270, %v5266
      %v5620 = vsel %vm3253, %v5274, %v5619
      %v5621 = vsel %vm3255, %v5278, %v5620
      %v5622 = vsel %vm3257, %v5282, %v5621
      %v5623 = vsel %vm3259, %v5286, %v5622
      %v5624 = vsel %vm3261, %v5290, %v5623
      %v5625 = vsel %vm3263, %v5294, %v5624
      %v5626 = vsel %vm3251, %v5302, %v5298
      %v5627 = vsel %vm3253, %v5306, %v5626
      %v5628 = vsel %vm3255, %v5310, %v5627
      %v5629 = vsel %vm3257, %v5606, %v5628
      %v5630 = vsel %vm3259, %v5610, %v5629
      %v5631 = vsel %vm3261, %v5614, %v5630
      %v5632 = vsel %vm3263, %v5618, %v5631
      %5633 = vrot.lane.b32.xlu0 %v5625, 96
      %v5634 = vpop.permute.xlu0 %5633
      %5635 = vrot.lane.b32.xlu0 %v5632, 96
      %v5636 = vpop.permute.xlu0 %5635
      %v5639 = vlaneseq
      %v5640 = vshrl.u32 %v5639, 7
      %v5641 = vsub.s32 0, %v5640
      %v5642 = vrot.slane %v5166, %v5641
      %v5643 = vsel %vm3251, %v5194, %v5190
      %v5644 = vsel %vm3253, %v5198, %v5643
      %v5645 = vsel %vm3255, %v5338, %v5644
      %v5646 = vsel %vm3257, %v5206, %v5645
      %v5647 = vsel %vm3259, %v5210, %v5646
      %v5648 = vsel %vm3261, %v5214, %v5647
      %v5649 = vsel %vm3263, %v5342, %v5648
      %v5650 = vsel %vm3251, %v5226, %v5222
      %v5651 = vsel %vm3253, %v5230, %v5650
      %v5652 = vsel %vm3255, %v5346, %v5651
      %v5653 = vsel %vm3257, %v5574, %v5652
      %v5654 = vsel %vm3259, %v5578, %v5653
      %v5655 = vsel %vm3261, %v5582, %v5654
      %v5656 = vsel %vm3263, %v5642, %v5655
      %v5657 = vsel %vm443, %v5237, %v5326
      %v5658 = vsel %vm443, %v5244, %v5328
      %v5659 = vsel %vm4716, %v5657, %v5362
      %v5660 = vsel %vm4716, %v5658, %v5364
      %v5661 = vsel %vm4734, %v5659, %v5446
      %v5662 = vsel %vm4734, %v5660, %v5448
      %v5663 = vsel %vm443, %v5521, %v5562
      %v5664 = vsel %vm443, %v5528, %v5564
      %v5665 = vsel %vm4716, %v5663, %v5598
      %v5666 = vsel %vm4716, %v5664, %v5600
      %v5667 = vsel %vm4734, %v5665, %v5634
      %v5668 = vsel %vm4734, %v5666, %v5636
      %v5669 = vld [vmem:[%s5] sm:$0xff]
      %v5670 = vld [vmem:[%s5 + $0x8] sm:$0xff]
      %v5671 = vld [vmem:[%s5 + $0x10] sm:$0xff]
      %v5672 = vld [vmem:[%s5 + $0x18] sm:$0xff]
      %v5673 = vld [vmem:[%s5 + $0x20] sm:$0xff]
      %v5674 = vld [vmem:[%s5 + $0x28] sm:$0xff]
      %v5675 = vld [vmem:[%s5 + $0x30] sm:$0xff]
      %v5676 = vld [vmem:[%s5 + $0x38] sm:$0xff]
      %v5677 = vld [vmem:[%s5 + $0x40] sm:$0xff]
      %v5678 = vld [vmem:[%s5 + $0x48] sm:$0xff]
      %v5679 = vld [vmem:[%s5 + $0x50] sm:$0xff]
      %v5680 = vld [vmem:[%s5 + $0x58] sm:$0xff]
      %v5681 = vld [vmem:[%s5 + $0x60] sm:$0xff]
      %v5682 = vld [vmem:[%s5 + $0x68] sm:$0xff]
      %v5683 = vld [vmem:[%s5 + $0x70] sm:$0xff]
      %v5684 = vld [vmem:[%s5 + $0x78] sm:$0xff]
      %v5685 = vld [vmem:[%s5 + $0x80] sm:$0xff]
      %v5686 = vld [vmem:[%s5 + $0x88] sm:$0xff]
      %v5687 = vld [vmem:[%s5 + $0x90] sm:$0xff]
      %v5688 = vld [vmem:[%s5 + $0x98] sm:$0xff]
      %v5689 = vld [vmem:[%s5 + $0xa0] sm:$0xff]
      %v5690 = vld [vmem:[%s5 + $0xa8] sm:$0xff]
      %v5691 = vld [vmem:[%s5 + $0xb0] sm:$0xff]
      %v5692 = vld [vmem:[%s5 + $0xb8] sm:$0xff]
      %v5693 = vld [vmem:[%s5 + $0xc0] sm:$0xff]
      %v5694 = vld [vmem:[%s5 + $0xc8] sm:$0xff]
      %v5695 = vld [vmem:[%s5 + $0xd0] sm:$0xff]
      %v5696 = vld [vmem:[%s5 + $0xd8] sm:$0xff]
      %v5697 = vld [vmem:[%s5 + $0xe0] sm:$0xff]
      %v5698 = vld [vmem:[%s5 + $0xe8] sm:$0xff]
      %v5699 = vld [vmem:[%s5 + $0xf0] sm:$0xff]
      %v5700 = vld [vmem:[%s5 + $0xf8] sm:$0xff]
      %v5701 = vld [vmem:[%s5 + $0x100] sm:$0xff]
      %v5702 = vld [vmem:[%s5 + $0x108] sm:$0xff]
      %v5703 = vld [vmem:[%s5 + $0x110] sm:$0xff]
      %v5704 = vld [vmem:[%s5 + $0x118] sm:$0xff]
      %v5705 = vld [vmem:[%s6] sm:$0x1]
      %v5707 = vlaneseq
      %v5708 = vshrl.u32 %v5707, 7
      %v5709 = vsub.s32 0, %v5708
      %v5710 = vrot.slane %v5705, %v5709
      %v5712 = vsel %vm443, %v5649, 0
      %v5714 = vsel %vm443, %v5656, 0
      %5716 = vmatprep.subr.mxu0 0.0
      %5717 = vmatpush1.msra.mxu0 %v5669
      %5718 = vmatprep.subr.mxu0 0.0
      %5719 = vmatpush1.msra.mxu0 %v5670
      %5720 = vmatprep.subr.mxu0 0.0
      %5721 = vmatpush1.msra.mxu0 %v5671
      %5722 = vmatprep.subr.mxu0 0.0
      %5723 = vmatpush1.msra.mxu0 %v5672
      %5724 = vmatprep.subr.mxu0 0.0
      %5725 = vmatpush1.msra.mxu0 %v5673
      %5726 = vmatprep.subr.mxu0 0.0
      %5727 = vmatpush1.msra.mxu0 %v5674
      %5728 = vmatprep.subr.mxu0 0.0
      %5729 = vmatpush1.msra.mxu0 %v5675
      %5730 = vmatprep.subr.mxu0 0.0
      %5731 = vmatpush1.msra.mxu0 %v5676
      %5732 = vmatprep.subr.mxu0 0.0
      %5733 = vmatpush1.msra.mxu0 %v5677
      %5734 = vmatprep.subr.mxu0 0.0
      %5735 = vmatpush1.msra.mxu0 %v5678
      %5736 = vmatprep.subr.mxu0 0.0
      %5737 = vmatpush1.msra.mxu0 %v5679
      %5738 = vmatprep.subr.mxu0 0.0
      %5739 = vmatpush1.msra.mxu0 %v5680
      %5740 = vmatprep.subr.mxu0 0.0
      %5741 = vmatpush1.msra.mxu0 %v5681
      %5742 = vmatprep.subr.mxu0 0.0
      %5743 = vmatpush1.msra.mxu0 %v5682
      %5744 = vmatprep.subr.mxu0 0.0
      %5745 = vmatpush1.msra.mxu0 %v5683
      %5746 = vmatprep.subr.mxu0 0.0
      %5747 = vmatpush1.msra.mxu0 %v5684
      %5748 = vmatprep.subr.mxu0 0.0
      %5749 = vmatpush1.msra.mxu0 %v5685
      %5750 = vmatprep.subr.mxu0 0.0
      %5751 = vmatpush1.msra.mxu0 %v5686
      %5752 = vmatprep.subr.mxu0 0.0
      %5753 = vmatpush1.msra.mxu0 %v5687
      %5754 = vmatprep.subr.mxu0 0.0
      %5755 = vmatpush1.msra.mxu0 %v5688
      %5756 = vmatprep.subr.mxu0 0.0
      %5757 = vmatpush1.msra.mxu0 %v5689
      %5758 = vmatprep.subr.mxu0 0.0
      %5759 = vmatpush1.msra.mxu0 %v5690
      %5760 = vmatprep.subr.mxu0 0.0
      %5761 = vmatpush1.msra.mxu0 %v5691
      %5762 = vmatprep.subr.mxu0 0.0
      %5763 = vmatpush1.msra.mxu0 %v5692
      %5764 = vmatprep.subr.mxu0 0.0
      %5765 = vmatpush1.msra.mxu0 %v5693
      %5766 = vmatprep.subr.mxu0 0.0
      %5767 = vmatpush1.msra.mxu0 %v5694
      %5768 = vmatprep.subr.mxu0 0.0
      %5769 = vmatpush1.msra.mxu0 %v5695
      %5770 = vmatprep.subr.mxu0 0.0
      %5771 = vmatpush1.msra.mxu0 %v5696
      %5772 = vmatprep.subr.mxu0 0.0
      %5773 = vmatpush1.msra.mxu0 %v5697
      %5774 = vmatprep.subr.mxu0 0.0
      %5775 = vmatpush1.msra.mxu0 %v5698
      %5776 = vmatprep.subr.mxu0 0.0
      %5777 = vmatpush1.msra.mxu0 %v5699
      %5778 = vmatprep.subr.mxu0 0.0
      %5779 = vmatpush1.msra.mxu0 %v5700
      %5780 = vmatprep.mubr.f32.mxu0 %v5667
      %5781 = vmatmul.mubr.f32.gmra.mrb[0].mxu0 %v5661
      %v5782 = vpop.f32.mrb[0].mxu0
      %v5783 = vadd.f32 %v5710, %v5782
      %v5784 = vpop.f32.mrb[0].mxu0
      %5785 = vmatprep.mubr.f32.mxu0 %v5668
      %5786 = vmatmul.mubr.f32.gmra.mrb[0].mxu0 %v5662
      %v5787 = vpop.f32.mrb[0].mxu0
      %v5788 = vadd.f32 %v5710, %v5787
      %v5789 = vpop.f32.mrb[0].mxu0
      %5790 = vdwg.mxu0
      %5791 = vmatprep.subr.mxu0 0.0
      %5792 = vmatpush1.msra.mxu0 %v5701
      %5793 = vmatprep.subr.mxu0 0.0
      %5794 = vmatpush1.msra.mxu0 %v5702
      %5795 = vmatprep.subr.mxu0 0.0
      %5796 = vmatpush1.msra.mxu0 %v5703
      %5797 = vmatprep.subr.mxu0 0.0
      %5798 = vmatpush1.msra.mxu0 %v5704
      %5799 = vmatprep.subr.mxu0 0.0
      %5800 = vmatpush1.msra.mxu0 0.0
      %5801 = vmatprep.subr.mxu0 0.0
      %5802 = vmatpush1.msra.mxu0 0.0
      %5803 = vmatprep.subr.mxu0 0.0
      %5804 = vmatpush1.msra.mxu0 0.0
      %5805 = vmatprep.subr.mxu0 0.0
      %5806 = vmatpush1.msra.mxu0 0.0
      %5807 = vmatprep.subr.mxu0 0.0
      %5808 = vmatpush1.msra.mxu0 0.0
      %5809 = vmatprep.subr.mxu0 0.0
      %5810 = vmatpush1.msra.mxu0 0.0
      %5811 = vmatprep.subr.mxu0 0.0
      %5812 = vmatpush1.msra.mxu0 0.0
      %5813 = vmatprep.subr.mxu0 0.0
      %5814 = vmatpush1.msra.mxu0 0.0
      %5815 = vmatprep.subr.mxu0 0.0
      %5816 = vmatpush1.msra.mxu0 0.0
      %5817 = vmatprep.subr.mxu0 0.0
      %5818 = vmatpush1.msra.mxu0 0.0
      %5819 = vmatprep.subr.mxu0 0.0
      %5820 = vmatpush1.msra.mxu0 0.0
      %5821 = vmatprep.subr.mxu0 0.0
      %5822 = vmatpush1.msra.mxu0 0.0
      %5823 = vmatprep.subr.mxu0 0.0
      %5824 = vmatpush1.msra.mxu0 0.0
      %5825 = vmatprep.subr.mxu0 0.0
      %5826 = vmatpush1.msra.mxu0 0.0
      %5827 = vmatprep.subr.mxu0 0.0
      %5828 = vmatpush1.msra.mxu0 0.0
      %5829 = vmatprep.subr.mxu0 0.0
      %5830 = vmatpush1.msra.mxu0 0.0
      %5831 = vmatprep.subr.mxu0 0.0
      %5832 = vmatpush1.msra.mxu0 0.0
      %5833 = vmatprep.subr.mxu0 0.0
      %5834 = vmatpush1.msra.mxu0 0.0
      %5835 = vmatprep.subr.mxu0 0.0
      %5836 = vmatpush1.msra.mxu0 0.0
      %5837 = vmatprep.subr.mxu0 0.0
      %5838 = vmatpush1.msra.mxu0 0.0
      %5839 = vmatprep.subr.mxu0 0.0
      %5840 = vmatpush1.msra.mxu0 0.0
      %5841 = vmatprep.subr.mxu0 0.0
      %5842 = vmatpush1.msra.mxu0 0.0
      %5843 = vmatprep.subr.mxu0 0.0
      %5844 = vmatpush1.msra.mxu0 0.0
      %5845 = vmatprep.subr.mxu0 0.0
      %5846 = vmatpush1.msra.mxu0 0.0
      %5847 = vmatprep.subr.mxu0 0.0
      %5848 = vmatpush1.msra.mxu0 0.0
      %5849 = vmatprep.subr.mxu0 0.0
      %5850 = vmatpush1.msra.mxu0 0.0
      %5851 = vmatprep.subr.mxu0 0.0
      %5852 = vmatpush1.msra.mxu0 0.0
      %5853 = vmatprep.subr.mxu0 0.0
      %5854 = vmatpush1.msra.mxu0 0.0
      %5855 = vmatprep.mubr.f32.mxu0 0.0
      %5856 = vmatmul.mubr.f32.gmra.mrb[0].mxu0 %v5712
      %v5857 = vpop.f32.mrb[0].mxu0
      %v5858 = vadd.f32 %v5783, %v5857
      %v5859 = vpop.f32.mrb[0].mxu0
      %5860 = vmatprep.mubr.f32.mxu0 0.0
      %5861 = vmatmul.mubr.f32.gmra.mrb[0].mxu0 %v5714
      %v5862 = vpop.f32.mrb[0].mxu0
      %v5863 = vadd.f32 %v5788, %v5862
      %v5864 = vpop.f32.mrb[0].mxu0
      %5865 = vdwg.mxu0
      %v5866 = vmax.f32 %v5858, 0.0
      %v5867 = vmax.f32 %v5863, 0.0
      %v5870 = vcombine.high %v5866, %v5866
      %v5871 = vcombine.high %v5867, %v5867
      %s5874 = scalar_lea.vmem [#allocation4], 8
      %vm5875 = vcmask 257024
      %5876 = vst.msk [vmem:[%s5874 + $0x1] sm:$0xf] %vm5875, %v5866
      %5877 = vst.msk [vmem:[%s5874 + $0x9] sm:$0xf] %vm5875, %v5870
      %5878 = vst.msk [vmem:[%s5874 + $0x11] sm:$0xf] %vm5875, %v5867
      %5879 = vst.msk [vmem:[%s5874 + $0x19] sm:$0xf] %vm5875, %v5871
      %v5880 = vld [vmem:[#allocation4] sm:$0x3f]
      %v5881 = vld [vmem:[#allocation4 + $0x8] sm:$0x3f]
      %v5882 = vld [vmem:[#allocation4 + $0x10] sm:$0x3f]
      %v5883 = vld [vmem:[#allocation4 + $0x18] sm:$0x3f]
      %v5884 = vld [vmem:[#allocation4 + $0x20] sm:$0x3f]
      %v5890 = vcombine.high %v5880, %v5880
      %v5892 = vunpack.c.l.s4 1983009808
      %v5893 = vunpack.c.0.s8 %v5892
      %v5894 = vlaneseq
      %v5895 = vshrl.u32 %v5894, 7
      %v5896 = vsub.s32 %v5893, %v5895
      %v5897 = vrot.slane %v5880, %v5896
      %v5899 = vunpack.c.l.s4 1983009808
      %v5900 = vunpack.c.0.s8 %v5899
      %v5901 = vlaneseq
      %v5902 = vshrl.u32 %v5901, 7
      %v5903 = vsub.s32 %v5900, %v5902
      %v5904 = vrot.slane %v5890, %v5903
      %v5905 = vcombine.high %v5897, %v5897
      %v5906 = vcombine.high %v5881, %v5881
      %v5908 = vunpack.c.l.s4 1983009808
      %v5909 = vunpack.c.0.s8 %v5908
      %v5910 = vlaneseq
      %v5911 = vshrl.u32 %v5910, 7
      %v5912 = vsub.s32 %v5909, %v5911
      %v5913 = vrot.slane %v5881, %v5912
      %v5915 = vunpack.c.l.s4 1983009808
      %v5916 = vunpack.c.0.s8 %v5915
      %v5917 = vlaneseq
      %v5918 = vshrl.u32 %v5917, 7
      %v5919 = vsub.s32 %v5916, %v5918
      %v5920 = vrot.slane %v5906, %v5919
      %v5921 = vcombine.high %v5913, %v5913
      %v5922 = vcombine.high %v5882, %v5882
      %v5924 = vunpack.c.l.s4 1983009808
      %v5925 = vunpack.c.0.s8 %v5924
      %v5926 = vlaneseq
      %v5927 = vshrl.u32 %v5926, 7
      %v5928 = vsub.s32 %v5925, %v5927
      %v5929 = vrot.slane %v5882, %v5928
      %v5931 = vunpack.c.l.s4 1983009808
      %v5932 = vunpack.c.0.s8 %v5931
      %v5933 = vlaneseq
      %v5934 = vshrl.u32 %v5933, 7
      %v5935 = vsub.s32 %v5932, %v5934
      %v5936 = vrot.slane %v5922, %v5935
      %v5937 = vcombine.high %v5929, %v5929
      %v5938 = vcombine.high %v5883, %v5883
      %v5940 = vunpack.c.l.s4 1983009808
      %v5941 = vunpack.c.0.s8 %v5940
      %v5942 = vlaneseq
      %v5943 = vshrl.u32 %v5942, 7
      %v5944 = vsub.s32 %v5941, %v5943
      %v5945 = vrot.slane %v5883, %v5944
      %v5947 = vunpack.c.l.s4 1983009808
      %v5948 = vunpack.c.0.s8 %v5947
      %v5949 = vlaneseq
      %v5950 = vshrl.u32 %v5949, 7
      %v5951 = vsub.s32 %v5948, %v5950
      %v5952 = vrot.slane %v5938, %v5951
      %v5953 = vcombine.high %v5945, %v5945
      %v5954 = vcombine.high %v5884, %v5884
      %v5956 = vunpack.c.l.s4 1983009808
      %v5957 = vunpack.c.0.s8 %v5956
      %v5958 = vlaneseq
      %v5959 = vshrl.u32 %v5958, 7
      %v5960 = vsub.s32 %v5957, %v5959
      %v5961 = vrot.slane %v5884, %v5960
      %v5963 = vunpack.c.l.s4 1983009808
      %v5964 = vunpack.c.0.s8 %v5963
      %v5965 = vlaneseq
      %v5966 = vshrl.u32 %v5965, 7
      %v5967 = vsub.s32 %v5964, %v5966
      %v5968 = vrot.slane %v5954, %v5967
      %v5969 = vcombine.high %v5961, %v5961
      %v5970 = vlaneseq
      %v5971 = vshrl.u32 %v5970, 7
      %v5972 = vsub.s32 0, %v5971
      %v5973 = vrot.slane %v5897, %v5972
      %v5974 = vlaneseq
      %v5975 = vshrl.u32 %v5974, 7
      %v5976 = vsub.s32 0, %v5975
      %v5977 = vrot.slane %v5905, %v5976
      %v5978 = vlaneseq
      %v5979 = vshrl.u32 %v5978, 7
      %v5980 = vsub.s32 0, %v5979
      %v5981 = vrot.slane %v5929, %v5980
      %v5982 = vlaneseq
      %v5983 = vshrl.u32 %v5982, 7
      %v5984 = vsub.s32 0, %v5983
      %v5985 = vrot.slane %v5937, %v5984
      %v5986 = vsel %vm3251, %v5977, %v5973
      %v5987 = vsel %vm3253, %v5981, %v5986
      %v5988 = vsel %vm3255, %v5985, %v5987
      %v5990 = vlaneseq
      %v5991 = vshrl.u32 %v5990, 7
      %v5992 = vsub.s32 1, %v5991
      %v5993 = vrot.slane %v5897, %v5992
      %v5994 = vlaneseq
      %v5995 = vshrl.u32 %v5994, 7
      %v5996 = vsub.s32 1, %v5995
      %v5997 = vrot.slane %v5905, %v5996
      %v5998 = vlaneseq
      %v5999 = vshrl.u32 %v5998, 7
      %v6000 = vsub.s32 1, %v5999
      %v6001 = vrot.slane %v5929, %v6000
      %v6002 = vlaneseq
      %v6003 = vshrl.u32 %v6002, 7
      %v6004 = vsub.s32 1, %v6003
      %v6005 = vrot.slane %v5937, %v6004
      %v6006 = vsel %vm3251, %v5997, %v5993
      %v6007 = vsel %vm3253, %v6001, %v6006
      %v6008 = vsel %vm3255, %v6005, %v6007
      %6009 = vrot.lane.b32.xlu0 %v6008, 32
      %v6010 = vpop.permute.xlu0 %6009
      %v6012 = vlaneseq
      %v6013 = vshrl.u32 %v6012, 7
      %v6014 = vsub.s32 0, %v6013
      %v6015 = vrot.slane %v5904, %v6014
      %v6016 = vlaneseq
      %v6017 = vshrl.u32 %v6016, 7
      %v6018 = vsub.s32 0, %v6017
      %v6019 = vrot.slane %v5936, %v6018
      %v6020 = vsel %vm3251, %v6015, %v5977
      %v6021 = vsel %vm3253, %v5985, %v6020
      %v6022 = vsel %vm3255, %v6019, %v6021
      %6023 = vrot.lane.b32.xlu0 %v6022, 64
      %v6024 = vpop.permute.xlu0 %6023
      %v6026 = vlaneseq
      %v6027 = vshrl.u32 %v6026, 7
      %v6028 = vsub.s32 0, %v6027
      %v6029 = vrot.slane %v5913, %v6028
      %v6030 = vlaneseq
      %v6031 = vshrl.u32 %v6030, 7
      %v6032 = vsub.s32 0, %v6031
      %v6033 = vrot.slane %v5921, %v6032
      %v6034 = vlaneseq
      %v6035 = vshrl.u32 %v6034, 7
      %v6036 = vsub.s32 0, %v6035
      %v6037 = vrot.slane %v5945, %v6036
      %v6038 = vlaneseq
      %v6039 = vshrl.u32 %v6038, 7
      %v6040 = vsub.s32 0, %v6039
      %v6041 = vrot.slane %v5953, %v6040
      %v6042 = vsel %vm3251, %v6033, %v6029
      %v6043 = vsel %vm3253, %v6037, %v6042
      %v6044 = vsel %vm3255, %v6041, %v6043
      %6045 = vrot.lane.b32.xlu0 %v6044, 96
      %v6046 = vpop.permute.xlu0 %6045
      %v6048 = vlaneseq
      %v6049 = vshrl.u32 %v6048, 7
      %v6050 = vsub.s32 1, %v6049
      %v6051 = vrot.slane %v5913, %v6050
      %v6052 = vlaneseq
      %v6053 = vshrl.u32 %v6052, 7
      %v6054 = vsub.s32 1, %v6053
      %v6055 = vrot.slane %v5921, %v6054
      %v6056 = vlaneseq
      %v6057 = vshrl.u32 %v6056, 7
      %v6058 = vsub.s32 1, %v6057
      %v6059 = vrot.slane %v5945, %v6058
      %v6060 = vlaneseq
      %v6061 = vshrl.u32 %v6060, 7
      %v6062 = vsub.s32 1, %v6061
      %v6063 = vrot.slane %v5953, %v6062
      %v6064 = vsel %vm3251, %v6055, %v6051
      %v6065 = vsel %vm3253, %v6059, %v6064
      %v6066 = vsel %vm3255, %v6063, %v6065
      %v6068 = vlaneseq
      %v6069 = vshrl.u32 %v6068, 7
      %v6070 = vsub.s32 0, %v6069
      %v6071 = vrot.slane %v5920, %v6070
      %v6072 = vlaneseq
      %v6073 = vshrl.u32 %v6072, 7
      %v6074 = vsub.s32 0, %v6073
      %v6075 = vrot.slane %v5952, %v6074
      %v6076 = vsel %vm3251, %v6071, %v6033
      %v6077 = vsel %vm3253, %v6041, %v6076
      %v6078 = vsel %vm3255, %v6075, %v6077
      %6079 = vrot.lane.b32.xlu0 %v6078, 32
      %v6080 = vpop.permute.xlu0 %6079
      %v6082 = vlaneseq
      %v6083 = vshrl.u32 %v6082, 7
      %v6084 = vsub.s32 0, %v6083
      %v6085 = vrot.slane %v5961, %v6084
      %v6086 = vlaneseq
      %v6087 = vshrl.u32 %v6086, 7
      %v6088 = vsub.s32 0, %v6087
      %v6089 = vrot.slane %v5969, %v6088
      %v6090 = vsel %vm3251, %v5985, %v5981
      %v6091 = vsel %vm3253, %v6085, %v6090
      %v6092 = vsel %vm3255, %v6089, %v6091
      %6093 = vrot.lane.b32.xlu0 %v6092, 64
      %v6094 = vpop.permute.xlu0 %6093
      %v6096 = vlaneseq
      %v6097 = vshrl.u32 %v6096, 7
      %v6098 = vsub.s32 1, %v6097
      %v6099 = vrot.slane %v5961, %v6098
      %v6100 = vlaneseq
      %v6101 = vshrl.u32 %v6100, 7
      %v6102 = vsub.s32 1, %v6101
      %v6103 = vrot.slane %v5969, %v6102
      %v6104 = vsel %vm3251, %v6005, %v6001
      %v6105 = vsel %vm3253, %v6099, %v6104
      %v6106 = vsel %vm3255, %v6103, %v6105
      %6107 = vrot.lane.b32.xlu0 %v6106, 96
      %v6108 = vpop.permute.xlu0 %6107
      %v6110 = vlaneseq
      %v6111 = vshrl.u32 %v6110, 7
      %v6112 = vsub.s32 0, %v6111
      %v6113 = vrot.slane %v5968, %v6112
      %v6114 = vsel %vm3251, %v6019, %v5985
      %v6115 = vsel %vm3253, %v6089, %v6114
      %v6116 = vsel %vm3255, %v6113, %v6115
      %v6117 = vsel %vm443, %v5988, %v6010
      %v6118 = vsel %vm4716, %v6117, %v6024
      %v6119 = vsel %vm4734, %v6118, %v6046
      %v6120 = vsel %vm443, %v6066, %v6080
      %v6121 = vsel %vm4716, %v6120, %v6094
      %v6122 = vsel %vm4734, %v6121, %v6108
      %v6123 = vld [vmem:[%s7] sm:$0xff]
      %v6124 = vld [vmem:[%s7 + $0x8] sm:$0xff]
      %v6125 = vld [vmem:[%s7 + $0x10] sm:$0xff]
      %v6126 = vld [vmem:[%s7 + $0x18] sm:$0xff]
      %v6127 = vld [vmem:[%s7 + $0x20] sm:$0xff]
      %v6128 = vld [vmem:[%s7 + $0x28] sm:$0xff]
      %v6129 = vld [vmem:[%s7 + $0x30] sm:$0xff]
      %v6130 = vld [vmem:[%s7 + $0x38] sm:$0xff]
      %v6131 = vld [vmem:[%s7 + $0x40] sm:$0xff]
      %v6132 = vld [vmem:[%s7 + $0x48] sm:$0xff]
      %v6133 = vld [vmem:[%s7 + $0x50] sm:$0xff]
      %v6134 = vld [vmem:[%s7 + $0x58] sm:$0xff]
      %v6135 = vld [vmem:[%s7 + $0x60] sm:$0xff]
      %v6136 = vld [vmem:[%s7 + $0x68] sm:$0xff]
      %v6137 = vld [vmem:[%s7 + $0x70] sm:$0xff]
      %v6138 = vld [vmem:[%s7 + $0x78] sm:$0xff]
      %v6139 = vld [vmem:[%s7 + $0x80] sm:$0xff]
      %v6140 = vld [vmem:[%s7 + $0x88] sm:$0xff]
      %v6141 = vld [vmem:[%s7 + $0x90] sm:$0xff]
      %v6142 = vld [vmem:[%s7 + $0x98] sm:$0xff]
      %v6143 = vld [vmem:[%s7 + $0xa0] sm:$0xff]
      %v6144 = vld [vmem:[%s7 + $0xa8] sm:$0xff]
      %v6145 = vld [vmem:[%s7 + $0xb0] sm:$0xff]
      %v6146 = vld [vmem:[%s7 + $0xb8] sm:$0xff]
      %v6147 = vld [vmem:[%s7 + $0xc0] sm:$0xff]
      %v6148 = vld [vmem:[%s7 + $0xc8] sm:$0xff]
      %v6149 = vld [vmem:[%s7 + $0xd0] sm:$0xff]
      %v6150 = vld [vmem:[%s7 + $0xd8] sm:$0xff]
      %v6151 = vld [vmem:[%s7 + $0xe0] sm:$0xff]
      %v6152 = vld [vmem:[%s7 + $0xe8] sm:$0xff]
      %v6153 = vld [vmem:[%s7 + $0xf0] sm:$0xff]
      %v6154 = vld [vmem:[%s7 + $0xf8] sm:$0xff]
      %v6155 = vld [vmem:[%s7 + $0x100] sm:$0xff]
      %v6156 = vld [vmem:[%s7 + $0x108] sm:$0xff]
      %v6157 = vld [vmem:[%s7 + $0x110] sm:$0xff]
      %v6158 = vld [vmem:[%s7 + $0x118] sm:$0xff]
      %v6159 = vld [vmem:[%s8] sm:$0x1]
      %v6161 = vlaneseq
      %v6162 = vshrl.u32 %v6161, 7
      %v6163 = vsub.s32 0, %v6162
      %v6164 = vrot.slane %v6159, %v6163
      %v6166 = vsel %vm443, %v6116, 0
      %6168 = vmatprep.subr.mxu0 0.0
      %6169 = vmatpush1.msra.mxu0 %v6123
      %6170 = vmatprep.subr.mxu0 0.0
      %6171 = vmatpush1.msra.mxu0 %v6124
      %6172 = vmatprep.subr.mxu0 0.0
      %6173 = vmatpush1.msra.mxu0 %v6125
      %6174 = vmatprep.subr.mxu0 0.0
      %6175 = vmatpush1.msra.mxu0 %v6126
      %6176 = vmatprep.subr.mxu0 0.0
      %6177 = vmatpush1.msra.mxu0 %v6127
      %6178 = vmatprep.subr.mxu0 0.0
      %6179 = vmatpush1.msra.mxu0 %v6128
      %6180 = vmatprep.subr.mxu0 0.0
      %6181 = vmatpush1.msra.mxu0 %v6129
      %6182 = vmatprep.subr.mxu0 0.0
      %6183 = vmatpush1.msra.mxu0 %v6130
      %6184 = vmatprep.subr.mxu0 0.0
      %6185 = vmatpush1.msra.mxu0 %v6131
      %6186 = vmatprep.subr.mxu0 0.0
      %6187 = vmatpush1.msra.mxu0 %v6132
      %6188 = vmatprep.subr.mxu0 0.0
      %6189 = vmatpush1.msra.mxu0 %v6133
      %6190 = vmatprep.subr.mxu0 0.0
      %6191 = vmatpush1.msra.mxu0 %v6134
      %6192 = vmatprep.subr.mxu0 0.0
      %6193 = vmatpush1.msra.mxu0 %v6135
      %6194 = vmatprep.subr.mxu0 0.0
      %6195 = vmatpush1.msra.mxu0 %v6136
      %6196 = vmatprep.subr.mxu0 0.0
      %6197 = vmatpush1.msra.mxu0 %v6137
      %6198 = vmatprep.subr.mxu0 0.0
      %6199 = vmatpush1.msra.mxu0 %v6138
      %6200 = vmatprep.subr.mxu0 0.0
      %6201 = vmatpush1.msra.mxu0 %v6139
      %6202 = vmatprep.subr.mxu0 0.0
      %6203 = vmatpush1.msra.mxu0 %v6140
      %6204 = vmatprep.subr.mxu0 0.0
      %6205 = vmatpush1.msra.mxu0 %v6141
      %6206 = vmatprep.subr.mxu0 0.0
      %6207 = vmatpush1.msra.mxu0 %v6142
      %6208 = vmatprep.subr.mxu0 0.0
      %6209 = vmatpush1.msra.mxu0 %v6143
      %6210 = vmatprep.subr.mxu0 0.0
      %6211 = vmatpush1.msra.mxu0 %v6144
      %6212 = vmatprep.subr.mxu0 0.0
      %6213 = vmatpush1.msra.mxu0 %v6145
      %6214 = vmatprep.subr.mxu0 0.0
      %6215 = vmatpush1.msra.mxu0 %v6146
      %6216 = vmatprep.subr.mxu0 0.0
      %6217 = vmatpush1.msra.mxu0 %v6147
      %6218 = vmatprep.subr.mxu0 0.0
      %6219 = vmatpush1.msra.mxu0 %v6148
      %6220 = vmatprep.subr.mxu0 0.0
      %6221 = vmatpush1.msra.mxu0 %v6149
      %6222 = vmatprep.subr.mxu0 0.0
      %6223 = vmatpush1.msra.mxu0 %v6150
      %6224 = vmatprep.subr.mxu0 0.0
      %6225 = vmatpush1.msra.mxu0 %v6151
      %6226 = vmatprep.subr.mxu0 0.0
      %6227 = vmatpush1.msra.mxu0 %v6152
      %6228 = vmatprep.subr.mxu0 0.0
      %6229 = vmatpush1.msra.mxu0 %v6153
      %6230 = vmatprep.subr.mxu0 0.0
      %6231 = vmatpush1.msra.mxu0 %v6154
      %6232 = vmatprep.mubr.f32.mxu0 %v6122
      %6233 = vmatmul.mubr.f32.gmra.mrb[0].mxu0 %v6119
      %v6234 = vpop.f32.mrb[0].mxu0
      %v6235 = vadd.f32 %v6164, %v6234
      %v6236 = vpop.f32.mrb[0].mxu0
      %6237 = vdwg.mxu0
      %6238 = vmatprep.subr.mxu0 0.0
      %6239 = vmatpush1.msra.mxu0 %v6155
      %6240 = vmatprep.subr.mxu0 0.0
      %6241 = vmatpush1.msra.mxu0 %v6156
      %6242 = vmatprep.subr.mxu0 0.0
      %6243 = vmatpush1.msra.mxu0 %v6157
      %6244 = vmatprep.subr.mxu0 0.0
      %6245 = vmatpush1.msra.mxu0 %v6158
      %6246 = vmatprep.subr.mxu0 0.0
      %6247 = vmatpush1.msra.mxu0 0.0
      %6248 = vmatprep.subr.mxu0 0.0
      %6249 = vmatpush1.msra.mxu0 0.0
      %6250 = vmatprep.subr.mxu0 0.0
      %6251 = vmatpush1.msra.mxu0 0.0
      %6252 = vmatprep.subr.mxu0 0.0
      %6253 = vmatpush1.msra.mxu0 0.0
      %6254 = vmatprep.subr.mxu0 0.0
      %6255 = vmatpush1.msra.mxu0 0.0
      %6256 = vmatprep.subr.mxu0 0.0
      %6257 = vmatpush1.msra.mxu0 0.0
      %6258 = vmatprep.subr.mxu0 0.0
      %6259 = vmatpush1.msra.mxu0 0.0
      %6260 = vmatprep.subr.mxu0 0.0
      %6261 = vmatpush1.msra.mxu0 0.0
      %6262 = vmatprep.subr.mxu0 0.0
      %6263 = vmatpush1.msra.mxu0 0.0
      %6264 = vmatprep.subr.mxu0 0.0
      %6265 = vmatpush1.msra.mxu0 0.0
      %6266 = vmatprep.subr.mxu0 0.0
      %6267 = vmatpush1.msra.mxu0 0.0
      %6268 = vmatprep.subr.mxu0 0.0
      %6269 = vmatpush1.msra.mxu0 0.0
      %6270 = vmatprep.subr.mxu0 0.0
      %6271 = vmatpush1.msra.mxu0 0.0
      %6272 = vmatprep.subr.mxu0 0.0
      %6273 = vmatpush1.msra.mxu0 0.0
      %6274 = vmatprep.subr.mxu0 0.0
      %6275 = vmatpush1.msra.mxu0 0.0
      %6276 = vmatprep.subr.mxu0 0.0
      %6277 = vmatpush1.msra.mxu0 0.0
      %6278 = vmatprep.subr.mxu0 0.0
      %6279 = vmatpush1.msra.mxu0 0.0
      %6280 = vmatprep.subr.mxu0 0.0
      %6281 = vmatpush1.msra.mxu0 0.0
      %6282 = vmatprep.subr.mxu0 0.0
      %6283 = vmatpush1.msra.mxu0 0.0
      %6284 = vmatprep.subr.mxu0 0.0
      %6285 = vmatpush1.msra.mxu0 0.0
      %6286 = vmatprep.subr.mxu0 0.0
      %6287 = vmatpush1.msra.mxu0 0.0
      %6288 = vmatprep.subr.mxu0 0.0
      %6289 = vmatpush1.msra.mxu0 0.0
      %6290 = vmatprep.subr.mxu0 0.0
      %6291 = vmatpush1.msra.mxu0 0.0
      %6292 = vmatprep.subr.mxu0 0.0
      %6293 = vmatpush1.msra.mxu0 0.0
      %6294 = vmatprep.subr.mxu0 0.0
      %6295 = vmatpush1.msra.mxu0 0.0
      %6296 = vmatprep.subr.mxu0 0.0
      %6297 = vmatpush1.msra.mxu0 0.0
      %6298 = vmatprep.subr.mxu0 0.0
      %6299 = vmatpush1.msra.mxu0 0.0
      %6300 = vmatprep.subr.mxu0 0.0
      %6301 = vmatpush1.msra.mxu0 0.0
      %6302 = vmatprep.mubr.f32.mxu0 0.0
      %6303 = vmatmul.mubr.f32.gmra.mrb[0].mxu0 %v6166
      %v6304 = vpop.f32.mrb[0].mxu0
      %v6305 = vadd.f32 %v6235, %v6304
      %v6306 = vpop.f32.mrb[0].mxu0
      %6307 = vdwg.mxu0
      %v6308 = vmax.f32 %v6305, 0.0
      %v6309 = vld [vmem:[%s9] sm:$0xff]
      %v6310 = vld [vmem:[%s9 + $0x8] sm:$0xff]
      %v6311 = vld [vmem:[%s9 + $0x10] sm:$0xff]
      %v6312 = vld [vmem:[%s9 + $0x18] sm:$0xff]
      %v6313 = vld [vmem:[%s10] sm:$0x1]
      %v6315 = vlaneseq
      %v6316 = vshrl.u32 %v6315, 7
      %v6317 = vsub.s32 0, %v6316
      %v6318 = vrot.slane %v6313, %v6317
      %v6321 = vsel %vm443, %v6308, 0
      %6323 = vmatprep.subr.mxu0 0.0
      %6324 = vmatpush1.msra.mxu0 %v6309
      %6325 = vmatprep.subr.mxu0 0.0
      %6326 = vmatpush1.msra.mxu0 %v6310
      %6327 = vmatprep.subr.mxu0 0.0
      %6328 = vmatpush1.msra.mxu0 %v6311
      %6329 = vmatprep.subr.mxu0 0.0
      %6330 = vmatpush1.msra.mxu0 %v6312
      %6331 = vmatprep.subr.mxu0 0.0
      %6332 = vmatpush1.msra.mxu0 0.0
      %6333 = vmatprep.subr.mxu0 0.0
      %6334 = vmatpush1.msra.mxu0 0.0
      %6335 = vmatprep.subr.mxu0 0.0
      %6336 = vmatpush1.msra.mxu0 0.0
      %6337 = vmatprep.subr.mxu0 0.0
      %6338 = vmatpush1.msra.mxu0 0.0
      %6339 = vmatprep.subr.mxu0 0.0
      %6340 = vmatpush1.msra.mxu0 0.0
      %6341 = vmatprep.subr.mxu0 0.0
      %6342 = vmatpush1.msra.mxu0 0.0
      %6343 = vmatprep.subr.mxu0 0.0
      %6344 = vmatpush1.msra.mxu0 0.0
      %6345 = vmatprep.subr.mxu0 0.0
      %6346 = vmatpush1.msra.mxu0 0.0
      %6347 = vmatprep.subr.mxu0 0.0
      %6348 = vmatpush1.msra.mxu0 0.0
      %6349 = vmatprep.subr.mxu0 0.0
      %6350 = vmatpush1.msra.mxu0 0.0
      %6351 = vmatprep.subr.mxu0 0.0
      %6352 = vmatpush1.msra.mxu0 0.0
      %6353 = vmatprep.subr.mxu0 0.0
      %6354 = vmatpush1.msra.mxu0 0.0
      %6355 = vmatprep.subr.mxu0 0.0
      %6356 = vmatpush1.msra.mxu0 0.0
      %6357 = vmatprep.subr.mxu0 0.0
      %6358 = vmatpush1.msra.mxu0 0.0
      %6359 = vmatprep.subr.mxu0 0.0
      %6360 = vmatpush1.msra.mxu0 0.0
      %6361 = vmatprep.subr.mxu0 0.0
      %6362 = vmatpush1.msra.mxu0 0.0
      %6363 = vmatprep.subr.mxu0 0.0
      %6364 = vmatpush1.msra.mxu0 0.0
      %6365 = vmatprep.subr.mxu0 0.0
      %6366 = vmatpush1.msra.mxu0 0.0
      %6367 = vmatprep.subr.mxu0 0.0
      %6368 = vmatpush1.msra.mxu0 0.0
      %6369 = vmatprep.subr.mxu0 0.0
      %6370 = vmatpush1.msra.mxu0 0.0
      %6371 = vmatprep.subr.mxu0 0.0
      %6372 = vmatpush1.msra.mxu0 0.0
      %6373 = vmatprep.subr.mxu0 0.0
      %6374 = vmatpush1.msra.mxu0 0.0
      %6375 = vmatprep.subr.mxu0 0.0
      %6376 = vmatpush1.msra.mxu0 0.0
      %6377 = vmatprep.subr.mxu0 0.0
      %6378 = vmatpush1.msra.mxu0 0.0
      %6379 = vmatprep.subr.mxu0 0.0
      %6380 = vmatpush1.msra.mxu0 0.0
      %6381 = vmatprep.subr.mxu0 0.0
      %6382 = vmatpush1.msra.mxu0 0.0
      %6383 = vmatprep.subr.mxu0 0.0
      %6384 = vmatpush1.msra.mxu0 0.0
      %6385 = vmatprep.subr.mxu0 0.0
      %6386 = vmatpush1.msra.mxu0 0.0
      %6387 = vmatprep.mubr.f32.mxu0 0.0
      %6388 = vmatmul.mubr.f32.gmra.mrb[0].mxu0 %v6321
      %v6389 = vpop.f32.mrb[0].mxu0
      %v6390 = vadd.f32 %v6318, %v6389
      %v6391 = vpop.f32.mrb[0].mxu0
      %6392 = vdwg.mxu0
      %v6395 = vunpack.c.l.s4 1983009808
      %v6396 = vunpack.c.0.s8 %v6395
      %v6397 = vlaneseq
      %v6398 = vshrl.u32 %v6397, 7
      %v6399 = vsub.s32 %v6396, %v6398
      %v6400 = vrot.slane %v6390, %v6399
      %v6401 = vcombine.high %v6400, %v6400
      %vm6404 = vcmask 9216
      %6405 = vst.msk [vmem:[%s386] sm:$0x3] %vm6404, %v6400
      %6406 = vst.msk [vmem:[%s386 + $0x2] sm:$0x3] %vm6404, %v6401
      %p6407 = scmp.lt.s32.totalorder %s22, 1
      %s6408 = scalar_select %p6407, %s22, 1
      %s6409 = smul.addr %s6408, 2
      %s6410 = smul.addr %s6409, 2
      %s6411 = scalar_lea.vmem %s11, %s6410
      // Predicated region
      $region65: #{_drn_forward.1} parent=63 // pred_check
        %p6412 = pneg %p276
      $region66: #{_drn_forward.1} parent=63 // pred_check_branch
        %6414 = sbr.rel (%p6412) target = $region68
      $region67: #{_drn_forward.1} parent=63 // pred_region
        _
      $region68: #{_drn_forward.1} parent=63 // pred_fallthru
        _
    $region64: #{_drn_forward.1} parent=5 // pred_fallthru
      _
    %p6415 = scmp.le.s32.totalorder 2, %s17
    // Predicated region
    $region69: #{_drn_forward.1} parent=5 // pred_check
      %p6416 = pneg %p6415
    $region70: #{_drn_forward.1} parent=5 // pred_check_branch
      %6418 = sbr.rel (%p6416) target = $region72
    $region71: #{_drn_forward.1} parent=5 // pred_region
      %s6419 = ssub.s32 %s17, 2
      // Predicated region
      $region73: #{_drn_forward.1} parent=71 // pred_check
        %p6420 = pneg %p282
      $region74: #{_drn_forward.1} parent=71 // pred_check_branch
        %6422 = sbr.rel (%p6420) target = $region76
      $region75: #{_drn_forward.1} parent=71 // pred_region
        %p6423 = scmp.lt.s32.totalorder %s23, 1
        %s6424 = scalar_select %p6423, %s23, 1
        %s6425 = smul.addr %s6424, 2
        %s6426 = smul.addr %s6425, 2
        %s6427 = scalar_lea.vmem %s11, %s6426
      $region76: #{_drn_forward.1} parent=71 // pred_fallthru
        _
    $region72: #{_drn_forward.1} parent=5 // pred_fallthru
      _
  $region6: #{_drn_forward.1} parent=0 // loop_footer
    %s21 = sadd.s32 1, %s17
  $region7: #{_drn_forward.1} parent=0 // loop_footer_branch
    %16 = sbr.rel target = $region3
  $region8: #{_drn_forward.1} parent=0 // loop_exit
    _

</llo_original>
